<compile_context>
chip_gen: v6e
topology: v6e:2x2x1
jax: 0.10.0
libtpu: 0.0.40
codegen_flags: <defaults>
</compile_context>

<pallas_src>
import functools

import jax
import jax.numpy as jnp
from jax import lax
from jax.experimental import pallas as pl
from jax.experimental.pallas import tpu as pltpu


# ----------------------------------------------------------------------------
# Fused bottleneck kernel
# ----------------------------------------------------------------------------
def _bottleneck_kernel(xa_ref, xb_ref, w1_ref, w2_ref, w3_ref,
                       b1_ref, b2_ref, b3_ref, o_ref,
                       mid_ref, acc_ref, *, d, th, H, W):
    # xa_ref: (1, th,   Wp, Cin)  padded rows [i*th,        i*th+th)
    # xb_ref: (1, 2d,   Wp, Cin)  padded rows [i*th+th,     i*th+th+2d)
    # o_ref : (1, th,   W,  Cout) output rows [i*th,        i*th+th)
    # mid_ref: (th+2d, Wp, Cmid) bf16 scratch   acc_ref: (th, W, Cmid) f32 scratch
    wp = W + 2 * d
    cmid = w1_ref.shape[1]
    cout = w3_ref.shape[1]
    p0 = pl.program_id(1) * th          # first padded row of this block

    b1 = b1_ref[...].reshape(1, 1, cmid)
    b2 = b2_ref[...].reshape(1, 1, cmid)
    b3 = b3_ref[...].reshape(1, 1, cout)

    # ---- stage 1: 1x1 conv + bn1 + relu over the (th + 2d)-row halo block ----
    # Positions that fall in the zero-pad region of the original image must be
    # exactly 0 (that is conv2's zero padding), not relu(b1); mask them.
    def stage1(x_blk, dst, nrows):
        y = jnp.einsum("hwc,cd->hwd", x_blk, w1_ref[...],
                       preferred_element_type=jnp.float32)
        y = jnp.maximum(y + b1, 0.0)
        rows = lax.broadcasted_iota(jnp.int32, (nrows, wp, 1), 0) + (p0 + dst)
        cols = lax.broadcasted_iota(jnp.int32, (nrows, wp, 1), 1)
        valid = ((rows >= d) & (rows < d + H)
                 & (cols >= d) & (cols < d + W))
        mid_ref[dst:dst + nrows, :, :] = jnp.where(
            valid, y, 0.0).astype(mid_ref.dtype)

    stage1(xa_ref[0, :, :, :], 0, th)
    stage1(xb_ref[0, :, :, :], th, 2 * d)

    # ---- stage 2: 3x3 dilated conv + bn2 + relu (9 shifted bf16 matmuls,
    #               accumulated into an f32 VMEM scratch) ----
    for kh in range(3):
        for kw in range(3):
            patch = mid_ref[kh * d:kh * d + th, kw * d:kw * d + W, :]
            tap = jnp.einsum("hwc,cd->hwd", patch, w2_ref[kh, kw],
                             preferred_element_type=jnp.float32)
            if kh == 0 and kw == 0:
                acc_ref[...] = tap
            else:
                acc_ref[...] += tap
    y2 = jnp.maximum(acc_ref[...] + b2, 0.0).astype(jnp.bfloat16)

    # ---- stage 3: 1x1 conv + bn3 + residual add + relu ----
    y3 = jnp.einsum("hwc,cd->hwd", y2, w3_ref[...],
                    preferred_element_type=jnp.float32)
    # Residual rows straddle the two input pieces (A rows [d, th), B rows
    # [0, d)); write the output in two row chunks to avoid a concatenate.
    res_a = xa_ref[0, d:th, d:d + W, :].astype(jnp.float32)
    o_ref[0, 0:th - d, :, :] = jnp.maximum(
        y3[0:th - d] + b3 + res_a, 0.0).astype(o_ref.dtype)
    res_b = xb_ref[0, 0:d, d:d + W, :].astype(jnp.float32)
    o_ref[0, th - d:th, :, :] = jnp.maximum(
        y3[th - d:th] + b3 + res_b, 0.0).astype(o_ref.dtype)


def _pick_block_rows(H, d, requested=None):
    """Row-block height: a multiple of 2*dilation, >= 2d, capped near H."""
    step = 2 * d
    if requested is not None:
        th = max(step, -(-int(requested) // step) * step)
    else:
        th = max(step, min(32, H // 2))      # aim for >=2 row blocks per image
        th = -(-th // step) * step
    return min(th, -(-H // step) * step)


# ----------------------------------------------------------------------------
# Bottleneck forward (downsample=None => in_chans == out_chans * 4, stride 1)
# ----------------------------------------------------------------------------
def bottleneck_forward(x, params, *, atrous=1, block_rows=None,
                       out_dtype=jnp.bfloat16):
    N, H, W, cin = x.shape
    d = max(int(atrous), 1)

    # Fold BN scale into the conv weights (trace-time, free); keep biases f32.
    w1 = (params["w1"] * params["s1"][None, :]).astype(jnp.bfloat16)
    w2 = (params["w2"] * params["s2"][None, None, None, :]).astype(jnp.bfloat16)
    w3 = (params["w3"] * params["s3"][None, :]).astype(jnp.bfloat16)
    b1 = params["b1"].astype(jnp.float32).reshape(1, -1)
    b2 = params["b2"].astype(jnp.float32).reshape(1, -1)
    b3 = params["b3"].astype(jnp.float32).reshape(1, -1)
    cmid = w1.shape[1]
    cout = w3.shape[1]
    assert cout == cin, "identity residual requires in_chans == out_chans * 4"

    th = _pick_block_rows(H, d, block_rows)
    n_hblk = -(-H // th)
    h_grid = n_hblk * th
    wp = W + 2 * d
    hb = th // (2 * d)                   # piece-B block-index multiplier

    # Single zero-pad of the bf16 input: provides conv2's halo/zero-padding
    # source and the residual rows (extra bottom rows if th does not divide H).
    xpad = jnp.pad(x.astype(jnp.bfloat16),
                   ((0, 0), (d, h_grid - H + d), (d, d), (0, 0)))

    kernel = functools.partial(_bottleneck_kernel, d=d, th=th, H=H, W=W)

    # Rough VMEM budget (double-buffered blocks + weights + scratch) so large
    # tiles still compile on v5e (16 MiB default) without exceeding v7x VMEM.
    out_bytes = jnp.dtype(out_dtype).itemsize
    est = (2 * (th * wp * cin * 2 + 2 * d * wp * cin * 2
                + th * W * cout * out_bytes
                + (cin * cmid + 9 * cmid * cmid + cmid * cout) * 2
                + (2 * cmid + cout) * 4)
           + (th + 2 * d) * wp * cmid * 2 + th * W * cmid * 4)
    vmem_limit = int(min(max(2 * est, 16 * 1024 * 1024), 48 * 1024 * 1024))

    out = pl.pallas_call(
        kernel,
        out_shape=jax.ShapeDtypeStruct((N, h_grid, W, cout), out_dtype),
        grid_spec=pltpu.PrefetchScalarGridSpec(
            num_scalar_prefetch=0,
            grid=(N, n_hblk),
            in_specs=[
                pl.BlockSpec((1, th, wp, cin), lambda n, i: (n, i, 0, 0)),
                pl.BlockSpec((1, 2 * d, wp, cin),
                             lambda n, i: (n, (i + 1) * hb, 0, 0)),
                pl.BlockSpec((cin, cmid), lambda n, i: (0, 0)),
                pl.BlockSpec((3, 3, cmid, cmid), lambda n, i: (0, 0, 0, 0)),
                pl.BlockSpec((cmid, cout), lambda n, i: (0, 0)),
                pl.BlockSpec((1, cmid), lambda n, i: (0, 0)),
                pl.BlockSpec((1, cmid), lambda n, i: (0, 0)),
                pl.BlockSpec((1, cout), lambda n, i: (0, 0)),
            ],
            out_specs=pl.BlockSpec((1, th, W, cout), lambda n, i: (n, i, 0, 0)),
            scratch_shapes=[
                pltpu.VMEM((th + 2 * d, wp, cmid), jnp.bfloat16),   # mid act
                pltpu.VMEM((th, W, cmid), jnp.float32),             # conv2 acc
            ],
        ),
        compiler_params=pltpu.CompilerParams(
            dimension_semantics=("parallel", "parallel"),
            vmem_limit_bytes=vmem_limit,
        ),
    )(xpad, xpad, w1, w2, w3, b1, b2, b3)
    return out[:, :H, :, :]


# ----------------------------------------------------------------------------
# Pure-JAX reference mirroring the kernel's bf16/f32 mixed precision
# ----------------------------------------------------------------------------
def bottleneck_reference(x, params, *, atrous=1, out_dtype=jnp.bfloat16):
    dn = ("NHWC", "HWIO", "NHWC")
    w1 = (params["w1"] * params["s1"][None, :]).astype(jnp.bfloat16)
    w2 = (params["w2"] * params["s2"][None, None, None, :]).astype(jnp.bfloat16)
    w3 = (params["w3"] * params["s3"][None, :]).astype(jnp.bfloat16)
    b1, b2, b3 = params["b1"], params["b2"], params["b3"]
    xb = x.astype(jnp.bfloat16)

    def pw(h, w):
        return lax.conv_general_dilated(
            h, w.reshape(1, 1, *w.shape), (1, 1), "VALID",
            dimension_numbers=dn, preferred_element_type=jnp.float32)

    out = jnp.maximum(pw(xb, w1) + b1, 0.0).astype(jnp.bfloat16)
    out = lax.conv_general_dilated(
        out, w2, (1, 1), [(atrous, atrous), (atrous, atrous)],
        rhs_dilation=(atrous, atrous), dimension_numbers=dn,
        preferred_element_type=jnp.float32)
    out = jnp.maximum(out + b2, 0.0).astype(jnp.bfloat16)
    out = pw(out, w3) + b3
    out = jnp.maximum(out + xb.astype(jnp.float32), 0.0)
    return out.astype(out_dtype)


# ----------------------------------------------------------------------------
# Deterministic parameter construction (folded BatchNorm, inference mode)
# ----------------------------------------------------------------------------
def make_params(key, in_chans, out_chans, expansion=4, eps=1e-5):
    cout = out_chans * expansion
    assert cout == in_chans, "downsample=None path needs in_chans == out_chans*4"
    ks = jax.random.split(key, 15)

    def bn_fold(kg, kb, km, kv, c):
        gamma = 1.0 + 0.1 * jax.random.normal(kg, (c,), jnp.float32)
        beta = 0.1 * jax.random.normal(kb, (c,), jnp.float32)
        mean = 0.1 * jax.random.normal(km, (c,), jnp.float32)
        var = 1.0 + 0.1 * jnp.abs(jax.random.normal(kv, (c,), jnp.float32))
        scale = gamma / jnp.sqrt(var + eps)
        bias = beta - mean * scale
        return scale, bias

    w1 = 0.1 * jax.random.normal(ks[0], (in_chans, out_chans), jnp.float32)
    w2 = 0.1 * jax.random.normal(ks[1], (3, 3, out_chans, out_chans), jnp.float32)
    w3 = 0.1 * jax.random.normal(ks[2], (out_chans, cout), jnp.float32)
    s1, b1 = bn_fold(ks[3], ks[4], ks[5], ks[6], out_chans)
    s2, b2 = bn_fold(ks[7], ks[8], ks[9], ks[10], out_chans)
    s3, b3 = bn_fold(ks[11], ks[12], ks[13], ks[14], cout)
    return dict(w1=w1, w2=w2, w3=w3, s1=s1, b1=b1, s2=s2, b2=b2, s3=s3, b3=b3)


if __name__ == "__main__":
    key = jax.random.PRNGKey(0)
    k_x, k_p = jax.random.split(key)

    N, H, W = 2, 16, 16
    out_chans = 4
    in_chans = out_chans * 4          # 16, so the residual add needs no downsample
    atrous = 2                        # exercise dilation / padding = atrous

    x = jax.random.normal(k_x, (N, H, W, in_chans), jnp.float32)
    params = make_params(k_p, in_chans, out_chans)

    out = bottleneck_forward(x, params, atrous=atrous)
    out = jax.block_until_ready(out)

    ref = bottleneck_reference(x, params, atrous=atrous)
    assert out.shape == (N, H, W, in_chans), out.shape
    ok = jnp.allclose(out.astype(jnp.float32), ref.astype(jnp.float32),
                      atol=2e-2, rtol=2e-2)
    assert bool(ok), float(
        jnp.max(jnp.abs(out.astype(jnp.float32) - ref.astype(jnp.float32))))

    print("KERNEL_OK")
</pallas_src>

<mosaic_0001>
module attributes {stable_mosaic.version = 11 : i64} {
  func.func @_bottleneck_kernel(%arg0: i32, %arg1: i32, %arg2: memref<1x8x20x16xbf16, #tpu.memory_space<vmem>>, %arg3: memref<1x4x20x16xbf16, #tpu.memory_space<vmem>>, %arg4: memref<16x4xbf16, #tpu.memory_space<vmem>>, %arg5: memref<3x3x4x4xbf16, #tpu.memory_space<vmem>>, %arg6: memref<4x16xbf16, #tpu.memory_space<vmem>>, %arg7: memref<1x4xf32, #tpu.memory_space<vmem>>, %arg8: memref<1x4xf32, #tpu.memory_space<vmem>>, %arg9: memref<1x16xf32, #tpu.memory_space<vmem>>, %arg10: memref<1x8x16x16xbf16, #tpu.memory_space<vmem>>, %arg11: memref<12x20x4xbf16, #tpu.memory_space<vmem>>, %arg12: memref<8x16x4xf32, #tpu.memory_space<vmem>>) attributes {dimension_semantics = [#tpu.dimension_semantics<parallel>, #tpu.dimension_semantics<parallel>], iteration_bounds = array<i64: 2, 2>, scalar_prefetch = 0 : i64, scratch_operands = 2 : i64, tpu.core_type = #tpu.core_type<tc>, window_params = [{transform_indices = @transform_0, window_bounds = array<i64: 1, 8, 20, 16>}, {transform_indices = @transform_1, window_bounds = array<i64: 1, 4, 20, 16>}, {pipeline_mode = #tpu.pipeline_mode<synchronous>, transform_indices = @transform_2, window_bounds = array<i64: 16, 4>}, {pipeline_mode = #tpu.pipeline_mode<synchronous>, transform_indices = @transform_3, window_bounds = array<i64: 3, 3, 4, 4>}, {pipeline_mode = #tpu.pipeline_mode<synchronous>, transform_indices = @transform_4, window_bounds = array<i64: 4, 16>}, {pipeline_mode = #tpu.pipeline_mode<synchronous>, transform_indices = @transform_5, window_bounds = array<i64: 1, 4>}, {pipeline_mode = #tpu.pipeline_mode<synchronous>, transform_indices = @transform_6, window_bounds = array<i64: 1, 4>}, {pipeline_mode = #tpu.pipeline_mode<synchronous>, transform_indices = @transform_7, window_bounds = array<i64: 1, 16>}, {transform_indices = @transform_8, window_bounds = array<i64: 1, 8, 16, 16>}]} {
    %c8_i32 = arith.constant 8 : i32
    %0 = arith.muli %arg1, %c8_i32 : i32
    %c0 = arith.constant 0 : index
    %c0_0 = arith.constant 0 : index
    %1 = vector.load %arg7[%c0, %c0_0] : memref<1x4xf32, #tpu.memory_space<vmem>>, vector<1x4xf32>
    %2 = vector.shape_cast %1 : vector<1x4xf32> to vector<1x1x4xf32>
    %c0_1 = arith.constant 0 : index
    %c0_2 = arith.constant 0 : index
    %3 = vector.load %arg8[%c0_1, %c0_2] : memref<1x4xf32, #tpu.memory_space<vmem>>, vector<1x4xf32>
    %4 = vector.shape_cast %3 : vector<1x4xf32> to vector<1x1x4xf32>
    %c0_3 = arith.constant 0 : index
    %c0_4 = arith.constant 0 : index
    %5 = vector.load %arg9[%c0_3, %c0_4] : memref<1x16xf32, #tpu.memory_space<vmem>>, vector<1x16xf32>
    %6 = vector.shape_cast %5 : vector<1x16xf32> to vector<1x1x16xf32>
    %c0_5 = arith.constant 0 : index
    %c0_6 = arith.constant 0 : index
    %c0_7 = arith.constant 0 : index
    %c0_8 = arith.constant 0 : index
    %7 = vector.load %arg2[%c0_5, %c0_6, %c0_7, %c0_8] : memref<1x8x20x16xbf16, #tpu.memory_space<vmem>>, vector<1x8x20x16xbf16>
    %8 = vector.shape_cast %7 : vector<1x8x20x16xbf16> to vector<8x20x16xbf16>
    %c0_9 = arith.constant 0 : index
    %c0_10 = arith.constant 0 : index
    %9 = vector.load %arg4[%c0_9, %c0_10] : memref<16x4xbf16, #tpu.memory_space<vmem>>, vector<16x4xbf16>
    "tpu.trace_start"() <{level = 10 : i32, message = "hwc,cd->hwd"}> : () -> ()
    %cst = arith.constant dense<0.000000e+00> : vector<8x20x4xf32>
    %10 = tpu.matmul %8, %9, %cst {dimension_numbers = #tpu.dot_dimension_numbers<[2], [0], [0, 1], [1], [0, 0, 0, 1, 1, 1], [], []>} : vector<8x20x16xbf16>, vector<16x4xbf16>, vector<8x20x4xf32> -> vector<8x20x4xf32>
    "tpu.trace_stop"() : () -> ()
    %11 = vector.broadcast %2 : vector<1x1x4xf32> to vector<8x20x4xf32>
    %12 = arith.addf %10, %11 : vector<8x20x4xf32>
    %cst_11 = arith.constant 0.000000e+00 : f32
    %13 = vector.broadcast %cst_11 : f32 to vector<8x20x4xf32>
    %14 = arith.maximumf %12, %13 : vector<8x20x4xf32>
    %15 = tpu.iota {dimensions = array<i32: 0>} : vector<8x20x1xi32>
    %c0_i32 = arith.constant 0 : i32
    %16 = arith.addi %0, %c0_i32 : i32
    %17 = vector.broadcast %16 : i32 to vector<8x20x1xi32>
    %18 = arith.addi %15, %17 : vector<8x20x1xi32>
    %19 = tpu.iota {dimensions = array<i32: 1>} : vector<8x20x1xi32>
    %c2_i32 = arith.constant 2 : i32
    %20 = vector.broadcast %c2_i32 : i32 to vector<8x20x1xi32>
    %21 = arith.cmpi sge, %18, %20 : vector<8x20x1xi32>
    %c18_i32 = arith.constant 18 : i32
    %22 = vector.broadcast %c18_i32 : i32 to vector<8x20x1xi32>
    %23 = arith.cmpi slt, %18, %22 : vector<8x20x1xi32>
    %24 = arith.andi %21, %23 : vector<8x20x1xi1>
    %c2_i32_12 = arith.constant 2 : i32
    %25 = vector.broadcast %c2_i32_12 : i32 to vector<8x20x1xi32>
    %26 = arith.cmpi sge, %19, %25 : vector<8x20x1xi32>
    %27 = arith.andi %24, %26 : vector<8x20x1xi1>
    %c18_i32_13 = arith.constant 18 : i32
    %28 = vector.broadcast %c18_i32_13 : i32 to vector<8x20x1xi32>
    %29 = arith.cmpi slt, %19, %28 : vector<8x20x1xi32>
    %30 = arith.andi %27, %29 : vector<8x20x1xi1>
    %cst_14 = arith.constant 0.000000e+00 : f32
    %31 = vector.shape_cast %30 : vector<8x20x1xi1> to vector<8x20x1xi1>
    %32 = vector.broadcast %31 : vector<8x20x1xi1> to vector<8x20x4xi1>
    %33 = vector.broadcast %cst_14 : f32 to vector<8x20x4xf32>
    %34 = arith.select %32, %14, %33 : vector<8x20x4xi1>, vector<8x20x4xf32>
    %35 = arith.truncf %34 : vector<8x20x4xf32> to vector<8x20x4xbf16>
    %c0_15 = arith.constant 0 : index
    %c0_16 = arith.constant 0 : index
    %c0_17 = arith.constant 0 : index
    %36 = vector.load %arg11[%c0_15, %c0_16, %c0_17] : memref<12x20x4xbf16, #tpu.memory_space<vmem>>, vector<8x20x4xbf16>
    tpu.vector_store %arg11[%c0_15, %c0_16, %c0_17], %35 {strides = array<i32>} : memref<12x20x4xbf16, #tpu.memory_space<vmem>>, vector<8x20x4xbf16>,
    %c0_18 = arith.constant 0 : index
    %c0_19 = arith.constant 0 : index
    %c0_20 = arith.constant 0 : index
    %c0_21 = arith.constant 0 : index
    %37 = vector.load %arg3[%c0_18, %c0_19, %c0_20, %c0_21] : memref<1x4x20x16xbf16, #tpu.memory_space<vmem>>, vector<1x4x20x16xbf16>
    %38 = vector.shape_cast %37 : vector<1x4x20x16xbf16> to vector<4x20x16xbf16>
    %c0_22 = arith.constant 0 : index
    %c0_23 = arith.constant 0 : index
    %39 = vector.load %arg4[%c0_22, %c0_23] : memref<16x4xbf16, #tpu.memory_space<vmem>>, vector<16x4xbf16>
    "tpu.trace_start"() <{level = 10 : i32, message = "hwc,cd->hwd"}> : () -> ()
    %cst_24 = arith.constant dense<0.000000e+00> : vector<4x20x4xf32>
    %40 = tpu.matmul %38, %39, %cst_24 {dimension_numbers = #tpu.dot_dimension_numbers<[2], [0], [0, 1], [1], [0, 0, 0, 1, 1, 1], [], []>} : vector<4x20x16xbf16>, vector<16x4xbf16>, vector<4x20x4xf32> -> vector<4x20x4xf32>
    "tpu.trace_stop"() : () -> ()
    %41 = vector.broadcast %2 : vector<1x1x4xf32> to vector<4x20x4xf32>
    %42 = arith.addf %40, %41 : vector<4x20x4xf32>
    %cst_25 = arith.constant 0.000000e+00 : f32
    %43 = vector.broadcast %cst_25 : f32 to vector<4x20x4xf32>
    %44 = arith.maximumf %42, %43 : vector<4x20x4xf32>
    %45 = tpu.iota {dimensions = array<i32: 0>} : vector<4x20x1xi32>
    %c8_i32_26 = arith.constant 8 : i32
    %46 = arith.addi %0, %c8_i32_26 : i32
    %47 = vector.broadcast %46 : i32 to vector<4x20x1xi32>
    %48 = arith.addi %45, %47 : vector<4x20x1xi32>
    %49 = tpu.iota {dimensions = array<i32: 1>} : vector<4x20x1xi32>
    %c2_i32_27 = arith.constant 2 : i32
    %50 = vector.broadcast %c2_i32_27 : i32 to vector<4x20x1xi32>
    %51 = arith.cmpi sge, %48, %50 : vector<4x20x1xi32>
    %c18_i32_28 = arith.constant 18 : i32
    %52 = vector.broadcast %c18_i32_28 : i32 to vector<4x20x1xi32>
    %53 = arith.cmpi slt, %48, %52 : vector<4x20x1xi32>
    %54 = arith.andi %51, %53 : vector<4x20x1xi1>
    %c2_i32_29 = arith.constant 2 : i32
    %55 = vector.broadcast %c2_i32_29 : i32 to vector<4x20x1xi32>
    %56 = arith.cmpi sge, %49, %55 : vector<4x20x1xi32>
    %57 = arith.andi %54, %56 : vector<4x20x1xi1>
    %c18_i32_30 = arith.constant 18 : i32
    %58 = vector.broadcast %c18_i32_30 : i32 to vector<4x20x1xi32>
    %59 = arith.cmpi slt, %49, %58 : vector<4x20x1xi32>
    %60 = arith.andi %57, %59 : vector<4x20x1xi1>
    %cst_31 = arith.constant 0.000000e+00 : f32
    %61 = vector.shape_cast %60 : vector<4x20x1xi1> to vector<4x20x1xi1>
    %62 = vector.broadcast %61 : vector<4x20x1xi1> to vector<4x20x4xi1>
    %63 = vector.broadcast %cst_31 : f32 to vector<4x20x4xf32>
    %64 = arith.select %62, %44, %63 : vector<4x20x4xi1>, vector<4x20x4xf32>
    %65 = arith.truncf %64 : vector<4x20x4xf32> to vector<4x20x4xbf16>
    %c8 = arith.constant 8 : index
    %c0_32 = arith.constant 0 : index
    %c0_33 = arith.constant 0 : index
    %66 = vector.load %arg11[%c8, %c0_32, %c0_33] : memref<12x20x4xbf16, #tpu.memory_space<vmem>>, vector<4x20x4xbf16>
    tpu.vector_store %arg11[%c8, %c0_32, %c0_33], %65 {strides = array<i32>} : memref<12x20x4xbf16, #tpu.memory_space<vmem>>, vector<4x20x4xbf16>,
    %c0_34 = arith.constant 0 : index
    %c0_35 = arith.constant 0 : index
    %c0_36 = arith.constant 0 : index
    %67 = vector.load %arg11[%c0_34, %c0_35, %c0_36] : memref<12x20x4xbf16, #tpu.memory_space<vmem>>, vector<8x16x4xbf16>
    %c0_37 = arith.constant 0 : index
    %c0_38 = arith.constant 0 : index
    %c0_39 = arith.constant 0 : index
    %c0_40 = arith.constant 0 : index
    %68 = vector.load %arg5[%c0_37, %c0_38, %c0_39, %c0_40] : memref<3x3x4x4xbf16, #tpu.memory_space<vmem>>, vector<1x1x4x4xbf16>
    %69 = vector.shape_cast %68 : vector<1x1x4x4xbf16> to vector<4x4xbf16>
    "tpu.trace_start"() <{level = 10 : i32, message = "hwc,cd->hwd"}> : () -> ()
    %cst_41 = arith.constant dense<0.000000e+00> : vector<8x16x4xf32>
    %70 = tpu.matmul %67, %69, %cst_41 {dimension_numbers = #tpu.dot_dimension_numbers<[2], [0], [0, 1], [1], [0, 0, 0, 1, 1, 1], [], []>} : vector<8x16x4xbf16>, vector<4x4xbf16>, vector<8x16x4xf32> -> vector<8x16x4xf32>
    "tpu.trace_stop"() : () -> ()
    %c0_42 = arith.constant 0 : index
    %c0_43 = arith.constant 0 : index
    %c0_44 = arith.constant 0 : index
    %71 = vector.load %arg12[%c0_42, %c0_43, %c0_44] : memref<8x16x4xf32, #tpu.memory_space<vmem>>, vector<8x16x4xf32>
    tpu.vector_store %arg12[%c0_42, %c0_43, %c0_44], %70 {strides = array<i32>} : memref<8x16x4xf32, #tpu.memory_space<vmem>>, vector<8x16x4xf32>,
    %c0_45 = arith.constant 0 : index
    %c2 = arith.constant 2 : index
    %c0_46 = arith.constant 0 : index
    %72 = vector.load %arg11[%c0_45, %c2, %c0_46] : memref<12x20x4xbf16, #tpu.memory_space<vmem>>, vector<8x16x4xbf16>
    %c0_47 = arith.constant 0 : index
    %c1 = arith.constant 1 : index
    %c0_48 = arith.constant 0 : index
    %c0_49 = arith.constant 0 : index
    %73 = vector.load %arg5[%c0_47, %c1, %c0_48, %c0_49] : memref<3x3x4x4xbf16, #tpu.memory_space<vmem>>, vector<1x1x4x4xbf16>
    %74 = vector.shape_cast %73 : vector<1x1x4x4xbf16> to vector<4x4xbf16>
    "tpu.trace_start"() <{level = 10 : i32, message = "hwc,cd->hwd"}> : () -> ()
    %cst_50 = arith.constant dense<0.000000e+00> : vector<8x16x4xf32>
    %75 = tpu.matmul %72, %74, %cst_50 {dimension_numbers = #tpu.dot_dimension_numbers<[2], [0], [0, 1], [1], [0, 0, 0, 1, 1, 1], [], []>} : vector<8x16x4xbf16>, vector<4x4xbf16>, vector<8x16x4xf32> -> vector<8x16x4xf32>
    "tpu.trace_stop"() : () -> ()
    %c0_51 = arith.constant 0 : index
    %c0_52 = arith.constant 0 : index
    %c0_53 = arith.constant 0 : index
    %76 = vector.load %arg12[%c0_51, %c0_52, %c0_53] : memref<8x16x4xf32, #tpu.memory_space<vmem>>, vector<8x16x4xf32>
    %77 = arith.addf %76, %75 : vector<8x16x4xf32>
    %c0_54 = arith.constant 0 : index
    %c0_55 = arith.constant 0 : index
    %c0_56 = arith.constant 0 : index
    %78 = vector.load %arg12[%c0_54, %c0_55, %c0_56] : memref<8x16x4xf32, #tpu.memory_space<vmem>>, vector<8x16x4xf32>
    tpu.vector_store %arg12[%c0_54, %c0_55, %c0_56], %77 {strides = array<i32>} : memref<8x16x4xf32, #tpu.memory_space<vmem>>, vector<8x16x4xf32>,
    %c0_57 = arith.constant 0 : index
    %c4 = arith.constant 4 : index
    %c0_58 = arith.constant 0 : index
    %79 = vector.load %arg11[%c0_57, %c4, %c0_58] : memref<12x20x4xbf16, #tpu.memory_space<vmem>>, vector<8x16x4xbf16>
    %c0_59 = arith.constant 0 : index
    %c2_60 = arith.constant 2 : index
    %c0_61 = arith.constant 0 : index
    %c0_62 = arith.constant 0 : index
    %80 = vector.load %arg5[%c0_59, %c2_60, %c0_61, %c0_62] : memref<3x3x4x4xbf16, #tpu.memory_space<vmem>>, vector<1x1x4x4xbf16>
    %81 = vector.shape_cast %80 : vector<1x1x4x4xbf16> to vector<4x4xbf16>
    "tpu.trace_start"() <{level = 10 : i32, message = "hwc,cd->hwd"}> : () -> ()
    %cst_63 = arith.constant dense<0.000000e+00> : vector<8x16x4xf32>
    %82 = tpu.matmul %79, %81, %cst_63 {dimension_numbers = #tpu.dot_dimension_numbers<[2], [0], [0, 1], [1], [0, 0, 0, 1, 1, 1], [], []>} : vector<8x16x4xbf16>, vector<4x4xbf16>, vector<8x16x4xf32> -> vector<8x16x4xf32>
    "tpu.trace_stop"() : () -> ()
    %c0_64 = arith.constant 0 : index
    %c0_65 = arith.constant 0 : index
    %c0_66 = arith.constant 0 : index
    %83 = vector.load %arg12[%c0_64, %c0_65, %c0_66] : memref<8x16x4xf32, #tpu.memory_space<vmem>>, vector<8x16x4xf32>
    %84 = arith.addf %83, %82 : vector<8x16x4xf32>
    %c0_67 = arith.constant 0 : index
    %c0_68 = arith.constant 0 : index
    %c0_69 = arith.constant 0 : index
    %85 = vector.load %arg12[%c0_67, %c0_68, %c0_69] : memref<8x16x4xf32, #tpu.memory_space<vmem>>, vector<8x16x4xf32>
    tpu.vector_store %arg12[%c0_67, %c0_68, %c0_69], %84 {strides = array<i32>} : memref<8x16x4xf32, #tpu.memory_space<vmem>>, vector<8x16x4xf32>,
    %c2_70 = arith.constant 2 : index
    %c0_71 = arith.constant 0 : index
    %c0_72 = arith.constant 0 : index
    %86 = vector.load %arg11[%c2_70, %c0_71, %c0_72] : memref<12x20x4xbf16, #tpu.memory_space<vmem>>, vector<8x16x4xbf16>
    %c1_73 = arith.constant 1 : index
    %c0_74 = arith.constant 0 : index
    %c0_75 = arith.constant 0 : index
    %c0_76 = arith.constant 0 : index
    %87 = vector.load %arg5[%c1_73, %c0_74, %c0_75, %c0_76] : memref<3x3x4x4xbf16, #tpu.memory_space<vmem>>, vector<1x1x4x4xbf16>
    %88 = vector.shape_cast %87 : vector<1x1x4x4xbf16> to vector<4x4xbf16>
    "tpu.trace_start"() <{level = 10 : i32, message = "hwc,cd->hwd"}> : () -> ()
    %cst_77 = arith.constant dense<0.000000e+00> : vector<8x16x4xf32>
    %89 = tpu.matmul %86, %88, %cst_77 {dimension_numbers = #tpu.dot_dimension_numbers<[2], [0], [0, 1], [1], [0, 0, 0, 1, 1, 1], [], []>} : vector<8x16x4xbf16>, vector<4x4xbf16>, vector<8x16x4xf32> -> vector<8x16x4xf32>
    "tpu.trace_stop"() : () -> ()
    %c0_78 = arith.constant 0 : index
    %c0_79 = arith.constant 0 : index
    %c0_80 = arith.constant 0 : index
    %90 = vector.load %arg12[%c0_78, %c0_79, %c0_80] : memref<8x16x4xf32, #tpu.memory_space<vmem>>, vector<8x16x4xf32>
    %91 = arith.addf %90, %89 : vector<8x16x4xf32>
    %c0_81 = arith.constant 0 : index
    %c0_82 = arith.constant 0 : index
    %c0_83 = arith.constant 0 : index
    %92 = vector.load %arg12[%c0_81, %c0_82, %c0_83] : memref<8x16x4xf32, #tpu.memory_space<vmem>>, vector<8x16x4xf32>
    tpu.vector_store %arg12[%c0_81, %c0_82, %c0_83], %91 {strides = array<i32>} : memref<8x16x4xf32, #tpu.memory_space<vmem>>, vector<8x16x4xf32>,
    %c2_84 = arith.constant 2 : index
    %c2_85 = arith.constant 2 : index
    %c0_86 = arith.constant 0 : index
    %93 = vector.load %arg11[%c2_84, %c2_85, %c0_86] : memref<12x20x4xbf16, #tpu.memory_space<vmem>>, vector<8x16x4xbf16>
    %c1_87 = arith.constant 1 : index
    %c1_88 = arith.constant 1 : index
    %c0_89 = arith.constant 0 : index
    %c0_90 = arith.constant 0 : index
    %94 = vector.load %arg5[%c1_87, %c1_88, %c0_89, %c0_90] : memref<3x3x4x4xbf16, #tpu.memory_space<vmem>>, vector<1x1x4x4xbf16>
    %95 = vector.shape_cast %94 : vector<1x1x4x4xbf16> to vector<4x4xbf16>
    "tpu.trace_start"() <{level = 10 : i32, message = "hwc,cd->hwd"}> : () -> ()
    %cst_91 = arith.constant dense<0.000000e+00> : vector<8x16x4xf32>
    %96 = tpu.matmul %93, %95, %cst_91 {dimension_numbers = #tpu.dot_dimension_numbers<[2], [0], [0, 1], [1], [0, 0, 0, 1, 1, 1], [], []>} : vector<8x16x4xbf16>, vector<4x4xbf16>, vector<8x16x4xf32> -> vector<8x16x4xf32>
    "tpu.trace_stop"() : () -> ()
    %c0_92 = arith.constant 0 : index
    %c0_93 = arith.constant 0 : index
    %c0_94 = arith.constant 0 : index
    %97 = vector.load %arg12[%c0_92, %c0_93, %c0_94] : memref<8x16x4xf32, #tpu.memory_space<vmem>>, vector<8x16x4xf32>
    %98 = arith.addf %97, %96 : vector<8x16x4xf32>
    %c0_95 = arith.constant 0 : index
    %c0_96 = arith.constant 0 : index
    %c0_97 = arith.constant 0 : index
    %99 = vector.load %arg12[%c0_95, %c0_96, %c0_97] : memref<8x16x4xf32, #tpu.memory_space<vmem>>, vector<8x16x4xf32>
    tpu.vector_store %arg12[%c0_95, %c0_96, %c0_97], %98 {strides = array<i32>} : memref<8x16x4xf32, #tpu.memory_space<vmem>>, vector<8x16x4xf32>,
    %c2_98 = arith.constant 2 : index
    %c4_99 = arith.constant 4 : index
    %c0_100 = arith.constant 0 : index
    %100 = vector.load %arg11[%c2_98, %c4_99, %c0_100] : memref<12x20x4xbf16, #tpu.memory_space<vmem>>, vector<8x16x4xbf16>
    %c1_101 = arith.constant 1 : index
    %c2_102 = arith.constant 2 : index
    %c0_103 = arith.constant 0 : index
    %c0_104 = arith.constant 0 : index
    %101 = vector.load %arg5[%c1_101, %c2_102, %c0_103, %c0_104] : memref<3x3x4x4xbf16, #tpu.memory_space<vmem>>, vector<1x1x4x4xbf16>
    %102 = vector.shape_cast %101 : vector<1x1x4x4xbf16> to vector<4x4xbf16>
    "tpu.trace_start"() <{level = 10 : i32, message = "hwc,cd->hwd"}> : () -> ()
    %cst_105 = arith.constant dense<0.000000e+00> : vector<8x16x4xf32>
    %103 = tpu.matmul %100, %102, %cst_105 {dimension_numbers = #tpu.dot_dimension_numbers<[2], [0], [0, 1], [1], [0, 0, 0, 1, 1, 1], [], []>} : vector<8x16x4xbf16>, vector<4x4xbf16>, vector<8x16x4xf32> -> vector<8x16x4xf32>
    "tpu.trace_stop"() : () -> ()
    %c0_106 = arith.constant 0 : index
    %c0_107 = arith.constant 0 : index
    %c0_108 = arith.constant 0 : index
    %104 = vector.load %arg12[%c0_106, %c0_107, %c0_108] : memref<8x16x4xf32, #tpu.memory_space<vmem>>, vector<8x16x4xf32>
    %105 = arith.addf %104, %103 : vector<8x16x4xf32>
    %c0_109 = arith.constant 0 : index
    %c0_110 = arith.constant 0 : index
    %c0_111 = arith.constant 0 : index
    %106 = vector.load %arg12[%c0_109, %c0_110, %c0_111] : memref<8x16x4xf32, #tpu.memory_space<vmem>>, vector<8x16x4xf32>
    tpu.vector_store %arg12[%c0_109, %c0_110, %c0_111], %105 {strides = array<i32>} : memref<8x16x4xf32, #tpu.memory_space<vmem>>, vector<8x16x4xf32>,
    %c4_112 = arith.constant 4 : index
    %c0_113 = arith.constant 0 : index
    %c0_114 = arith.constant 0 : index
    %107 = vector.load %arg11[%c4_112, %c0_113, %c0_114] : memref<12x20x4xbf16, #tpu.memory_space<vmem>>, vector<8x16x4xbf16>
    %c2_115 = arith.constant 2 : index
    %c0_116 = arith.constant 0 : index
    %c0_117 = arith.constant 0 : index
    %c0_118 = arith.constant 0 : index
    %108 = vector.load %arg5[%c2_115, %c0_116, %c0_117, %c0_118] : memref<3x3x4x4xbf16, #tpu.memory_space<vmem>>, vector<1x1x4x4xbf16>
    %109 = vector.shape_cast %108 : vector<1x1x4x4xbf16> to vector<4x4xbf16>
    "tpu.trace_start"() <{level = 10 : i32, message = "hwc,cd->hwd"}> : () -> ()
    %cst_119 = arith.constant dense<0.000000e+00> : vector<8x16x4xf32>
    %110 = tpu.matmul %107, %109, %cst_119 {dimension_numbers = #tpu.dot_dimension_numbers<[2], [0], [0, 1], [1], [0, 0, 0, 1, 1, 1], [], []>} : vector<8x16x4xbf16>, vector<4x4xbf16>, vector<8x16x4xf32> -> vector<8x16x4xf32>
    "tpu.trace_stop"() : () -> ()
    %c0_120 = arith.constant 0 : index
    %c0_121 = arith.constant 0 : index
    %c0_122 = arith.constant 0 : index
    %111 = vector.load %arg12[%c0_120, %c0_121, %c0_122] : memref<8x16x4xf32, #tpu.memory_space<vmem>>, vector<8x16x4xf32>
    %112 = arith.addf %111, %110 : vector<8x16x4xf32>
    %c0_123 = arith.constant 0 : index
    %c0_124 = arith.constant 0 : index
    %c0_125 = arith.constant 0 : index
    %113 = vector.load %arg12[%c0_123, %c0_124, %c0_125] : memref<8x16x4xf32, #tpu.memory_space<vmem>>, vector<8x16x4xf32>
    tpu.vector_store %arg12[%c0_123, %c0_124, %c0_125], %112 {strides = array<i32>} : memref<8x16x4xf32, #tpu.memory_space<vmem>>, vector<8x16x4xf32>,
    %c4_126 = arith.constant 4 : index
    %c2_127 = arith.constant 2 : index
    %c0_128 = arith.constant 0 : index
    %114 = vector.load %arg11[%c4_126, %c2_127, %c0_128] : memref<12x20x4xbf16, #tpu.memory_space<vmem>>, vector<8x16x4xbf16>
    %c2_129 = arith.constant 2 : index
    %c1_130 = arith.constant 1 : index
    %c0_131 = arith.constant 0 : index
    %c0_132 = arith.constant 0 : index
    %115 = vector.load %arg5[%c2_129, %c1_130, %c0_131, %c0_132] : memref<3x3x4x4xbf16, #tpu.memory_space<vmem>>, vector<1x1x4x4xbf16>
    %116 = vector.shape_cast %115 : vector<1x1x4x4xbf16> to vector<4x4xbf16>
    "tpu.trace_start"() <{level = 10 : i32, message = "hwc,cd->hwd"}> : () -> ()
    %cst_133 = arith.constant dense<0.000000e+00> : vector<8x16x4xf32>
    %117 = tpu.matmul %114, %116, %cst_133 {dimension_numbers = #tpu.dot_dimension_numbers<[2], [0], [0, 1], [1], [0, 0, 0, 1, 1, 1], [], []>} : vector<8x16x4xbf16>, vector<4x4xbf16>, vector<8x16x4xf32> -> vector<8x16x4xf32>
    "tpu.trace_stop"() : () -> ()
    %c0_134 = arith.constant 0 : index
    %c0_135 = arith.constant 0 : index
    %c0_136 = arith.constant 0 : index
    %118 = vector.load %arg12[%c0_134, %c0_135, %c0_136] : memref<8x16x4xf32, #tpu.memory_space<vmem>>, vector<8x16x4xf32>
    %119 = arith.addf %118, %117 : vector<8x16x4xf32>
    %c0_137 = arith.constant 0 : index
    %c0_138 = arith.constant 0 : index
    %c0_139 = arith.constant 0 : index
    %120 = vector.load %arg12[%c0_137, %c0_138, %c0_139] : memref<8x16x4xf32, #tpu.memory_space<vmem>>, vector<8x16x4xf32>
    tpu.vector_store %arg12[%c0_137, %c0_138, %c0_139], %119 {strides = array<i32>} : memref<8x16x4xf32, #tpu.memory_space<vmem>>, vector<8x16x4xf32>,
    %c4_140 = arith.constant 4 : index
    %c4_141 = arith.constant 4 : index
    %c0_142 = arith.constant 0 : index
    %121 = vector.load %arg11[%c4_140, %c4_141, %c0_142] : memref<12x20x4xbf16, #tpu.memory_space<vmem>>, vector<8x16x4xbf16>
    %c2_143 = arith.constant 2 : index
    %c2_144 = arith.constant 2 : index
    %c0_145 = arith.constant 0 : index
    %c0_146 = arith.constant 0 : index
    %122 = vector.load %arg5[%c2_143, %c2_144, %c0_145, %c0_146] : memref<3x3x4x4xbf16, #tpu.memory_space<vmem>>, vector<1x1x4x4xbf16>
    %123 = vector.shape_cast %122 : vector<1x1x4x4xbf16> to vector<4x4xbf16>
    "tpu.trace_start"() <{level = 10 : i32, message = "hwc,cd->hwd"}> : () -> ()
    %cst_147 = arith.constant dense<0.000000e+00> : vector<8x16x4xf32>
    %124 = tpu.matmul %121, %123, %cst_147 {dimension_numbers = #tpu.dot_dimension_numbers<[2], [0], [0, 1], [1], [0, 0, 0, 1, 1, 1], [], []>} : vector<8x16x4xbf16>, vector<4x4xbf16>, vector<8x16x4xf32> -> vector<8x16x4xf32>
    "tpu.trace_stop"() : () -> ()
    %c0_148 = arith.constant 0 : index
    %c0_149 = arith.constant 0 : index
    %c0_150 = arith.constant 0 : index
    %125 = vector.load %arg12[%c0_148, %c0_149, %c0_150] : memref<8x16x4xf32, #tpu.memory_space<vmem>>, vector<8x16x4xf32>
    %126 = arith.addf %125, %124 : vector<8x16x4xf32>
    %c0_151 = arith.constant 0 : index
    %c0_152 = arith.constant 0 : index
    %c0_153 = arith.constant 0 : index
    %127 = vector.load %arg12[%c0_151, %c0_152, %c0_153] : memref<8x16x4xf32, #tpu.memory_space<vmem>>, vector<8x16x4xf32>
    tpu.vector_store %arg12[%c0_151, %c0_152, %c0_153], %126 {strides = array<i32>} : memref<8x16x4xf32, #tpu.memory_space<vmem>>, vector<8x16x4xf32>,
    %c0_154 = arith.constant 0 : index
    %c0_155 = arith.constant 0 : index
    %c0_156 = arith.constant 0 : index
    %128 = vector.load %arg12[%c0_154, %c0_155, %c0_156] : memref<8x16x4xf32, #tpu.memory_space<vmem>>, vector<8x16x4xf32>
    %129 = vector.broadcast %4 : vector<1x1x4xf32> to vector<8x16x4xf32>
    %130 = arith.addf %128, %129 : vector<8x16x4xf32>
    %cst_157 = arith.constant 0.000000e+00 : f32
    %131 = vector.broadcast %cst_157 : f32 to vector<8x16x4xf32>
    %132 = arith.maximumf %130, %131 : vector<8x16x4xf32>
    %133 = arith.truncf %132 : vector<8x16x4xf32> to vector<8x16x4xbf16>
    %c0_158 = arith.constant 0 : index
    %c0_159 = arith.constant 0 : index
    %134 = vector.load %arg6[%c0_158, %c0_159] : memref<4x16xbf16, #tpu.memory_space<vmem>>, vector<4x16xbf16>
    "tpu.trace_start"() <{level = 10 : i32, message = "hwc,cd->hwd"}> : () -> ()
    %cst_160 = arith.constant dense<0.000000e+00> : vector<8x16x16xf32>
    %135 = tpu.matmul %133, %134, %cst_160 {dimension_numbers = #tpu.dot_dimension_numbers<[2], [0], [0, 1], [1], [0, 0, 0, 1, 1, 1], [], []>} : vector<8x16x4xbf16>, vector<4x16xbf16>, vector<8x16x16xf32> -> vector<8x16x16xf32>
    "tpu.trace_stop"() : () -> ()
    %c0_161 = arith.constant 0 : index
    %c2_162 = arith.constant 2 : index
    %c2_163 = arith.constant 2 : index
    %c0_164 = arith.constant 0 : index
    %136 = vector.load %arg2[%c0_161, %c2_162, %c2_163, %c0_164] : memref<1x8x20x16xbf16, #tpu.memory_space<vmem>>, vector<1x6x16x16xbf16>
    %137 = vector.shape_cast %136 : vector<1x6x16x16xbf16> to vector<6x16x16xbf16>
    %138 = arith.extf %137 : vector<6x16x16xbf16> to vector<6x16x16xf32>
    %139 = vector.extract_strided_slice %135 {offsets = [0, 0, 0], sizes = [6, 16, 16], strides = [1, 1, 1]} : vector<8x16x16xf32> to vector<6x16x16xf32>
    %140 = vector.broadcast %6 : vector<1x1x16xf32> to vector<6x16x16xf32>
    %141 = arith.addf %139, %140 : vector<6x16x16xf32>
    %142 = arith.addf %141, %138 : vector<6x16x16xf32>
    %cst_165 = arith.constant 0.000000e+00 : f32
    %143 = vector.broadcast %cst_165 : f32 to vector<6x16x16xf32>
    %144 = arith.maximumf %142, %143 : vector<6x16x16xf32>
    %145 = arith.truncf %144 : vector<6x16x16xf32> to vector<6x16x16xbf16>
    %c0_166 = arith.constant 0 : index
    %c0_167 = arith.constant 0 : index
    %c0_168 = arith.constant 0 : index
    %c0_169 = arith.constant 0 : index
    %146 = vector.load %arg10[%c0_166, %c0_167, %c0_168, %c0_169] : memref<1x8x16x16xbf16, #tpu.memory_space<vmem>>, vector<1x6x16x16xbf16>
    %147 = vector.shape_cast %146 : vector<1x6x16x16xbf16> to vector<6x16x16xbf16>
    %148 = vector.shape_cast %145 : vector<6x16x16xbf16> to vector<1x6x16x16xbf16>
    tpu.vector_store %arg10[%c0_166, %c0_167, %c0_168, %c0_169], %148 {strides = array<i32>} : memref<1x8x16x16xbf16, #tpu.memory_space<vmem>>, vector<1x6x16x16xbf16>,
    %c0_170 = arith.constant 0 : index
    %c0_171 = arith.constant 0 : index
    %c2_172 = arith.constant 2 : index
    %c0_173 = arith.constant 0 : index
    %149 = vector.load %arg3[%c0_170, %c0_171, %c2_172, %c0_173] : memref<1x4x20x16xbf16, #tpu.memory_space<vmem>>, vector<1x2x16x16xbf16>
    %150 = vector.shape_cast %149 : vector<1x2x16x16xbf16> to vector<2x16x16xbf16>
    %151 = arith.extf %150 : vector<2x16x16xbf16> to vector<2x16x16xf32>
    %152 = vector.extract_strided_slice %135 {offsets = [6, 0, 0], sizes = [2, 16, 16], strides = [1, 1, 1]} : vector<8x16x16xf32> to vector<2x16x16xf32>
    %153 = vector.broadcast %6 : vector<1x1x16xf32> to vector<2x16x16xf32>
    %154 = arith.addf %152, %153 : vector<2x16x16xf32>
    %155 = arith.addf %154, %151 : vector<2x16x16xf32>
    %cst_174 = arith.constant 0.000000e+00 : f32
    %156 = vector.broadcast %cst_174 : f32 to vector<2x16x16xf32>
    %157 = arith.maximumf %155, %156 : vector<2x16x16xf32>
    %158 = arith.truncf %157 : vector<2x16x16xf32> to vector<2x16x16xbf16>
    %c0_175 = arith.constant 0 : index
    %c6 = arith.constant 6 : index
    %c0_176 = arith.constant 0 : index
    %c0_177 = arith.constant 0 : index
    %159 = vector.load %arg10[%c0_175, %c6, %c0_176, %c0_177] : memref<1x8x16x16xbf16, #tpu.memory_space<vmem>>, vector<1x2x16x16xbf16>
    %160 = vector.shape_cast %159 : vector<1x2x16x16xbf16> to vector<2x16x16xbf16>
    %161 = vector.shape_cast %158 : vector<2x16x16xbf16> to vector<1x2x16x16xbf16>
    tpu.vector_store %arg10[%c0_175, %c6, %c0_176, %c0_177], %161 {strides = array<i32>} : memref<1x8x16x16xbf16, #tpu.memory_space<vmem>>, vector<1x2x16x16xbf16>,
    return
  }
  func.func @transform_0(%arg0: i32, %arg1: i32) -> (i32, i32, i32, i32) {
    %c0_i32 = arith.constant 0 : i32
    %c0_i32_0 = arith.constant 0 : i32
    %c0_i32_1 = arith.constant 0 : i32
    return %arg0, %arg1, %c0_i32, %c0_i32_0 : i32, i32, i32, i32
  }
  func.func @transform_1(%arg0: i32, %arg1: i32) -> (i32, i32, i32, i32) {
    %c1_i32 = arith.constant 1 : i32
    %0 = arith.addi %arg1, %c1_i32 : i32
    %c2_i32 = arith.constant 2 : i32
    %1 = arith.muli %0, %c2_i32 : i32
    %c0_i32 = arith.constant 0 : i32
    %c0_i32_0 = arith.constant 0 : i32
    %c0_i32_1 = arith.constant 0 : i32
    return %arg0, %1, %c0_i32, %c0_i32_0 : i32, i32, i32, i32
  }
  func.func @transform_2(%arg0: i32, %arg1: i32) -> (i32, i32) {
    %c0_i32 = arith.constant 0 : i32
    %c0_i32_0 = arith.constant 0 : i32
    %c0_i32_1 = arith.constant 0 : i32
    return %c0_i32, %c0_i32_0 : i32, i32
  }
  func.func @transform_3(%arg0: i32, %arg1: i32) -> (i32, i32, i32, i32) {
    %c0_i32 = arith.constant 0 : i32
    %c0_i32_0 = arith.constant 0 : i32
    %c0_i32_1 = arith.constant 0 : i32
    %c0_i32_2 = arith.constant 0 : i32
    %c0_i32_3 = arith.constant 0 : i32
    return %c0_i32, %c0_i32_0, %c0_i32_1, %c0_i32_2 : i32, i32, i32, i32
  }
  func.func @transform_4(%arg0: i32, %arg1: i32) -> (i32, i32) {
    %c0_i32 = arith.constant 0 : i32
    %c0_i32_0 = arith.constant 0 : i32
    %c0_i32_1 = arith.constant 0 : i32
    return %c0_i32, %c0_i32_0 : i32, i32
  }
  func.func @transform_5(%arg0: i32, %arg1: i32) -> (i32, i32) {
    %c0_i32 = arith.constant 0 : i32
    %c0_i32_0 = arith.constant 0 : i32
    %c0_i32_1 = arith.constant 0 : i32
    return %c0_i32, %c0_i32_0 : i32, i32
  }
  func.func @transform_6(%arg0: i32, %arg1: i32) -> (i32, i32) {
    %c0_i32 = arith.constant 0 : i32
    %c0_i32_0 = arith.constant 0 : i32
    %c0_i32_1 = arith.constant 0 : i32
    return %c0_i32, %c0_i32_0 : i32, i32
  }
  func.func @transform_7(%arg0: i32, %arg1: i32) -> (i32, i32) {
    %c0_i32 = arith.constant 0 : i32
    %c0_i32_0 = arith.constant 0 : i32
    %c0_i32_1 = arith.constant 0 : i32
    return %c0_i32, %c0_i32_0 : i32, i32
  }
  func.func @transform_8(%arg0: i32, %arg1: i32) -> (i32, i32, i32, i32) {
    %c0_i32 = arith.constant 0 : i32
    %c0_i32_0 = arith.constant 0 : i32
    %c0_i32_1 = arith.constant 0 : i32
    return %arg0, %arg1, %c0_i32, %c0_i32_0 : i32, i32, i32, i32
  }
}

</mosaic_0001>

<llo_original>
// kernel: tpu_custom_call.1
$region0: #{tpu_custom_call.1}
  #allocation0 [shape = 'u32[]', space=smem, size = 0x4, offset = 0x4, fixed_abs, tag = 'smem constant byte address 0x4 - core index']
  #allocation1 [shape = 'u32[144,128]{1,0:T(1,128)}', space=vmem, size = 0x12000, scoped, tag = 'internal scratch']
  #allocation2 [shape = 'bf16[12,20,4]{2,1,0:T(8,128)(2,1)}', space=vmem, size = 0x12000, scoped, tag = 'scratch operand']
  #allocation3 [shape = 'f32[8,16,4]{2,1,0:T(8,128)}', space=vmem, size = 0x10000, scoped, tag = 'scratch operand']
  %s0 = inlined_call_operand.vmem [shape: bf16[2,20,20,16], index: 0, kind: input, shape index: {}]
  %s1 = inlined_call_operand.vmem [shape: bf16[2,20,20,16], index: 1, kind: input, shape index: {}]
  %s2 = inlined_call_operand.vmem [shape: bf16[16,4], index: 2, kind: input, shape index: {}]
  %s3 = inlined_call_operand.vmem [shape: bf16[3,3,4,4], index: 3, kind: input, shape index: {}]
  %s4 = inlined_call_operand.vmem [shape: bf16[4,16], index: 4, kind: input, shape index: {}]
  %s5 = inlined_call_operand.vmem [shape: f32[1,4], index: 5, kind: input, shape index: {}]
  %s6 = inlined_call_operand.vmem [shape: f32[1,4], index: 6, kind: input, shape index: {}]
  %s7 = inlined_call_operand.vmem [shape: f32[1,16], index: 7, kind: input, shape index: {}]
  %s8 = inlined_call_operand.hbm [shape: bf16[2,16,16,16], index: 8, kind: output, shape index: {}]
  %s9 = sld [smem:[#allocation0]]
  $region65: #{tpu_custom_call.1} parent=0
    _
  %s11 = ssub.s32 1, %s9
  %s12 = scalar_select 0, %s11, %s9
  $region1: #{tpu_custom_call.1} parent=0
    #allocation4 [shape = 'u8[65536]{0}', space=vmem, size = 0x10000, scoped, tag = 'output window, operand 0']
    #allocation5 [shape = 's32[2]{0}', space=sflag, size = 0x8, scoped, tag = 'scoped memory for tpu_custom_call.1']
    %13 = vsyncpa [#allocation5], 0
    %s14 = scalar_lea.sflag [#allocation5], 1
    %15 = vsyncpa %s14, 0
    loop: start=0, step=1, limit=6
    $region2: #{tpu_custom_call.1} parent=1 // loop_pre_header
      _
    $region3: #{tpu_custom_call.1} parent=1 // loop_header
      %s17 = sphi 0, %s21
      %p18 = scmp.ge.s32.totalorder %s17, 6
      %s24 = sphi 0, %s36
      %s25 = sphi 0, %s32
      %s26 = sphi 0, %s24
      %s27 = sphi 0, %s25
      %s28 = sphi 0, %s26
      %s29 = sphi 0, %s27
      %s41 = sphi 0, %s43
      %s44 = sphi 0, %s41
      %s45 = sphi 0, %s44
      %s61 = sphi 0, %s45
      %s73 = sphi 0, %s75
      %s76 = sphi 0, %s73
      %s77 = sphi 0, %s76
      %s93 = sphi 0, %s77
      %s97 = sphi 0, %s97
      %s99 = sphi 0, %s97
      %s100 = sphi 0, %s99
      %s114 = sphi 0, %s100
      %s118 = sphi 0, %s118
      %s120 = sphi 0, %s118
      %s121 = sphi 0, %s120
      %s135 = sphi 0, %s121
      %s139 = sphi 0, %s139
      %s141 = sphi 0, %s139
      %s142 = sphi 0, %s141
      %s156 = sphi 0, %s142
      %s160 = sphi 0, %s160
      %s162 = sphi 0, %s160
      %s163 = sphi 0, %s162
      %s177 = sphi 0, %s163
      %s181 = sphi 0, %s181
      %s183 = sphi 0, %s181
      %s184 = sphi 0, %s183
      %s198 = sphi 0, %s184
      %s202 = sphi 0, %s202
      %s204 = sphi 0, %s202
      %s205 = sphi 0, %s204
      %s219 = sphi 0, %s205
      %s227 = sphi 0, %s229
      %s230 = sphi 0, %s227
      %s231 = sphi 0, %s230
      %s247 = sphi 0, %s231
    $region4: #{tpu_custom_call.1} parent=1 // loop_header_branch
      %20 = sbr.rel (%p18) target = $region8
    $region5: #{tpu_custom_call.1} parent=1 // loop_body
      %s22 = ssub.s32 %s17, 1
      %s23 = ssub.s32 %s17, 2
      %s30 = sadd.s32 1, %s25
      %p31 = scmp.ge.s32.totalorder %s30, 2
      %s32 = scalar_select %p31, 0, %s30
      %s33 = sadd.s32 1, %s24
      %s34 = scalar_select %p31, %s33, %s24
      %p35 = scmp.ge.s32.totalorder %s34, 2
      %s36 = scalar_select %p35, 0, %s34
      %s37 = ssub.s32 %s24, %s36
      %s38 = ssub.s32 %s25, %s32
      %s39 = sor.u32 %s37, %s38
      %p40 = scmp.eq.s32.totalorder %s39, 0
      %s42 = sadd.s32 %s41, 1
      %s43 = scalar_select %p40, %s41, %s42
      %p46 = pneg %p40
      %p47 = scmp.eq.s32.totalorder %s17, 3
      %p48 = por %p46, %p47
      %p49 = scmp.ne.s32.totalorder %s41, %s44
      %p50 = scmp.eq.s32.totalorder %s17, 0
      %p51 = por %p49, %p50
      %p52 = scmp.ne.s32.totalorder %s41, %s44
      %p53 = scmp.eq.s32.totalorder %s22, 3
      %p54 = por %p52, %p53
      %p55 = scmp.ne.s32.totalorder %s44, %s45
      %p56 = scmp.eq.s32.totalorder %s22, 0
      %p57 = por %p55, %p56
      %p58 = scmp.ne.s32.totalorder %s44, %s45
      %p59 = scmp.eq.s32.totalorder %s23, 3
      %p60 = por %p58, %p59
      %p62 = scmp.ne.s32.totalorder %s45, %s61
      %p63 = scmp.eq.s32.totalorder %s23, 0
      %p64 = por %p62, %p63
      %s65 = sadd.s32 %s25, 1
      %s66 = smul.u32 %s65, 2
      %s67 = sadd.s32 %s32, 1
      %s68 = smul.u32 %s67, 2
      %s69 = ssub.s32 %s24, %s36
      %s70 = ssub.s32 %s66, %s68
      %s71 = sor.u32 %s69, %s70
      %p72 = scmp.eq.s32.totalorder %s71, 0
      %s74 = sadd.s32 %s73, 1
      %s75 = scalar_select %p72, %s73, %s74
      %p78 = pneg %p72
      %p79 = scmp.eq.s32.totalorder %s17, 3
      %p80 = por %p78, %p79
      %p81 = scmp.ne.s32.totalorder %s73, %s76
      %p82 = scmp.eq.s32.totalorder %s17, 0
      %p83 = por %p81, %p82
      %p84 = scmp.ne.s32.totalorder %s73, %s76
      %p85 = scmp.eq.s32.totalorder %s22, 3
      %p86 = por %p84, %p85
      %p87 = scmp.ne.s32.totalorder %s76, %s77
      %p88 = scmp.eq.s32.totalorder %s22, 0
      %p89 = por %p87, %p88
      %p90 = scmp.ne.s32.totalorder %s76, %s77
      %p91 = scmp.eq.s32.totalorder %s23, 3
      %p92 = por %p90, %p91
      %p94 = scmp.ne.s32.totalorder %s77, %s93
      %p95 = scmp.eq.s32.totalorder %s23, 0
      %p96 = por %p94, %p95
      %s98 = sadd.s32 %s97, 1
      %p101 = scmp.eq.s32.totalorder %s17, 3
      %p102 = scmp.ne.s32.totalorder %s97, %s99
      %p103 = scmp.eq.s32.totalorder %s17, 0
      %p104 = por %p102, %p103
      %p105 = scmp.ne.s32.totalorder %s97, %s99
      %p106 = scmp.eq.s32.totalorder %s22, 3
      %p107 = por %p105, %p106
      %p108 = scmp.ne.s32.totalorder %s99, %s100
      %p109 = scmp.eq.s32.totalorder %s22, 0
      %p110 = por %p108, %p109
      %p111 = scmp.ne.s32.totalorder %s99, %s100
      %p112 = scmp.eq.s32.totalorder %s23, 3
      %p113 = por %p111, %p112
      %p115 = scmp.ne.s32.totalorder %s100, %s114
      %p116 = scmp.eq.s32.totalorder %s23, 0
      %p117 = por %p115, %p116
      %s119 = sadd.s32 %s118, 1
      %p122 = scmp.eq.s32.totalorder %s17, 3
      %p123 = scmp.ne.s32.totalorder %s118, %s120
      %p124 = scmp.eq.s32.totalorder %s17, 0
      %p125 = por %p123, %p124
      %p126 = scmp.ne.s32.totalorder %s118, %s120
      %p127 = scmp.eq.s32.totalorder %s22, 3
      %p128 = por %p126, %p127
      %p129 = scmp.ne.s32.totalorder %s120, %s121
      %p130 = scmp.eq.s32.totalorder %s22, 0
      %p131 = por %p129, %p130
      %p132 = scmp.ne.s32.totalorder %s120, %s121
      %p133 = scmp.eq.s32.totalorder %s23, 3
      %p134 = por %p132, %p133
      %p136 = scmp.ne.s32.totalorder %s121, %s135
      %p137 = scmp.eq.s32.totalorder %s23, 0
      %p138 = por %p136, %p137
      %s140 = sadd.s32 %s139, 1
      %p143 = scmp.eq.s32.totalorder %s17, 3
      %p144 = scmp.ne.s32.totalorder %s139, %s141
      %p145 = scmp.eq.s32.totalorder %s17, 0
      %p146 = por %p144, %p145
      %p147 = scmp.ne.s32.totalorder %s139, %s141
      %p148 = scmp.eq.s32.totalorder %s22, 3
      %p149 = por %p147, %p148
      %p150 = scmp.ne.s32.totalorder %s141, %s142
      %p151 = scmp.eq.s32.totalorder %s22, 0
      %p152 = por %p150, %p151
      %p153 = scmp.ne.s32.totalorder %s141, %s142
      %p154 = scmp.eq.s32.totalorder %s23, 3
      %p155 = por %p153, %p154
      %p157 = scmp.ne.s32.totalorder %s142, %s156
      %p158 = scmp.eq.s32.totalorder %s23, 0
      %p159 = por %p157, %p158
      %s161 = sadd.s32 %s160, 1
      %p164 = scmp.eq.s32.totalorder %s17, 3
      %p165 = scmp.ne.s32.totalorder %s160, %s162
      %p166 = scmp.eq.s32.totalorder %s17, 0
      %p167 = por %p165, %p166
      %p168 = scmp.ne.s32.totalorder %s160, %s162
      %p169 = scmp.eq.s32.totalorder %s22, 3
      %p170 = por %p168, %p169
      %p171 = scmp.ne.s32.totalorder %s162, %s163
      %p172 = scmp.eq.s32.totalorder %s22, 0
      %p173 = por %p171, %p172
      %p174 = scmp.ne.s32.totalorder %s162, %s163
      %p175 = scmp.eq.s32.totalorder %s23, 3
      %p176 = por %p174, %p175
      %p178 = scmp.ne.s32.totalorder %s163, %s177
      %p179 = scmp.eq.s32.totalorder %s23, 0
      %p180 = por %p178, %p179
      %s182 = sadd.s32 %s181, 1
      %p185 = scmp.eq.s32.totalorder %s17, 3
      %p186 = scmp.ne.s32.totalorder %s181, %s183
      %p187 = scmp.eq.s32.totalorder %s17, 0
      %p188 = por %p186, %p187
      %p189 = scmp.ne.s32.totalorder %s181, %s183
      %p190 = scmp.eq.s32.totalorder %s22, 3
      %p191 = por %p189, %p190
      %p192 = scmp.ne.s32.totalorder %s183, %s184
      %p193 = scmp.eq.s32.totalorder %s22, 0
      %p194 = por %p192, %p193
      %p195 = scmp.ne.s32.totalorder %s183, %s184
      %p196 = scmp.eq.s32.totalorder %s23, 3
      %p197 = por %p195, %p196
      %p199 = scmp.ne.s32.totalorder %s184, %s198
      %p200 = scmp.eq.s32.totalorder %s23, 0
      %p201 = por %p199, %p200
      %s203 = sadd.s32 %s202, 1
      %p206 = scmp.eq.s32.totalorder %s17, 3
      %p207 = scmp.ne.s32.totalorder %s202, %s204
      %p208 = scmp.eq.s32.totalorder %s17, 0
      %p209 = por %p207, %p208
      %p210 = scmp.ne.s32.totalorder %s202, %s204
      %p211 = scmp.eq.s32.totalorder %s22, 3
      %p212 = por %p210, %p211
      %p213 = scmp.ne.s32.totalorder %s204, %s205
      %p214 = scmp.eq.s32.totalorder %s22, 0
      %p215 = por %p213, %p214
      %p216 = scmp.ne.s32.totalorder %s204, %s205
      %p217 = scmp.eq.s32.totalorder %s23, 3
      %p218 = por %p216, %p217
      %p220 = scmp.ne.s32.totalorder %s205, %s219
      %p221 = scmp.eq.s32.totalorder %s23, 0
      %p222 = por %p220, %p221
      %s223 = ssub.s32 %s24, %s36
      %s224 = ssub.s32 %s25, %s32
      %s225 = sor.u32 %s223, %s224
      %p226 = scmp.eq.s32.totalorder %s225, 0
      %s228 = sadd.s32 %s227, 1
      %s229 = scalar_select %p226, %s227, %s228
      %p232 = pneg %p226
      %p233 = scmp.eq.s32.totalorder %s17, 3
      %p234 = por %p232, %p233
      %p235 = scmp.ne.s32.totalorder %s227, %s230
      %p236 = scmp.eq.s32.totalorder %s17, 0
      %p237 = por %p235, %p236
      %p238 = scmp.ne.s32.totalorder %s227, %s230
      %p239 = scmp.eq.s32.totalorder %s22, 3
      %p240 = por %p238, %p239
      %p241 = scmp.ne.s32.totalorder %s230, %s231
      %p242 = scmp.eq.s32.totalorder %s22, 0
      %p243 = por %p241, %p242
      %p244 = scmp.ne.s32.totalorder %s230, %s231
      %p245 = scmp.eq.s32.totalorder %s23, 3
      %p246 = por %p244, %p245
      %p248 = scmp.ne.s32.totalorder %s231, %s247
      %p249 = scmp.eq.s32.totalorder %s23, 0
      %p250 = por %p248, %p249
      %p251 = scmp.le.s32.totalorder 1, %s17
      %p252 = scmp.lt.s32.totalorder %s17, 5
      %p253 = pnand %p251, %p252
      %p254 = pneg %p253
      // Predicated region
      $region9: #{tpu_custom_call.1} parent=5 // pred_check
        _
      $region10: #{tpu_custom_call.1} parent=5 // pred_check_branch
        %256 = sbr.rel (%p253) target = $region12
      $region11: #{tpu_custom_call.1} parent=5 // pred_region
        %s257 = ssub.s32 %s17, 1
        // Predicated region
        $region13: #{tpu_custom_call.1} parent=11 // pred_check
          %p258 = pneg %p110
        $region14: #{tpu_custom_call.1} parent=11 // pred_check_branch
          %260 = sbr.rel (%p258) target = $region16
        $region15: #{tpu_custom_call.1} parent=11 // pred_region
          _
        $region16: #{tpu_custom_call.1} parent=11 // pred_fallthru
          _
        // Predicated region
        $region17: #{tpu_custom_call.1} parent=11 // pred_check
          %p261 = pneg %p131
        $region18: #{tpu_custom_call.1} parent=11 // pred_check_branch
          %263 = sbr.rel (%p261) target = $region20
        $region19: #{tpu_custom_call.1} parent=11 // pred_region
          _
        $region20: #{tpu_custom_call.1} parent=11 // pred_fallthru
          _
        // Predicated region
        $region21: #{tpu_custom_call.1} parent=11 // pred_check
          %p264 = pneg %p152
        $region22: #{tpu_custom_call.1} parent=11 // pred_check_branch
          %266 = sbr.rel (%p264) target = $region24
        $region23: #{tpu_custom_call.1} parent=11 // pred_region
          _
        $region24: #{tpu_custom_call.1} parent=11 // pred_fallthru
          _
        // Predicated region
        $region25: #{tpu_custom_call.1} parent=11 // pred_check
          %p267 = pneg %p173
        $region26: #{tpu_custom_call.1} parent=11 // pred_check_branch
          %269 = sbr.rel (%p267) target = $region28
        $region27: #{tpu_custom_call.1} parent=11 // pred_region
          _
        $region28: #{tpu_custom_call.1} parent=11 // pred_fallthru
          _
        // Predicated region
        $region29: #{tpu_custom_call.1} parent=11 // pred_check
          %p270 = pneg %p194
        $region30: #{tpu_custom_call.1} parent=11 // pred_check_branch
          %272 = sbr.rel (%p270) target = $region32
        $region31: #{tpu_custom_call.1} parent=11 // pred_region
          _
        $region32: #{tpu_custom_call.1} parent=11 // pred_fallthru
          _
        // Predicated region
        $region33: #{tpu_custom_call.1} parent=11 // pred_check
          %p273 = pneg %p215
        $region34: #{tpu_custom_call.1} parent=11 // pred_check_branch
          %275 = sbr.rel (%p273) target = $region36
        $region35: #{tpu_custom_call.1} parent=11 // pred_region
          _
        $region36: #{tpu_custom_call.1} parent=11 // pred_fallthru
          _
      $region12: #{tpu_custom_call.1} parent=5 // pred_fallthru
        _
      %p276 = scmp.lt.s32.totalorder %s17, 4
      // Predicated region
      $region37: #{tpu_custom_call.1} parent=5 // pred_check
        %p277 = pneg %p276
      $region38: #{tpu_custom_call.1} parent=5 // pred_check_branch
        %279 = sbr.rel (%p277) target = $region40
      $region39: #{tpu_custom_call.1} parent=5 // pred_region
        // Predicated region
        $region41: #{tpu_custom_call.1} parent=39 // pred_check
          %p280 = pneg %p51
        $region42: #{tpu_custom_call.1} parent=39 // pred_check_branch
          %282 = sbr.rel (%p280) target = $region44
        $region43: #{tpu_custom_call.1} parent=39 // pred_region
          %s283 = smul.u32 8, %s25
          %s284 = ssub.s32 20, %s283
          %p285 = scmp.lt.s32.totalorder %s284, 8
          %s286 = scalar_select %p285, %s284, 8
          %s287 = smul.u32 64, %s286
          %s288 = smul.u32 %s287, 3
          %p289 = scmp.lt.s32.totalorder %s24, 1
          %s290 = scalar_select %p289, %s24, 1
          %p291 = scmp.lt.s32.totalorder %s283, 19
          %s292 = scalar_select %p291, %s283, 19
          %s293 = smul.addr %s292, 3
          %s294 = smul.addr %s290, 60
          %s295 = sadd.s32 %s293, %s294
          %s296 = smul.addr %s295, 4
          %s297 = scalar_lea.vmem %s0, %s296
          %s298 = smul.u32 8, %s25
          %s299 = ssub.s32 20, %s298
          %p300 = scmp.lt.s32.totalorder %s299, 8
          %s301 = scalar_select %p300, %s299, 8
          %s302 = smul.u32 64, %s301
          %s303 = smul.u32 %s302, 3
        $region44: #{tpu_custom_call.1} parent=39 // pred_fallthru
          _
        // Predicated region
        $region45: #{tpu_custom_call.1} parent=39 // pred_check
          %p304 = pneg %p83
        $region46: #{tpu_custom_call.1} parent=39 // pred_check_branch
          %306 = sbr.rel (%p304) target = $region48
        $region47: #{tpu_custom_call.1} parent=39 // pred_region
          %s307 = sadd.s32 %s25, 1
          %s308 = smul.u32 %s307, 2
          %s309 = smul.u32 4, %s308
          %p310 = scmp.lt.s32.totalorder %s24, 1
          %s311 = scalar_select %p310, %s24, 1
          %p312 = scmp.lt.s32.totalorder %s309, 19
          %s313 = scalar_select %p312, %s309, 19
          %s314 = smul.addr %s313, 3
          %s315 = smul.addr %s311, 60
          %s316 = sadd.s32 %s314, %s315
          %s317 = smul.addr %s316, 4
          %s318 = scalar_lea.vmem %s1, %s317
          %s319 = sadd.s32 %s25, 1
          %s320 = smul.u32 %s319, 2
          %s321 = smul.u32 4, %s320
        $region48: #{tpu_custom_call.1} parent=39 // pred_fallthru
          _
      $region40: #{tpu_custom_call.1} parent=5 // pred_fallthru
        _
      %p322 = scmp.le.s32.totalorder 1, %s17
      %p323 = scmp.lt.s32.totalorder %s17, 5
      %p324 = pnand %p322, %p323
      %p325 = pneg %p324
      // Predicated region
      $region49: #{tpu_custom_call.1} parent=5 // pred_check
        _
      $region50: #{tpu_custom_call.1} parent=5 // pred_check_branch
        %327 = sbr.rel (%p324) target = $region52
      $region51: #{tpu_custom_call.1} parent=5 // pred_region
        %s328 = ssub.s32 %s17, 1
        %s329 = smul.u32 8, %s27
        %s330 = ssub.s32 20, %s329
        %p331 = scmp.lt.s32.totalorder %s330, 8
        %s332 = scalar_select %p331, %s330, 8
        %s333 = smul.u32 64, %s332
        %s334 = smul.u32 %s333, 3
        %p335 = scmp.lt.s32.totalorder %s26, 1
        %s336 = scalar_select %p335, %s26, 1
        %p337 = scmp.lt.s32.totalorder %s329, 19
        %s338 = scalar_select %p337, %s329, 19
        %s339 = smul.addr %s338, 3
        %s340 = smul.addr %s336, 60
        %s341 = sadd.s32 %s339, %s340
        %s342 = smul.addr %s341, 4
        %s343 = scalar_lea.vmem %s0, %s342
        %p344 = pneg %p57
        %p345 = pneg %p54
        %s346 = sadd.s32 %s27, 1
        %s347 = smul.u32 %s346, 2
        %s348 = smul.u32 4, %s347
        %p349 = scmp.lt.s32.totalorder %s26, 1
        %s350 = scalar_select %p349, %s26, 1
        %p351 = scmp.lt.s32.totalorder %s348, 19
        %s352 = scalar_select %p351, %s348, 19
        %s353 = smul.addr %s352, 3
        %s354 = smul.addr %s350, 60
        %s355 = sadd.s32 %s353, %s354
        %s356 = smul.addr %s355, 4
        %s357 = scalar_lea.vmem %s1, %s356
        %p358 = pneg %p89
        %p359 = pneg %p86
        %p360 = pneg %p110
        %p361 = pneg %p107
        %p362 = pneg %p131
        %p363 = pneg %p128
        %p364 = pneg %p152
        %p365 = pneg %p149
        %p366 = pneg %p173
        %p367 = pneg %p170
        %p368 = pneg %p194
        %p369 = pneg %p191
        %p370 = pneg %p215
        %p371 = pneg %p212
        %p372 = pneg %p243
        %p373 = pneg %p240
        %s374 = sand.u32 %s230, 1
        %s375 = scalar_lea.sflag [#allocation5], %s374
        %s376 = sand.u32 %s230, 1
        %s377 = smul.addr %s376, 64
        %s378 = scalar_lea.vmem [#allocation4], %s377
        %s379 = smul.u32 8, %s27
        %s380 = ssub.s32 20, %s379
        %p381 = scmp.lt.s32.totalorder %s380, 8
        %s382 = scalar_select %p381, %s380, 8
        %s383 = smul.u32 64, %s382
        %s384 = smul.u32 %s383, 3
        %p385 = scmp.lt.s32.totalorder %s26, 1
        %s386 = scalar_select %p385, %s26, 1
        %p387 = scmp.lt.s32.totalorder %s379, 19
        %s388 = scalar_select %p387, %s379, 19
        %s389 = smul.addr %s388, 3
        %s390 = smul.addr %s386, 60
        %s391 = sadd.s32 %s389, %s390
        %s392 = smul.addr %s391, 4
        %s393 = scalar_lea.vmem %s0, %s392
        %s394 = smul.u32 8, %s27
        %s395 = ssub.s32 20, %s394
        %p396 = scmp.lt.s32.totalorder %s395, 8
        %s397 = scalar_select %p396, %s395, 8
        %s398 = smul.u32 64, %s397
        %s399 = smul.u32 %s398, 3
        %s400 = sadd.s32 %s27, 1
        %s401 = smul.u32 %s400, 2
        %s402 = smul.u32 4, %s401
        %p403 = scmp.lt.s32.totalorder %s26, 1
        %s404 = scalar_select %p403, %s26, 1
        %p405 = scmp.lt.s32.totalorder %s402, 19
        %s406 = scalar_select %p405, %s402, 19
        %s407 = smul.addr %s406, 3
        %s408 = smul.addr %s404, 60
        %s409 = sadd.s32 %s407, %s408
        %s410 = smul.addr %s409, 4
        %s411 = scalar_lea.vmem %s1, %s410
        %s412 = sadd.s32 %s27, 1
        %s413 = smul.u32 %s412, 2
        %s414 = smul.u32 4, %s413
        %s415 = smul.u32 8, %s27
        %s417 = smul.u32 %s27, 8
        %v418 = vld [vmem:[%s5] sm:$0x1]
        %v419 = vld [vmem:[%s6] sm:$0x1]
        %v420 = vld [vmem:[%s7] sm:$0x1]
        %v421 = vld [vmem:[%s393] sm:$0xf]
        %v422 = vld [vmem:[%s393 + $0x4] sm:$0xf]
        %v423 = vld [vmem:[%s393 + $0x8] sm:$0x3]
        %v424 = vld [vmem:[%s393 + $0xc] sm:$0xf]
        %v425 = vld [vmem:[%s393 + $0x10] sm:$0xf]
        %v426 = vld [vmem:[%s393 + $0x14] sm:$0x3]
        %v427 = vld [vmem:[%s393 + $0x18] sm:$0xf]
        %v428 = vld [vmem:[%s393 + $0x1c] sm:$0xf]
        %v429 = vld [vmem:[%s393 + $0x20] sm:$0x3]
        %v430 = vld [vmem:[%s393 + $0x24] sm:$0xf]
        %v431 = vld [vmem:[%s393 + $0x28] sm:$0xf]
        %v432 = vld [vmem:[%s393 + $0x2c] sm:$0x3]
        %v433 = vld [vmem:[%s393 + $0x30] sm:$0xf]
        %v434 = vld [vmem:[%s393 + $0x34] sm:$0xf]
        %v435 = vld [vmem:[%s393 + $0x38] sm:$0x3]
        %v436 = vld [vmem:[%s393 + $0x3c] sm:$0xf]
        %v437 = vld [vmem:[%s393 + $0x40] sm:$0xf]
        %v438 = vld [vmem:[%s393 + $0x44] sm:$0x3]
        %v439 = vld [vmem:[%s393 + $0x48] sm:$0xf]
        %v440 = vld [vmem:[%s393 + $0x4c] sm:$0xf]
        %v441 = vld [vmem:[%s393 + $0x50] sm:$0x3]
        %v442 = vld [vmem:[%s393 + $0x54] sm:$0xf]
        %v443 = vld [vmem:[%s393 + $0x58] sm:$0xf]
        %v444 = vld [vmem:[%s393 + $0x5c] sm:$0x3]
        %v445 = vld [vmem:[%s2] sm:$0xf]
        %v446 = vld [vmem:[%s2 + $0x4] sm:$0xf]
        %v448 = vlaneseq
        %v449 = vshrl.u32 %v448, 7
        %v450 = vsub.s32 0, %v449
        %v451 = vrot.slane %v418, %v450
        %v477 = vunpack.c.l.s4 1983009808
        %v478 = vunpack.c.0.s8 %v477
        %v479 = vlaneseq
        %v480 = vshrl.u32 %v479, 7
        %v481 = vsub.s32 %v478, %v480
        %v482 = vrot.slane %v421, %v481
        %v483 = vcombine.high %v482, %v482
        %v485 = vunpack.c.l.s4 1983009808
        %v486 = vunpack.c.0.s8 %v485
        %v487 = vlaneseq
        %v488 = vshrl.u32 %v487, 7
        %v489 = vsub.s32 %v486, %v488
        %v490 = vrot.slane %v422, %v489
        %v491 = vcombine.high %v490, %v490
        %v493 = vunpack.c.l.s4 1983009808
        %v494 = vunpack.c.0.s8 %v493
        %v495 = vlaneseq
        %v496 = vshrl.u32 %v495, 7
        %v497 = vsub.s32 %v494, %v496
        %v498 = vrot.slane %v423, %v497
        %v500 = vunpack.c.l.s4 1983009808
        %v501 = vunpack.c.0.s8 %v500
        %v502 = vlaneseq
        %v503 = vshrl.u32 %v502, 7
        %v504 = vsub.s32 %v501, %v503
        %v505 = vrot.slane %v424, %v504
        %v506 = vcombine.high %v505, %v505
        %v508 = vunpack.c.l.s4 1983009808
        %v509 = vunpack.c.0.s8 %v508
        %v510 = vlaneseq
        %v511 = vshrl.u32 %v510, 7
        %v512 = vsub.s32 %v509, %v511
        %v513 = vrot.slane %v425, %v512
        %v514 = vcombine.high %v513, %v513
        %v516 = vunpack.c.l.s4 1983009808
        %v517 = vunpack.c.0.s8 %v516
        %v518 = vlaneseq
        %v519 = vshrl.u32 %v518, 7
        %v520 = vsub.s32 %v517, %v519
        %v521 = vrot.slane %v426, %v520
        %v523 = vunpack.c.l.s4 1983009808
        %v524 = vunpack.c.0.s8 %v523
        %v525 = vlaneseq
        %v526 = vshrl.u32 %v525, 7
        %v527 = vsub.s32 %v524, %v526
        %v528 = vrot.slane %v427, %v527
        %v529 = vcombine.high %v528, %v528
        %v531 = vunpack.c.l.s4 1983009808
        %v532 = vunpack.c.0.s8 %v531
        %v533 = vlaneseq
        %v534 = vshrl.u32 %v533, 7
        %v535 = vsub.s32 %v532, %v534
        %v536 = vrot.slane %v428, %v535
        %v537 = vcombine.high %v536, %v536
        %v539 = vunpack.c.l.s4 1983009808
        %v540 = vunpack.c.0.s8 %v539
        %v541 = vlaneseq
        %v542 = vshrl.u32 %v541, 7
        %v543 = vsub.s32 %v540, %v542
        %v544 = vrot.slane %v429, %v543
        %v546 = vunpack.c.l.s4 1983009808
        %v547 = vunpack.c.0.s8 %v546
        %v548 = vlaneseq
        %v549 = vshrl.u32 %v548, 7
        %v550 = vsub.s32 %v547, %v549
        %v551 = vrot.slane %v430, %v550
        %v552 = vcombine.high %v551, %v551
        %v554 = vunpack.c.l.s4 1983009808
        %v555 = vunpack.c.0.s8 %v554
        %v556 = vlaneseq
        %v557 = vshrl.u32 %v556, 7
        %v558 = vsub.s32 %v555, %v557
        %v559 = vrot.slane %v431, %v558
        %v560 = vcombine.high %v559, %v559
        %v562 = vunpack.c.l.s4 1983009808
        %v563 = vunpack.c.0.s8 %v562
        %v564 = vlaneseq
        %v565 = vshrl.u32 %v564, 7
        %v566 = vsub.s32 %v563, %v565
        %v567 = vrot.slane %v432, %v566
        %v569 = vunpack.c.l.s4 1983009808
        %v570 = vunpack.c.0.s8 %v569
        %v571 = vlaneseq
        %v572 = vshrl.u32 %v571, 7
        %v573 = vsub.s32 %v570, %v572
        %v574 = vrot.slane %v433, %v573
        %v575 = vcombine.high %v574, %v574
        %v577 = vunpack.c.l.s4 1983009808
        %v578 = vunpack.c.0.s8 %v577
        %v579 = vlaneseq
        %v580 = vshrl.u32 %v579, 7
        %v581 = vsub.s32 %v578, %v580
        %v582 = vrot.slane %v434, %v581
        %v583 = vcombine.high %v582, %v582
        %v585 = vunpack.c.l.s4 1983009808
        %v586 = vunpack.c.0.s8 %v585
        %v587 = vlaneseq
        %v588 = vshrl.u32 %v587, 7
        %v589 = vsub.s32 %v586, %v588
        %v590 = vrot.slane %v435, %v589
        %v592 = vunpack.c.l.s4 1983009808
        %v593 = vunpack.c.0.s8 %v592
        %v594 = vlaneseq
        %v595 = vshrl.u32 %v594, 7
        %v596 = vsub.s32 %v593, %v595
        %v597 = vrot.slane %v436, %v596
        %v598 = vcombine.high %v597, %v597
        %v600 = vunpack.c.l.s4 1983009808
        %v601 = vunpack.c.0.s8 %v600
        %v602 = vlaneseq
        %v603 = vshrl.u32 %v602, 7
        %v604 = vsub.s32 %v601, %v603
        %v605 = vrot.slane %v437, %v604
        %v606 = vcombine.high %v605, %v605
        %v608 = vunpack.c.l.s4 1983009808
        %v609 = vunpack.c.0.s8 %v608
        %v610 = vlaneseq
        %v611 = vshrl.u32 %v610, 7
        %v612 = vsub.s32 %v609, %v611
        %v613 = vrot.slane %v438, %v612
        %v615 = vunpack.c.l.s4 1983009808
        %v616 = vunpack.c.0.s8 %v615
        %v617 = vlaneseq
        %v618 = vshrl.u32 %v617, 7
        %v619 = vsub.s32 %v616, %v618
        %v620 = vrot.slane %v439, %v619
        %v621 = vcombine.high %v620, %v620
        %v623 = vunpack.c.l.s4 1983009808
        %v624 = vunpack.c.0.s8 %v623
        %v625 = vlaneseq
        %v626 = vshrl.u32 %v625, 7
        %v627 = vsub.s32 %v624, %v626
        %v628 = vrot.slane %v440, %v627
        %v629 = vcombine.high %v628, %v628
        %v631 = vunpack.c.l.s4 1983009808
        %v632 = vunpack.c.0.s8 %v631
        %v633 = vlaneseq
        %v634 = vshrl.u32 %v633, 7
        %v635 = vsub.s32 %v632, %v634
        %v636 = vrot.slane %v441, %v635
        %v638 = vunpack.c.l.s4 1983009808
        %v639 = vunpack.c.0.s8 %v638
        %v640 = vlaneseq
        %v641 = vshrl.u32 %v640, 7
        %v642 = vsub.s32 %v639, %v641
        %v643 = vrot.slane %v442, %v642
        %v644 = vcombine.high %v643, %v643
        %v646 = vunpack.c.l.s4 1983009808
        %v647 = vunpack.c.0.s8 %v646
        %v648 = vlaneseq
        %v649 = vshrl.u32 %v648, 7
        %v650 = vsub.s32 %v647, %v649
        %v651 = vrot.slane %v443, %v650
        %v652 = vcombine.high %v651, %v651
        %v654 = vunpack.c.l.s4 1983009808
        %v655 = vunpack.c.0.s8 %v654
        %v656 = vlaneseq
        %v657 = vshrl.u32 %v656, 7
        %v658 = vsub.s32 %v655, %v657
        %v659 = vrot.slane %v444, %v658
        %v660 = vcombine.high %v451, %v451
        %v661 = vcombine.low %v482, %v483
        %v662 = vcombine.low %v490, %v491
        %v664 = vunpack.c.l.s4 1983009808
        %v665 = vunpack.c.0.s8 %v664
        %v666 = vlaneseq
        %v667 = vshrl.u32 %v666, 7
        %v668 = vsub.s32 %v665, %v667
        %v669 = vrot.slane %v661, %v668
        %v671 = vunpack.c.l.s4 1983009808
        %v672 = vunpack.c.0.s8 %v671
        %v673 = vlaneseq
        %v674 = vshrl.u32 %v673, 7
        %v675 = vsub.s32 %v672, %v674
        %v676 = vrot.slane %v662, %v675
        %v677 = vcombine.low %v669, %v676
        %v678 = vcombine.low %v498, %v505
        %v679 = vcombine.low %v506, %v513
        %v681 = vunpack.c.l.s4 1983009808
        %v682 = vunpack.c.0.s8 %v681
        %v683 = vlaneseq
        %v684 = vshrl.u32 %v683, 7
        %v685 = vsub.s32 %v682, %v684
        %v686 = vrot.slane %v678, %v685
        %v688 = vunpack.c.l.s4 1983009808
        %v689 = vunpack.c.0.s8 %v688
        %v690 = vlaneseq
        %v691 = vshrl.u32 %v690, 7
        %v692 = vsub.s32 %v689, %v691
        %v693 = vrot.slane %v679, %v692
        %v694 = vcombine.low %v686, %v693
        %v695 = vcombine.low %v514, %v521
        %v696 = vcombine.low %v528, %v529
        %v698 = vunpack.c.l.s4 1983009808
        %v699 = vunpack.c.0.s8 %v698
        %v700 = vlaneseq
        %v701 = vshrl.u32 %v700, 7
        %v702 = vsub.s32 %v699, %v701
        %v703 = vrot.slane %v695, %v702
        %v705 = vunpack.c.l.s4 1983009808
        %v706 = vunpack.c.0.s8 %v705
        %v707 = vlaneseq
        %v708 = vshrl.u32 %v707, 7
        %v709 = vsub.s32 %v706, %v708
        %v710 = vrot.slane %v696, %v709
        %v711 = vcombine.low %v703, %v710
        %v712 = vcombine.low %v536, %v537
        %v713 = vcombine.low %v544, %v551
        %v715 = vunpack.c.l.s4 1983009808
        %v716 = vunpack.c.0.s8 %v715
        %v717 = vlaneseq
        %v718 = vshrl.u32 %v717, 7
        %v719 = vsub.s32 %v716, %v718
        %v720 = vrot.slane %v712, %v719
        %v722 = vunpack.c.l.s4 1983009808
        %v723 = vunpack.c.0.s8 %v722
        %v724 = vlaneseq
        %v725 = vshrl.u32 %v724, 7
        %v726 = vsub.s32 %v723, %v725
        %v727 = vrot.slane %v713, %v726
        %v728 = vcombine.low %v720, %v727
        %v729 = vcombine.low %v552, %v559
        %v730 = vcombine.low %v560, %v567
        %v732 = vunpack.c.l.s4 1983009808
        %v733 = vunpack.c.0.s8 %v732
        %v734 = vlaneseq
        %v735 = vshrl.u32 %v734, 7
        %v736 = vsub.s32 %v733, %v735
        %v737 = vrot.slane %v729, %v736
        %v739 = vunpack.c.l.s4 1983009808
        %v740 = vunpack.c.0.s8 %v739
        %v741 = vlaneseq
        %v742 = vshrl.u32 %v741, 7
        %v743 = vsub.s32 %v740, %v742
        %v744 = vrot.slane %v730, %v743
        %v745 = vcombine.low %v737, %v744
        %v746 = vcombine.low %v574, %v575
        %v747 = vcombine.low %v582, %v583
        %v749 = vunpack.c.l.s4 1983009808
        %v750 = vunpack.c.0.s8 %v749
        %v751 = vlaneseq
        %v752 = vshrl.u32 %v751, 7
        %v753 = vsub.s32 %v750, %v752
        %v754 = vrot.slane %v746, %v753
        %v756 = vunpack.c.l.s4 1983009808
        %v757 = vunpack.c.0.s8 %v756
        %v758 = vlaneseq
        %v759 = vshrl.u32 %v758, 7
        %v760 = vsub.s32 %v757, %v759
        %v761 = vrot.slane %v747, %v760
        %v762 = vcombine.low %v754, %v761
        %v763 = vcombine.low %v590, %v597
        %v764 = vcombine.low %v598, %v605
        %v766 = vunpack.c.l.s4 1983009808
        %v767 = vunpack.c.0.s8 %v766
        %v768 = vlaneseq
        %v769 = vshrl.u32 %v768, 7
        %v770 = vsub.s32 %v767, %v769
        %v771 = vrot.slane %v763, %v770
        %v773 = vunpack.c.l.s4 1983009808
        %v774 = vunpack.c.0.s8 %v773
        %v775 = vlaneseq
        %v776 = vshrl.u32 %v775, 7
        %v777 = vsub.s32 %v774, %v776
        %v778 = vrot.slane %v764, %v777
        %v779 = vcombine.low %v771, %v778
        %v780 = vcombine.low %v606, %v613
        %v781 = vcombine.low %v620, %v621
        %v783 = vunpack.c.l.s4 1983009808
        %v784 = vunpack.c.0.s8 %v783
        %v785 = vlaneseq
        %v786 = vshrl.u32 %v785, 7
        %v787 = vsub.s32 %v784, %v786
        %v788 = vrot.slane %v780, %v787
        %v790 = vunpack.c.l.s4 1983009808
        %v791 = vunpack.c.0.s8 %v790
        %v792 = vlaneseq
        %v793 = vshrl.u32 %v792, 7
        %v794 = vsub.s32 %v791, %v793
        %v795 = vrot.slane %v781, %v794
        %v796 = vcombine.low %v788, %v795
        %v797 = vcombine.low %v628, %v629
        %v798 = vcombine.low %v636, %v643
        %v800 = vunpack.c.l.s4 1983009808
        %v801 = vunpack.c.0.s8 %v800
        %v802 = vlaneseq
        %v803 = vshrl.u32 %v802, 7
        %v804 = vsub.s32 %v801, %v803
        %v805 = vrot.slane %v797, %v804
        %v807 = vunpack.c.l.s4 1983009808
        %v808 = vunpack.c.0.s8 %v807
        %v809 = vlaneseq
        %v810 = vshrl.u32 %v809, 7
        %v811 = vsub.s32 %v808, %v810
        %v812 = vrot.slane %v798, %v811
        %v813 = vcombine.low %v805, %v812
        %v814 = vcombine.low %v644, %v651
        %v815 = vcombine.low %v652, %v659
        %v817 = vunpack.c.l.s4 1983009808
        %v818 = vunpack.c.0.s8 %v817
        %v819 = vlaneseq
        %v820 = vshrl.u32 %v819, 7
        %v821 = vsub.s32 %v818, %v820
        %v822 = vrot.slane %v814, %v821
        %v824 = vunpack.c.l.s4 1983009808
        %v825 = vunpack.c.0.s8 %v824
        %v826 = vlaneseq
        %v827 = vshrl.u32 %v826, 7
        %v828 = vsub.s32 %v825, %v827
        %v829 = vrot.slane %v815, %v828
        %v830 = vcombine.low %v822, %v829
        %v833 = vunpack.c.l.b16 %v445
        %v834 = vunpack.c.l.b16 %v446
        %v835 = vpack.c.b16 %v834, %v833
        %v837 = vcombine.low %v451, %v660
        %v838 = vcombine.low %v451, %v451
        %v839 = vcombine.low %v660, %v451
        %vm843 = vcmask 130048
        %v845 = vsel %vm843, %v677, 0
        %v848 = vsel %vm843, %v694, 0
        %v851 = vsel %vm843, %v711, 0
        %v854 = vsel %vm843, %v728, 0
        %v857 = vsel %vm843, %v745, 0
        %v860 = vsel %vm843, %v762, 0
        %v863 = vsel %vm843, %v779, 0
        %v866 = vsel %vm843, %v796, 0
        %v869 = vsel %vm843, %v813, 0
        %v872 = vsel %vm843, %v830, 0
        %874 = vmatprep.subr.bf16.mxu0 0
        %875 = vmatpush1.bf16.msra.mxu0 0
        %876 = vmatprep.subr.bf16.mxu0 0
        %877 = vmatpush1.bf16.msra.mxu0 0
        %878 = vmatprep.subr.bf16.mxu0 0
        %879 = vmatpush1.bf16.msra.mxu0 0
        %880 = vmatprep.subr.bf16.mxu0 0
        %881 = vmatpush1.bf16.msra.mxu0 0
        %882 = vmatprep.subr.bf16.mxu0 0
        %883 = vmatpush1.bf16.msra.mxu0 0
        %884 = vmatprep.subr.bf16.mxu0 0
        %885 = vmatpush1.bf16.msra.mxu0 0
        %886 = vmatprep.subr.bf16.mxu0 0
        %887 = vmatpush1.bf16.msra.mxu0 0
        %888 = vmatprep.subr.bf16.mxu0 0
        %889 = vmatpush1.bf16.msra.mxu0 %v835
        %890 = vmatprep.subr.bf16.mxu0 0
        %891 = vmatpush2.bf16.msra.mxu0 0
        %892 = vmatprep.subr.bf16.mxu0 0
        %893 = vmatpush2.bf16.msra.mxu0 0
        %894 = vmatprep.subr.bf16.mxu0 0
        %895 = vmatpush2.bf16.msra.mxu0 0
        %896 = vmatprep.subr.bf16.mxu0 0
        %897 = vmatpush2.bf16.msra.mxu0 0
        %898 = vmatprep.subr.bf16.mxu0 0
        %899 = vmatpush2.bf16.msra.mxu0 0
        %900 = vmatprep.subr.bf16.mxu0 0
        %901 = vmatpush2.bf16.msra.mxu0 0
        %902 = vmatprep.subr.bf16.mxu0 0
        %903 = vmatpush2.bf16.msra.mxu0 0
        %904 = vmatprep.subr.bf16.mxu0 0
        %905 = vmatpush2.bf16.msra.mxu0 0
        %906 = vmatprep.mubr.bf16.mxu0 0
        %907 = vmatmul.mubr.bf16.gmra.mxu0 %v845
        %v908 = vpop.f32.mrf.mxu0
        %v909 = vadd.f32 %v837, %v908
        %v910 = vpop.f32.mrf.mxu0
        %v911 = vpop.f32.mrf.mxu0
        %v912 = vadd.f32 %v837, %v911
        %v913 = vpop.f32.mrf.mxu0
        %914 = vmatprep.mubr.bf16.mxu0 0
        %915 = vmatmul.mubr.bf16.gmra.mxu0 %v848
        %v916 = vpop.f32.mrf.mxu0
        %v917 = vadd.f32 %v838, %v916
        %v918 = vpop.f32.mrf.mxu0
        %v919 = vpop.f32.mrf.mxu0
        %v920 = vadd.f32 %v839, %v919
        %v921 = vpop.f32.mrf.mxu0
        %922 = vmatprep.mubr.bf16.mxu0 0
        %923 = vmatmul.mubr.bf16.gmra.mxu0 %v851
        %v924 = vpop.f32.mrf.mxu0
        %v925 = vadd.f32 %v839, %v924
        %v926 = vpop.f32.mrf.mxu0
        %v927 = vpop.f32.mrf.mxu0
        %v928 = vadd.f32 %v837, %v927
        %v929 = vpop.f32.mrf.mxu0
        %930 = vmatprep.mubr.bf16.mxu0 0
        %931 = vmatmul.mubr.bf16.gmra.mxu0 %v854
        %v932 = vpop.f32.mrf.mxu0
        %v933 = vadd.f32 %v837, %v932
        %v934 = vpop.f32.mrf.mxu0
        %v935 = vpop.f32.mrf.mxu0
        %v936 = vadd.f32 %v838, %v935
        %v937 = vpop.f32.mrf.mxu0
        %938 = vmatprep.mubr.bf16.mxu0 0
        %939 = vmatmul.mubr.bf16.gmra.mxu0 %v857
        %v940 = vpop.f32.mrf.mxu0
        %v941 = vadd.f32 %v839, %v940
        %v942 = vpop.f32.mrf.mxu0
        %v943 = vpop.f32.mrf.mxu0
        %v944 = vadd.f32 %v839, %v943
        %v945 = vpop.f32.mrf.mxu0
        %946 = vmatprep.mubr.bf16.mxu0 0
        %947 = vmatmul.mubr.bf16.gmra.mxu0 %v860
        %v948 = vpop.f32.mrf.mxu0
        %v949 = vadd.f32 %v837, %v948
        %v950 = vpop.f32.mrf.mxu0
        %v951 = vpop.f32.mrf.mxu0
        %v952 = vadd.f32 %v837, %v951
        %v953 = vpop.f32.mrf.mxu0
        %954 = vmatprep.mubr.bf16.mxu0 0
        %955 = vmatmul.mubr.bf16.gmra.mxu0 %v863
        %v956 = vpop.f32.mrf.mxu0
        %v957 = vadd.f32 %v838, %v956
        %v958 = vpop.f32.mrf.mxu0
        %v959 = vpop.f32.mrf.mxu0
        %v960 = vadd.f32 %v839, %v959
        %v961 = vpop.f32.mrf.mxu0
        %962 = vmatprep.mubr.bf16.mxu0 0
        %963 = vmatmul.mubr.bf16.gmra.mxu0 %v866
        %v964 = vpop.f32.mrf.mxu0
        %v965 = vadd.f32 %v839, %v964
        %v966 = vpop.f32.mrf.mxu0
        %v967 = vpop.f32.mrf.mxu0
        %v968 = vadd.f32 %v837, %v967
        %v969 = vpop.f32.mrf.mxu0
        %970 = vmatprep.mubr.bf16.mxu0 0
        %971 = vmatmul.mubr.bf16.gmra.mxu0 %v869
        %v972 = vpop.f32.mrf.mxu0
        %v973 = vadd.f32 %v837, %v972
        %v974 = vpop.f32.mrf.mxu0
        %v975 = vpop.f32.mrf.mxu0
        %v976 = vadd.f32 %v838, %v975
        %v977 = vpop.f32.mrf.mxu0
        %978 = vmatprep.mubr.bf16.mxu0 0
        %979 = vmatmul.mubr.bf16.gmra.mxu0 %v872
        %v980 = vpop.f32.mrf.mxu0
        %v981 = vadd.f32 %v839, %v980
        %v982 = vpop.f32.mrf.mxu0
        %v983 = vpop.f32.mrf.mxu0
        %v984 = vadd.f32 %v839, %v983
        %v985 = vpop.f32.mrf.mxu0
        %986 = vdwg.mxu0
        %v1007 = vcombine.high %v909, %v909
        %v1008 = vcombine.high %v912, %v912
        %v1009 = vcombine.high %v917, %v917
        %v1010 = vcombine.high %v920, %v920
        %v1011 = vcombine.high %v925, %v925
        %v1012 = vcombine.high %v928, %v928
        %v1013 = vcombine.high %v933, %v933
        %v1014 = vcombine.high %v936, %v936
        %v1015 = vcombine.high %v941, %v941
        %v1016 = vcombine.high %v944, %v944
        %v1017 = vcombine.high %v949, %v949
        %v1018 = vcombine.high %v952, %v952
        %v1019 = vcombine.high %v957, %v957
        %v1020 = vcombine.high %v960, %v960
        %v1021 = vcombine.high %v965, %v965
        %v1022 = vcombine.high %v968, %v968
        %v1023 = vcombine.high %v973, %v973
        %v1024 = vcombine.high %v976, %v976
        %v1025 = vcombine.high %v981, %v981
        %v1026 = vcombine.high %v984, %v984
        %v1047 = vmax.f32 %v909, 0.0
        %v1048 = vmax.f32 %v1007, 0.0
        %v1049 = vmax.f32 %v912, 0.0
        %v1050 = vmax.f32 %v1008, 0.0
        %v1051 = vmax.f32 %v917, 0.0
        %v1052 = vmax.f32 %v1009, 0.0
        %v1053 = vmax.f32 %v920, 0.0
        %v1054 = vmax.f32 %v1010, 0.0
        %v1055 = vmax.f32 %v925, 0.0
        %v1056 = vmax.f32 %v1011, 0.0
        %v1057 = vmax.f32 %v928, 0.0
        %v1058 = vmax.f32 %v1012, 0.0
        %v1059 = vmax.f32 %v933, 0.0
        %v1060 = vmax.f32 %v1013, 0.0
        %v1061 = vmax.f32 %v936, 0.0
        %v1062 = vmax.f32 %v1014, 0.0
        %v1063 = vmax.f32 %v941, 0.0
        %v1064 = vmax.f32 %v1015, 0.0
        %v1065 = vmax.f32 %v944, 0.0
        %v1066 = vmax.f32 %v1016, 0.0
        %v1067 = vmax.f32 %v949, 0.0
        %v1068 = vmax.f32 %v1017, 0.0
        %v1069 = vmax.f32 %v952, 0.0
        %v1070 = vmax.f32 %v1018, 0.0
        %v1071 = vmax.f32 %v957, 0.0
        %v1072 = vmax.f32 %v1019, 0.0
        %v1073 = vmax.f32 %v960, 0.0
        %v1074 = vmax.f32 %v1020, 0.0
        %v1075 = vmax.f32 %v965, 0.0
        %v1076 = vmax.f32 %v1021, 0.0
        %v1077 = vmax.f32 %v968, 0.0
        %v1078 = vmax.f32 %v1022, 0.0
        %v1079 = vmax.f32 %v973, 0.0
        %v1080 = vmax.f32 %v1023, 0.0
        %v1081 = vmax.f32 %v976, 0.0
        %v1082 = vmax.f32 %v1024, 0.0
        %v1083 = vmax.f32 %v981, 0.0
        %v1084 = vmax.f32 %v1025, 0.0
        %v1085 = vmax.f32 %v984, 0.0
        %v1086 = vmax.f32 %v1026, 0.0
        %v1087 = vstv %s417
        %v1088 = vadd.s32 %v1087, 1
        %v1089 = vadd.s32 %v1087, 2
        %v1090 = vadd.s32 %v1087, 3
        %v1091 = vadd.s32 %v1087, 4
        %v1092 = vadd.s32 %v1087, 5
        %v1093 = vadd.s32 %v1087, 6
        %v1094 = vadd.s32 %v1087, 7
        %v1095 = vlaneseq
        %v1096 = vshrl.u32 %v1095, 7
        %v1097 = vadd.s32 %v1096, 8
        %v1098 = vadd.s32 %v1096, 16
        %vm1099 = vcmp.ge.s32.totalorder %v1087, 2
        %vm1100 = vcmp.ge.s32.totalorder %v1088, 2
        %vm1101 = vcmp.ge.s32.totalorder %v1089, 2
        %vm1102 = vcmp.ge.s32.totalorder %v1090, 2
        %vm1103 = vcmp.ge.s32.totalorder %v1091, 2
        %vm1104 = vcmp.ge.s32.totalorder %v1092, 2
        %vm1105 = vcmp.ge.s32.totalorder %v1093, 2
        %vm1106 = vcmp.ge.s32.totalorder %v1094, 2
        %vm1107 = vcmp.lt.s32.totalorder %v1087, 18
        %vm1108 = vcmp.lt.s32.totalorder %v1088, 18
        %vm1109 = vcmp.lt.s32.totalorder %v1089, 18
        %vm1110 = vcmp.lt.s32.totalorder %v1090, 18
        %vm1111 = vcmp.lt.s32.totalorder %v1091, 18
        %vm1112 = vcmp.lt.s32.totalorder %v1092, 18
        %vm1113 = vcmp.lt.s32.totalorder %v1093, 18
        %vm1114 = vcmp.lt.s32.totalorder %v1094, 18
        %vm1115 = vmand %vm1099, %vm1107
        %vm1116 = vmand %vm1100, %vm1108
        %vm1117 = vmand %vm1101, %vm1109
        %vm1118 = vmand %vm1102, %vm1110
        %vm1119 = vmand %vm1103, %vm1111
        %vm1120 = vmand %vm1104, %vm1112
        %vm1121 = vmand %vm1105, %vm1113
        %vm1122 = vmand %vm1106, %vm1114
        %vm1123 = vcmp.ge.s32.totalorder %v1096, 2
        %vm1124 = vcmp.ge.s32.totalorder %v1097, 2
        %vm1125 = vcmp.ge.s32.totalorder %v1098, 2
        %vm1126 = vmand %vm1115, %vm1123
        %vm1127 = vmand %vm1115, %vm1124
        %vm1128 = vmand %vm1115, %vm1125
        %vm1129 = vmand %vm1116, %vm1123
        %vm1130 = vmand %vm1116, %vm1124
        %vm1131 = vmand %vm1116, %vm1125
        %vm1132 = vmand %vm1117, %vm1123
        %vm1133 = vmand %vm1117, %vm1124
        %vm1134 = vmand %vm1117, %vm1125
        %vm1135 = vmand %vm1118, %vm1123
        %vm1136 = vmand %vm1118, %vm1124
        %vm1137 = vmand %vm1118, %vm1125
        %vm1138 = vmand %vm1119, %vm1123
        %vm1139 = vmand %vm1119, %vm1124
        %vm1140 = vmand %vm1119, %vm1125
        %vm1141 = vmand %vm1120, %vm1123
        %vm1142 = vmand %vm1120, %vm1124
        %vm1143 = vmand %vm1120, %vm1125
        %vm1144 = vmand %vm1121, %vm1123
        %vm1145 = vmand %vm1121, %vm1124
        %vm1146 = vmand %vm1121, %vm1125
        %vm1147 = vmand %vm1122, %vm1123
        %vm1148 = vmand %vm1122, %vm1124
        %vm1149 = vmand %vm1122, %vm1125
        %vm1150 = vcmp.lt.s32.totalorder %v1096, 18
        %vm1151 = vcmp.lt.s32.totalorder %v1097, 18
        %vm1152 = vcmp.lt.s32.totalorder %v1098, 18
        %vm1153 = vmand %vm1126, %vm1150
        %vm1154 = vmand %vm1127, %vm1151
        %vm1155 = vmand %vm1128, %vm1152
        %vm1156 = vmand %vm1129, %vm1150
        %vm1157 = vmand %vm1130, %vm1151
        %vm1158 = vmand %vm1131, %vm1152
        %vm1159 = vmand %vm1132, %vm1150
        %vm1160 = vmand %vm1133, %vm1151
        %vm1161 = vmand %vm1134, %vm1152
        %vm1162 = vmand %vm1135, %vm1150
        %vm1163 = vmand %vm1136, %vm1151
        %vm1164 = vmand %vm1137, %vm1152
        %vm1165 = vmand %vm1138, %vm1150
        %vm1166 = vmand %vm1139, %vm1151
        %vm1167 = vmand %vm1140, %vm1152
        %vm1168 = vmand %vm1141, %vm1150
        %vm1169 = vmand %vm1142, %vm1151
        %vm1170 = vmand %vm1143, %vm1152
        %vm1171 = vmand %vm1144, %vm1150
        %vm1172 = vmand %vm1145, %vm1151
        %vm1173 = vmand %vm1146, %vm1152
        %vm1174 = vmand %vm1147, %vm1150
        %vm1175 = vmand %vm1148, %vm1151
        %vm1176 = vmand %vm1149, %vm1152
        %v1177 = vsel %vm1153, 1, 0
        %v1178 = vsel %vm1154, 1, 0
        %v1179 = vsel %vm1155, 1, 0
        %v1180 = vsel %vm1156, 1, 0
        %v1181 = vsel %vm1157, 1, 0
        %v1182 = vsel %vm1158, 1, 0
        %v1183 = vsel %vm1159, 1, 0
        %v1184 = vsel %vm1160, 1, 0
        %v1185 = vsel %vm1161, 1, 0
        %v1186 = vsel %vm1162, 1, 0
        %v1187 = vsel %vm1163, 1, 0
        %v1188 = vsel %vm1164, 1, 0
        %v1189 = vsel %vm1165, 1, 0
        %v1190 = vsel %vm1166, 1, 0
        %v1191 = vsel %vm1167, 1, 0
        %v1192 = vsel %vm1168, 1, 0
        %v1193 = vsel %vm1169, 1, 0
        %v1194 = vsel %vm1170, 1, 0
        %v1195 = vsel %vm1171, 1, 0
        %v1196 = vsel %vm1172, 1, 0
        %v1197 = vsel %vm1173, 1, 0
        %v1198 = vsel %vm1174, 1, 0
        %v1199 = vsel %vm1175, 1, 0
        %v1200 = vsel %vm1176, 1, 0
        %vm1201 = vcmp.eq.s32.totalorder %v1177, 1
        %vm1202 = vcmp.eq.s32.totalorder %v1178, 1
        %vm1203 = vcmp.eq.s32.totalorder %v1179, 1
        %vm1204 = vcmp.eq.s32.totalorder %v1180, 1
        %vm1205 = vcmp.eq.s32.totalorder %v1181, 1
        %vm1206 = vcmp.eq.s32.totalorder %v1182, 1
        %vm1207 = vcmp.eq.s32.totalorder %v1183, 1
        %vm1208 = vcmp.eq.s32.totalorder %v1184, 1
        %vm1209 = vcmp.eq.s32.totalorder %v1185, 1
        %vm1210 = vcmp.eq.s32.totalorder %v1186, 1
        %vm1211 = vcmp.eq.s32.totalorder %v1187, 1
        %vm1212 = vcmp.eq.s32.totalorder %v1188, 1
        %vm1213 = vcmp.eq.s32.totalorder %v1189, 1
        %vm1214 = vcmp.eq.s32.totalorder %v1190, 1
        %vm1215 = vcmp.eq.s32.totalorder %v1191, 1
        %vm1216 = vcmp.eq.s32.totalorder %v1192, 1
        %vm1217 = vcmp.eq.s32.totalorder %v1193, 1
        %vm1218 = vcmp.eq.s32.totalorder %v1194, 1
        %vm1219 = vcmp.eq.s32.totalorder %v1195, 1
        %vm1220 = vcmp.eq.s32.totalorder %v1196, 1
        %vm1221 = vcmp.eq.s32.totalorder %v1197, 1
        %vm1222 = vcmp.eq.s32.totalorder %v1198, 1
        %vm1223 = vcmp.eq.s32.totalorder %v1199, 1
        %vm1224 = vcmp.eq.s32.totalorder %v1200, 1
        %v1257 = vcombine.low %v1047, %v1048
        %v1258 = vcombine.low %v1049, %v1050
        %v1259 = vcombine.low %v1052, %v1053
        %v1260 = vcombine.low %v1054, %v1055
        %v1261 = vcombine.low %v1057, %v1058
        %v1262 = vcombine.low %v1059, %v1060
        %v1263 = vcombine.low %v1062, %v1063
        %v1264 = vcombine.low %v1064, %v1065
        %v1265 = vcombine.low %v1067, %v1068
        %v1266 = vcombine.low %v1069, %v1070
        %v1267 = vcombine.low %v1072, %v1073
        %v1268 = vcombine.low %v1074, %v1075
        %v1269 = vcombine.low %v1077, %v1078
        %v1270 = vcombine.low %v1079, %v1080
        %v1271 = vcombine.low %v1082, %v1083
        %v1272 = vcombine.low %v1084, %v1085
        %v1289 = vsel %vm1201, %v1257, 0.0
        %v1290 = vsel %vm1202, %v1258, 0.0
        %v1291 = vsel %vm1203, %v1051, 0.0
        %v1292 = vsel %vm1204, %v1259, 0.0
        %v1293 = vsel %vm1205, %v1260, 0.0
        %v1294 = vsel %vm1206, %v1056, 0.0
        %v1295 = vsel %vm1207, %v1261, 0.0
        %v1296 = vsel %vm1208, %v1262, 0.0
        %v1297 = vsel %vm1209, %v1061, 0.0
        %v1298 = vsel %vm1210, %v1263, 0.0
        %v1299 = vsel %vm1211, %v1264, 0.0
        %v1300 = vsel %vm1212, %v1066, 0.0
        %v1301 = vsel %vm1213, %v1265, 0.0
        %v1302 = vsel %vm1214, %v1266, 0.0
        %v1303 = vsel %vm1215, %v1071, 0.0
        %v1304 = vsel %vm1216, %v1267, 0.0
        %v1305 = vsel %vm1217, %v1268, 0.0
        %v1306 = vsel %vm1218, %v1076, 0.0
        %v1307 = vsel %vm1219, %v1269, 0.0
        %v1308 = vsel %vm1220, %v1270, 0.0
        %v1309 = vsel %vm1221, %v1081, 0.0
        %v1310 = vsel %vm1222, %v1271, 0.0
        %v1311 = vsel %vm1223, %v1272, 0.0
        %v1312 = vsel %vm1224, %v1086, 0.0
        %v1313 = vpack.c.bf16 %v1290, %v1289
        %v1314 = vpack.c.bf16 %v1291, %v1291
        %v1315 = vpack.c.bf16 %v1293, %v1292
        %v1316 = vpack.c.bf16 %v1294, %v1294
        %v1317 = vpack.c.bf16 %v1296, %v1295
        %v1318 = vpack.c.bf16 %v1297, %v1297
        %v1319 = vpack.c.bf16 %v1299, %v1298
        %v1320 = vpack.c.bf16 %v1300, %v1300
        %v1321 = vpack.c.bf16 %v1302, %v1301
        %v1322 = vpack.c.bf16 %v1303, %v1303
        %v1323 = vpack.c.bf16 %v1305, %v1304
        %v1324 = vpack.c.bf16 %v1306, %v1306
        %v1325 = vpack.c.bf16 %v1308, %v1307
        %v1326 = vpack.c.bf16 %v1309, %v1309
        %v1327 = vpack.c.bf16 %v1311, %v1310
        %v1328 = vpack.c.bf16 %v1312, %v1312
        %v1345 = vunpack.c.l.b16 %v1313
        %v1346 = vunpack.c.h.b16 %v1313
        %v1347 = vunpack.c.l.b16 %v1314
        %v1348 = vunpack.c.l.b16 %v1315
        %v1349 = vunpack.c.h.b16 %v1315
        %v1350 = vunpack.c.l.b16 %v1316
        %v1351 = vunpack.c.l.b16 %v1317
        %v1352 = vunpack.c.h.b16 %v1317
        %v1353 = vunpack.c.l.b16 %v1318
        %v1354 = vunpack.c.l.b16 %v1319
        %v1355 = vunpack.c.h.b16 %v1319
        %v1356 = vunpack.c.l.b16 %v1320
        %v1357 = vunpack.c.l.b16 %v1321
        %v1358 = vunpack.c.h.b16 %v1321
        %v1359 = vunpack.c.l.b16 %v1322
        %v1360 = vunpack.c.l.b16 %v1323
        %v1361 = vunpack.c.h.b16 %v1323
        %v1362 = vunpack.c.l.b16 %v1324
        %v1363 = vunpack.c.l.b16 %v1325
        %v1364 = vunpack.c.h.b16 %v1325
        %v1365 = vunpack.c.l.b16 %v1326
        %v1366 = vunpack.c.l.b16 %v1327
        %v1367 = vunpack.c.h.b16 %v1327
        %v1368 = vunpack.c.l.b16 %v1328
        %v1369 = vpack.c.b16 %v1345, %v1345
        %v1370 = vpack.c.b16 %v1346, %v1346
        %v1371 = vpack.c.b16 %v1347, %v1347
        %v1372 = vpack.c.b16 %v1348, %v1348
        %v1373 = vpack.c.b16 %v1349, %v1349
        %v1374 = vpack.c.b16 %v1350, %v1350
        %v1375 = vpack.c.b16 %v1351, %v1351
        %v1376 = vpack.c.b16 %v1352, %v1352
        %v1377 = vpack.c.b16 %v1353, %v1353
        %v1378 = vpack.c.b16 %v1354, %v1354
        %v1379 = vpack.c.b16 %v1355, %v1355
        %v1380 = vpack.c.b16 %v1356, %v1356
        %v1381 = vpack.c.b16 %v1357, %v1357
        %v1382 = vpack.c.b16 %v1358, %v1358
        %v1383 = vpack.c.b16 %v1359, %v1359
        %v1384 = vpack.c.b16 %v1360, %v1360
        %v1385 = vpack.c.b16 %v1361, %v1361
        %v1386 = vpack.c.b16 %v1362, %v1362
        %v1387 = vpack.c.b16 %v1363, %v1363
        %v1388 = vpack.c.b16 %v1364, %v1364
        %v1389 = vpack.c.b16 %v1365, %v1365
        %v1390 = vpack.c.b16 %v1366, %v1366
        %v1391 = vpack.c.b16 %v1367, %v1367
        %v1392 = vpack.c.b16 %v1368, %v1368
        %vm1417 = vcmask 27648
        %1418 = vst.msk [vmem:[#allocation2] sm:$0xf] %vm1417, %v1369
        %1419 = vst.msk [vmem:[#allocation2 + $0x4] sm:$0xf] %vm1417, %v1370
        %vm1420 = vcmask 25600
        %1421 = vst.msk [vmem:[#allocation2 + $0x8] sm:$0x3] %vm1420, %v1371
        %1422 = vst.msk [vmem:[#allocation2 + $0xc] sm:$0xf] %vm1417, %v1372
        %1423 = vst.msk [vmem:[#allocation2 + $0x10] sm:$0xf] %vm1417, %v1373
        %1424 = vst.msk [vmem:[#allocation2 + $0x14] sm:$0x3] %vm1420, %v1374
        %1425 = vst.msk [vmem:[#allocation2 + $0x18] sm:$0xf] %vm1417, %v1375
        %1426 = vst.msk [vmem:[#allocation2 + $0x1c] sm:$0xf] %vm1417, %v1376
        %1427 = vst.msk [vmem:[#allocation2 + $0x20] sm:$0x3] %vm1420, %v1377
        %1428 = vst.msk [vmem:[#allocation2 + $0x24] sm:$0xf] %vm1417, %v1378
        %1429 = vst.msk [vmem:[#allocation2 + $0x28] sm:$0xf] %vm1417, %v1379
        %1430 = vst.msk [vmem:[#allocation2 + $0x2c] sm:$0x3] %vm1420, %v1380
        %1431 = vst.msk [vmem:[#allocation2 + $0x30] sm:$0xf] %vm1417, %v1381
        %1432 = vst.msk [vmem:[#allocation2 + $0x34] sm:$0xf] %vm1417, %v1382
        %1433 = vst.msk [vmem:[#allocation2 + $0x38] sm:$0x3] %vm1420, %v1383
        %1434 = vst.msk [vmem:[#allocation2 + $0x3c] sm:$0xf] %vm1417, %v1384
        %1435 = vst.msk [vmem:[#allocation2 + $0x40] sm:$0xf] %vm1417, %v1385
        %1436 = vst.msk [vmem:[#allocation2 + $0x44] sm:$0x3] %vm1420, %v1386
        %1437 = vst.msk [vmem:[#allocation2 + $0x48] sm:$0xf] %vm1417, %v1387
        %1438 = vst.msk [vmem:[#allocation2 + $0x4c] sm:$0xf] %vm1417, %v1388
        %1439 = vst.msk [vmem:[#allocation2 + $0x50] sm:$0x3] %vm1420, %v1389
        %1440 = vst.msk [vmem:[#allocation2 + $0x54] sm:$0xf] %vm1417, %v1390
        %1441 = vst.msk [vmem:[#allocation2 + $0x58] sm:$0xf] %vm1417, %v1391
        %1442 = vst.msk [vmem:[#allocation2 + $0x5c] sm:$0x3] %vm1420, %v1392
        %v1443 = vld [vmem:[%s411] sm:$0xf]
        %v1444 = vld [vmem:[%s411 + $0x4] sm:$0xf]
        %v1445 = vld [vmem:[%s411 + $0x8] sm:$0x3]
        %v1446 = vld [vmem:[%s411 + $0xc] sm:$0xf]
        %v1447 = vld [vmem:[%s411 + $0x10] sm:$0xf]
        %v1448 = vld [vmem:[%s411 + $0x14] sm:$0x3]
        %v1449 = vld [vmem:[%s411 + $0x18] sm:$0xf]
        %v1450 = vld [vmem:[%s411 + $0x1c] sm:$0xf]
        %v1451 = vld [vmem:[%s411 + $0x20] sm:$0x3]
        %v1452 = vld [vmem:[%s411 + $0x24] sm:$0xf]
        %v1453 = vld [vmem:[%s411 + $0x28] sm:$0xf]
        %v1454 = vld [vmem:[%s411 + $0x2c] sm:$0x3]
        %v1455 = vld [vmem:[%s2] sm:$0xf]
        %v1456 = vld [vmem:[%s2 + $0x4] sm:$0xf]
        %v1470 = vunpack.c.l.s4 1983009808
        %v1471 = vunpack.c.0.s8 %v1470
        %v1472 = vlaneseq
        %v1473 = vshrl.u32 %v1472, 7
        %v1474 = vsub.s32 %v1471, %v1473
        %v1475 = vrot.slane %v1443, %v1474
        %v1476 = vcombine.high %v1475, %v1475
        %v1478 = vunpack.c.l.s4 1983009808
        %v1479 = vunpack.c.0.s8 %v1478
        %v1480 = vlaneseq
        %v1481 = vshrl.u32 %v1480, 7
        %v1482 = vsub.s32 %v1479, %v1481
        %v1483 = vrot.slane %v1444, %v1482
        %v1484 = vcombine.high %v1483, %v1483
        %v1486 = vunpack.c.l.s4 1983009808
        %v1487 = vunpack.c.0.s8 %v1486
        %v1488 = vlaneseq
        %v1489 = vshrl.u32 %v1488, 7
        %v1490 = vsub.s32 %v1487, %v1489
        %v1491 = vrot.slane %v1445, %v1490
        %v1493 = vunpack.c.l.s4 1983009808
        %v1494 = vunpack.c.0.s8 %v1493
        %v1495 = vlaneseq
        %v1496 = vshrl.u32 %v1495, 7
        %v1497 = vsub.s32 %v1494, %v1496
        %v1498 = vrot.slane %v1446, %v1497
        %v1499 = vcombine.high %v1498, %v1498
        %v1501 = vunpack.c.l.s4 1983009808
        %v1502 = vunpack.c.0.s8 %v1501
        %v1503 = vlaneseq
        %v1504 = vshrl.u32 %v1503, 7
        %v1505 = vsub.s32 %v1502, %v1504
        %v1506 = vrot.slane %v1447, %v1505
        %v1507 = vcombine.high %v1506, %v1506
        %v1509 = vunpack.c.l.s4 1983009808
        %v1510 = vunpack.c.0.s8 %v1509
        %v1511 = vlaneseq
        %v1512 = vshrl.u32 %v1511, 7
        %v1513 = vsub.s32 %v1510, %v1512
        %v1514 = vrot.slane %v1448, %v1513
        %v1516 = vunpack.c.l.s4 1983009808
        %v1517 = vunpack.c.0.s8 %v1516
        %v1518 = vlaneseq
        %v1519 = vshrl.u32 %v1518, 7
        %v1520 = vsub.s32 %v1517, %v1519
        %v1521 = vrot.slane %v1449, %v1520
        %v1522 = vcombine.high %v1521, %v1521
        %v1524 = vunpack.c.l.s4 1983009808
        %v1525 = vunpack.c.0.s8 %v1524
        %v1526 = vlaneseq
        %v1527 = vshrl.u32 %v1526, 7
        %v1528 = vsub.s32 %v1525, %v1527
        %v1529 = vrot.slane %v1450, %v1528
        %v1530 = vcombine.high %v1529, %v1529
        %v1532 = vunpack.c.l.s4 1983009808
        %v1533 = vunpack.c.0.s8 %v1532
        %v1534 = vlaneseq
        %v1535 = vshrl.u32 %v1534, 7
        %v1536 = vsub.s32 %v1533, %v1535
        %v1537 = vrot.slane %v1451, %v1536
        %v1539 = vunpack.c.l.s4 1983009808
        %v1540 = vunpack.c.0.s8 %v1539
        %v1541 = vlaneseq
        %v1542 = vshrl.u32 %v1541, 7
        %v1543 = vsub.s32 %v1540, %v1542
        %v1544 = vrot.slane %v1452, %v1543
        %v1545 = vcombine.high %v1544, %v1544
        %v1547 = vunpack.c.l.s4 1983009808
        %v1548 = vunpack.c.0.s8 %v1547
        %v1549 = vlaneseq
        %v1550 = vshrl.u32 %v1549, 7
        %v1551 = vsub.s32 %v1548, %v1550
        %v1552 = vrot.slane %v1453, %v1551
        %v1553 = vcombine.high %v1552, %v1552
        %v1555 = vunpack.c.l.s4 1983009808
        %v1556 = vunpack.c.0.s8 %v1555
        %v1557 = vlaneseq
        %v1558 = vshrl.u32 %v1557, 7
        %v1559 = vsub.s32 %v1556, %v1558
        %v1560 = vrot.slane %v1454, %v1559
        %v1561 = vcombine.low %v1475, %v1476
        %v1562 = vcombine.low %v1483, %v1484
        %v1564 = vunpack.c.l.s4 1983009808
        %v1565 = vunpack.c.0.s8 %v1564
        %v1566 = vlaneseq
        %v1567 = vshrl.u32 %v1566, 7
        %v1568 = vsub.s32 %v1565, %v1567
        %v1569 = vrot.slane %v1561, %v1568
        %v1571 = vunpack.c.l.s4 1983009808
        %v1572 = vunpack.c.0.s8 %v1571
        %v1573 = vlaneseq
        %v1574 = vshrl.u32 %v1573, 7
        %v1575 = vsub.s32 %v1572, %v1574
        %v1576 = vrot.slane %v1562, %v1575
        %v1577 = vcombine.low %v1569, %v1576
        %v1578 = vcombine.low %v1491, %v1498
        %v1579 = vcombine.low %v1499, %v1506
        %v1581 = vunpack.c.l.s4 1983009808
        %v1582 = vunpack.c.0.s8 %v1581
        %v1583 = vlaneseq
        %v1584 = vshrl.u32 %v1583, 7
        %v1585 = vsub.s32 %v1582, %v1584
        %v1586 = vrot.slane %v1578, %v1585
        %v1588 = vunpack.c.l.s4 1983009808
        %v1589 = vunpack.c.0.s8 %v1588
        %v1590 = vlaneseq
        %v1591 = vshrl.u32 %v1590, 7
        %v1592 = vsub.s32 %v1589, %v1591
        %v1593 = vrot.slane %v1579, %v1592
        %v1594 = vcombine.low %v1586, %v1593
        %v1595 = vcombine.low %v1507, %v1514
        %v1596 = vcombine.low %v1521, %v1522
        %v1598 = vunpack.c.l.s4 1983009808
        %v1599 = vunpack.c.0.s8 %v1598
        %v1600 = vlaneseq
        %v1601 = vshrl.u32 %v1600, 7
        %v1602 = vsub.s32 %v1599, %v1601
        %v1603 = vrot.slane %v1595, %v1602
        %v1605 = vunpack.c.l.s4 1983009808
        %v1606 = vunpack.c.0.s8 %v1605
        %v1607 = vlaneseq
        %v1608 = vshrl.u32 %v1607, 7
        %v1609 = vsub.s32 %v1606, %v1608
        %v1610 = vrot.slane %v1596, %v1609
        %v1611 = vcombine.low %v1603, %v1610
        %v1612 = vcombine.low %v1529, %v1530
        %v1613 = vcombine.low %v1537, %v1544
        %v1615 = vunpack.c.l.s4 1983009808
        %v1616 = vunpack.c.0.s8 %v1615
        %v1617 = vlaneseq
        %v1618 = vshrl.u32 %v1617, 7
        %v1619 = vsub.s32 %v1616, %v1618
        %v1620 = vrot.slane %v1612, %v1619
        %v1622 = vunpack.c.l.s4 1983009808
        %v1623 = vunpack.c.0.s8 %v1622
        %v1624 = vlaneseq
        %v1625 = vshrl.u32 %v1624, 7
        %v1626 = vsub.s32 %v1623, %v1625
        %v1627 = vrot.slane %v1613, %v1626
        %v1628 = vcombine.low %v1620, %v1627
        %v1629 = vcombine.low %v1545, %v1552
        %v1630 = vcombine.low %v1553, %v1560
        %v1632 = vunpack.c.l.s4 1983009808
        %v1633 = vunpack.c.0.s8 %v1632
        %v1634 = vlaneseq
        %v1635 = vshrl.u32 %v1634, 7
        %v1636 = vsub.s32 %v1633, %v1635
        %v1637 = vrot.slane %v1629, %v1636
        %v1639 = vunpack.c.l.s4 1983009808
        %v1640 = vunpack.c.0.s8 %v1639
        %v1641 = vlaneseq
        %v1642 = vshrl.u32 %v1641, 7
        %v1643 = vsub.s32 %v1640, %v1642
        %v1644 = vrot.slane %v1630, %v1643
        %v1645 = vcombine.low %v1637, %v1644
        %v1648 = vunpack.c.l.b16 %v1455
        %v1649 = vunpack.c.l.b16 %v1456
        %v1650 = vpack.c.b16 %v1649, %v1648
        %v1653 = vsel %vm843, %v1577, 0
        %v1656 = vsel %vm843, %v1594, 0
        %v1659 = vsel %vm843, %v1611, 0
        %v1662 = vsel %vm843, %v1628, 0
        %v1665 = vsel %vm843, %v1645, 0
        %1667 = vmatprep.subr.bf16.mxu0 0
        %1668 = vmatpush1.bf16.msra.mxu0 0
        %1669 = vmatprep.subr.bf16.mxu0 0
        %1670 = vmatpush1.bf16.msra.mxu0 0
        %1671 = vmatprep.subr.bf16.mxu0 0
        %1672 = vmatpush1.bf16.msra.mxu0 0
        %1673 = vmatprep.subr.bf16.mxu0 0
        %1674 = vmatpush1.bf16.msra.mxu0 0
        %1675 = vmatprep.subr.bf16.mxu0 0
        %1676 = vmatpush1.bf16.msra.mxu0 0
        %1677 = vmatprep.subr.bf16.mxu0 0
        %1678 = vmatpush1.bf16.msra.mxu0 0
        %1679 = vmatprep.subr.bf16.mxu0 0
        %1680 = vmatpush1.bf16.msra.mxu0 0
        %1681 = vmatprep.subr.bf16.mxu0 0
        %1682 = vmatpush1.bf16.msra.mxu0 %v1650
        %1683 = vmatprep.subr.bf16.mxu0 0
        %1684 = vmatpush2.bf16.msra.mxu0 0
        %1685 = vmatprep.subr.bf16.mxu0 0
        %1686 = vmatpush2.bf16.msra.mxu0 0
        %1687 = vmatprep.subr.bf16.mxu0 0
        %1688 = vmatpush2.bf16.msra.mxu0 0
        %1689 = vmatprep.subr.bf16.mxu0 0
        %1690 = vmatpush2.bf16.msra.mxu0 0
        %1691 = vmatprep.subr.bf16.mxu0 0
        %1692 = vmatpush2.bf16.msra.mxu0 0
        %1693 = vmatprep.subr.bf16.mxu0 0
        %1694 = vmatpush2.bf16.msra.mxu0 0
        %1695 = vmatprep.subr.bf16.mxu0 0
        %1696 = vmatpush2.bf16.msra.mxu0 0
        %1697 = vmatprep.subr.bf16.mxu0 0
        %1698 = vmatpush2.bf16.msra.mxu0 0
        %1699 = vmatprep.mubr.bf16.mxu0 0
        %1700 = vmatmul.mubr.bf16.gmra.mxu0 %v1653
        %v1701 = vpop.f32.mrf.mxu0
        %v1702 = vadd.f32 %v837, %v1701
        %v1703 = vpop.f32.mrf.mxu0
        %v1704 = vpop.f32.mrf.mxu0
        %v1705 = vadd.f32 %v837, %v1704
        %v1706 = vpop.f32.mrf.mxu0
        %1707 = vmatprep.mubr.bf16.mxu0 0
        %1708 = vmatmul.mubr.bf16.gmra.mxu0 %v1656
        %v1709 = vpop.f32.mrf.mxu0
        %v1710 = vadd.f32 %v838, %v1709
        %v1711 = vpop.f32.mrf.mxu0
        %v1712 = vpop.f32.mrf.mxu0
        %v1713 = vadd.f32 %v839, %v1712
        %v1714 = vpop.f32.mrf.mxu0
        %1715 = vmatprep.mubr.bf16.mxu0 0
        %1716 = vmatmul.mubr.bf16.gmra.mxu0 %v1659
        %v1717 = vpop.f32.mrf.mxu0
        %v1718 = vadd.f32 %v839, %v1717
        %v1719 = vpop.f32.mrf.mxu0
        %v1720 = vpop.f32.mrf.mxu0
        %v1721 = vadd.f32 %v837, %v1720
        %v1722 = vpop.f32.mrf.mxu0
        %1723 = vmatprep.mubr.bf16.mxu0 0
        %1724 = vmatmul.mubr.bf16.gmra.mxu0 %v1662
        %v1725 = vpop.f32.mrf.mxu0
        %v1726 = vadd.f32 %v837, %v1725
        %v1727 = vpop.f32.mrf.mxu0
        %v1728 = vpop.f32.mrf.mxu0
        %v1729 = vadd.f32 %v838, %v1728
        %v1730 = vpop.f32.mrf.mxu0
        %1731 = vmatprep.mubr.bf16.mxu0 0
        %1732 = vmatmul.mubr.bf16.gmra.mxu0 %v1665
        %v1733 = vpop.f32.mrf.mxu0
        %v1734 = vadd.f32 %v839, %v1733
        %v1735 = vpop.f32.mrf.mxu0
        %v1736 = vpop.f32.mrf.mxu0
        %v1737 = vadd.f32 %v839, %v1736
        %v1738 = vpop.f32.mrf.mxu0
        %1739 = vdwg.mxu0
        %v1750 = vcombine.high %v1702, %v1702
        %v1751 = vcombine.high %v1705, %v1705
        %v1752 = vcombine.high %v1710, %v1710
        %v1753 = vcombine.high %v1713, %v1713
        %v1754 = vcombine.high %v1718, %v1718
        %v1755 = vcombine.high %v1721, %v1721
        %v1756 = vcombine.high %v1726, %v1726
        %v1757 = vcombine.high %v1729, %v1729
        %v1758 = vcombine.high %v1734, %v1734
        %v1759 = vcombine.high %v1737, %v1737
        %v1770 = vmax.f32 %v1702, 0.0
        %v1771 = vmax.f32 %v1750, 0.0
        %v1772 = vmax.f32 %v1705, 0.0
        %v1773 = vmax.f32 %v1751, 0.0
        %v1774 = vmax.f32 %v1710, 0.0
        %v1775 = vmax.f32 %v1752, 0.0
        %v1776 = vmax.f32 %v1713, 0.0
        %v1777 = vmax.f32 %v1753, 0.0
        %v1778 = vmax.f32 %v1718, 0.0
        %v1779 = vmax.f32 %v1754, 0.0
        %v1780 = vmax.f32 %v1721, 0.0
        %v1781 = vmax.f32 %v1755, 0.0
        %v1782 = vmax.f32 %v1726, 0.0
        %v1783 = vmax.f32 %v1756, 0.0
        %v1784 = vmax.f32 %v1729, 0.0
        %v1785 = vmax.f32 %v1757, 0.0
        %v1786 = vmax.f32 %v1734, 0.0
        %v1787 = vmax.f32 %v1758, 0.0
        %v1788 = vmax.f32 %v1737, 0.0
        %v1789 = vmax.f32 %v1759, 0.0
        %s1790 = sadd.s32 %s417, 8
        %v1791 = vstv %s1790
        %v1792 = vadd.s32 %v1791, 1
        %v1793 = vadd.s32 %v1791, 2
        %v1794 = vadd.s32 %v1791, 3
        %vm1795 = vcmp.ge.s32.totalorder %v1791, 2
        %vm1796 = vcmp.ge.s32.totalorder %v1792, 2
        %vm1797 = vcmp.ge.s32.totalorder %v1793, 2
        %vm1798 = vcmp.ge.s32.totalorder %v1794, 2
        %vm1799 = vcmp.lt.s32.totalorder %v1791, 18
        %vm1800 = vcmp.lt.s32.totalorder %v1792, 18
        %vm1801 = vcmp.lt.s32.totalorder %v1793, 18
        %vm1802 = vcmp.lt.s32.totalorder %v1794, 18
        %vm1803 = vmand %vm1795, %vm1799
        %vm1804 = vmand %vm1796, %vm1800
        %vm1805 = vmand %vm1797, %vm1801
        %vm1806 = vmand %vm1798, %vm1802
        %vm1807 = vmand %vm1803, %vm1123
        %vm1808 = vmand %vm1803, %vm1124
        %vm1809 = vmand %vm1803, %vm1125
        %vm1810 = vmand %vm1804, %vm1123
        %vm1811 = vmand %vm1804, %vm1124
        %vm1812 = vmand %vm1804, %vm1125
        %vm1813 = vmand %vm1805, %vm1123
        %vm1814 = vmand %vm1805, %vm1124
        %vm1815 = vmand %vm1805, %vm1125
        %vm1816 = vmand %vm1806, %vm1123
        %vm1817 = vmand %vm1806, %vm1124
        %vm1818 = vmand %vm1806, %vm1125
        %vm1819 = vmand %vm1807, %vm1150
        %vm1820 = vmand %vm1808, %vm1151
        %vm1821 = vmand %vm1809, %vm1152
        %vm1822 = vmand %vm1810, %vm1150
        %vm1823 = vmand %vm1811, %vm1151
        %vm1824 = vmand %vm1812, %vm1152
        %vm1825 = vmand %vm1813, %vm1150
        %vm1826 = vmand %vm1814, %vm1151
        %vm1827 = vmand %vm1815, %vm1152
        %vm1828 = vmand %vm1816, %vm1150
        %vm1829 = vmand %vm1817, %vm1151
        %vm1830 = vmand %vm1818, %vm1152
        %v1831 = vsel %vm1819, 1, 0
        %v1832 = vsel %vm1820, 1, 0
        %v1833 = vsel %vm1821, 1, 0
        %v1834 = vsel %vm1822, 1, 0
        %v1835 = vsel %vm1823, 1, 0
        %v1836 = vsel %vm1824, 1, 0
        %v1837 = vsel %vm1825, 1, 0
        %v1838 = vsel %vm1826, 1, 0
        %v1839 = vsel %vm1827, 1, 0
        %v1840 = vsel %vm1828, 1, 0
        %v1841 = vsel %vm1829, 1, 0
        %v1842 = vsel %vm1830, 1, 0
        %vm1843 = vcmp.eq.s32.totalorder %v1831, 1
        %vm1844 = vcmp.eq.s32.totalorder %v1832, 1
        %vm1845 = vcmp.eq.s32.totalorder %v1833, 1
        %vm1846 = vcmp.eq.s32.totalorder %v1834, 1
        %vm1847 = vcmp.eq.s32.totalorder %v1835, 1
        %vm1848 = vcmp.eq.s32.totalorder %v1836, 1
        %vm1849 = vcmp.eq.s32.totalorder %v1837, 1
        %vm1850 = vcmp.eq.s32.totalorder %v1838, 1
        %vm1851 = vcmp.eq.s32.totalorder %v1839, 1
        %vm1852 = vcmp.eq.s32.totalorder %v1840, 1
        %vm1853 = vcmp.eq.s32.totalorder %v1841, 1
        %vm1854 = vcmp.eq.s32.totalorder %v1842, 1
        %v1871 = vcombine.low %v1770, %v1771
        %v1872 = vcombine.low %v1772, %v1773
        %v1873 = vcombine.low %v1775, %v1776
        %v1874 = vcombine.low %v1777, %v1778
        %v1875 = vcombine.low %v1780, %v1781
        %v1876 = vcombine.low %v1782, %v1783
        %v1877 = vcombine.low %v1785, %v1786
        %v1878 = vcombine.low %v1787, %v1788
        %v1887 = vsel %vm1843, %v1871, 0.0
        %v1888 = vsel %vm1844, %v1872, 0.0
        %v1889 = vsel %vm1845, %v1774, 0.0
        %v1890 = vsel %vm1846, %v1873, 0.0
        %v1891 = vsel %vm1847, %v1874, 0.0
        %v1892 = vsel %vm1848, %v1779, 0.0
        %v1893 = vsel %vm1849, %v1875, 0.0
        %v1894 = vsel %vm1850, %v1876, 0.0
        %v1895 = vsel %vm1851, %v1784, 0.0
        %v1896 = vsel %vm1852, %v1877, 0.0
        %v1897 = vsel %vm1853, %v1878, 0.0
        %v1898 = vsel %vm1854, %v1789, 0.0
        %v1899 = vpack.c.bf16 %v1888, %v1887
        %v1900 = vpack.c.bf16 %v1889, %v1889
        %v1901 = vpack.c.bf16 %v1891, %v1890
        %v1902 = vpack.c.bf16 %v1892, %v1892
        %v1903 = vpack.c.bf16 %v1894, %v1893
        %v1904 = vpack.c.bf16 %v1895, %v1895
        %v1905 = vpack.c.bf16 %v1897, %v1896
        %v1906 = vpack.c.bf16 %v1898, %v1898
        %v1915 = vunpack.c.l.b16 %v1899
        %v1916 = vunpack.c.h.b16 %v1899
        %v1917 = vunpack.c.l.b16 %v1900
        %v1918 = vunpack.c.l.b16 %v1901
        %v1919 = vunpack.c.h.b16 %v1901
        %v1920 = vunpack.c.l.b16 %v1902
        %v1921 = vunpack.c.l.b16 %v1903
        %v1922 = vunpack.c.h.b16 %v1903
        %v1923 = vunpack.c.l.b16 %v1904
        %v1924 = vunpack.c.l.b16 %v1905
        %v1925 = vunpack.c.h.b16 %v1905
        %v1926 = vunpack.c.l.b16 %v1906
        %v1927 = vpack.c.b16 %v1915, %v1915
        %v1928 = vpack.c.b16 %v1916, %v1916
        %v1929 = vpack.c.b16 %v1917, %v1917
        %v1930 = vpack.c.b16 %v1918, %v1918
        %v1931 = vpack.c.b16 %v1919, %v1919
        %v1932 = vpack.c.b16 %v1920, %v1920
        %v1933 = vpack.c.b16 %v1921, %v1921
        %v1934 = vpack.c.b16 %v1922, %v1922
        %v1935 = vpack.c.b16 %v1923, %v1923
        %v1936 = vpack.c.b16 %v1924, %v1924
        %v1937 = vpack.c.b16 %v1925, %v1925
        %v1938 = vpack.c.b16 %v1926, %v1926
        %s1951 = scalar_lea.vmem [#allocation2], 96
        %1952 = vst.msk [vmem:[%s1951] sm:$0xf] %vm1417, %v1927
        %1953 = vst.msk [vmem:[%s1951 + $0x4] sm:$0xf] %vm1417, %v1928
        %1954 = vst.msk [vmem:[%s1951 + $0x8] sm:$0x3] %vm1420, %v1929
        %1955 = vst.msk [vmem:[%s1951 + $0xc] sm:$0xf] %vm1417, %v1930
        %1956 = vst.msk [vmem:[%s1951 + $0x10] sm:$0xf] %vm1417, %v1931
        %1957 = vst.msk [vmem:[%s1951 + $0x14] sm:$0x3] %vm1420, %v1932
        %1958 = vst.msk [vmem:[%s1951 + $0x18] sm:$0xf] %vm1417, %v1933
        %1959 = vst.msk [vmem:[%s1951 + $0x1c] sm:$0xf] %vm1417, %v1934
        %1960 = vst.msk [vmem:[%s1951 + $0x20] sm:$0x3] %vm1420, %v1935
        %1961 = vst.msk [vmem:[%s1951 + $0x24] sm:$0xf] %vm1417, %v1936
        %1962 = vst.msk [vmem:[%s1951 + $0x28] sm:$0xf] %vm1417, %v1937
        %1963 = vst.msk [vmem:[%s1951 + $0x2c] sm:$0x3] %vm1420, %v1938
        %v1964 = vld [vmem:[#allocation2] sm:$0xf]
        %v1965 = vld [vmem:[#allocation2 + $0x4] sm:$0xf]
        %v1966 = vld [vmem:[#allocation2 + $0xc] sm:$0xf]
        %v1967 = vld [vmem:[#allocation2 + $0x10] sm:$0xf]
        %v1968 = vld [vmem:[#allocation2 + $0x18] sm:$0xf]
        %v1969 = vld [vmem:[#allocation2 + $0x1c] sm:$0xf]
        %v1970 = vld [vmem:[#allocation2 + $0x24] sm:$0xf]
        %v1971 = vld [vmem:[#allocation2 + $0x28] sm:$0xf]
        %v1972 = vld [vmem:[#allocation2 + $0x30] sm:$0xf]
        %v1973 = vld [vmem:[#allocation2 + $0x34] sm:$0xf]
        %v1974 = vld [vmem:[#allocation2 + $0x3c] sm:$0xf]
        %v1975 = vld [vmem:[#allocation2 + $0x40] sm:$0xf]
        %v1976 = vld [vmem:[#allocation2 + $0x48] sm:$0xf]
        %v1977 = vld [vmem:[#allocation2 + $0x4c] sm:$0xf]
        %v1978 = vld [vmem:[#allocation2 + $0x54] sm:$0xf]
        %v1979 = vld [vmem:[#allocation2 + $0x58] sm:$0xf]
        %v1980 = vld [vmem:[%s3] sm:$0x3]
        %v1997 = vunpack.c.l.b16 %v1964
        %v1998 = vunpack.c.l.b16 %v1965
        %v1999 = vunpack.c.l.b16 %v1966
        %v2000 = vunpack.c.l.b16 %v1967
        %v2001 = vunpack.c.l.b16 %v1968
        %v2002 = vunpack.c.l.b16 %v1969
        %v2003 = vunpack.c.l.b16 %v1970
        %v2004 = vunpack.c.l.b16 %v1971
        %v2005 = vunpack.c.l.b16 %v1972
        %v2006 = vunpack.c.l.b16 %v1973
        %v2007 = vunpack.c.l.b16 %v1974
        %v2008 = vunpack.c.l.b16 %v1975
        %v2009 = vunpack.c.l.b16 %v1976
        %v2010 = vunpack.c.l.b16 %v1977
        %v2011 = vunpack.c.l.b16 %v1978
        %v2012 = vunpack.c.l.b16 %v1979
        %v2013 = vpack.c.b16 %v1998, %v1997
        %v2014 = vpack.c.b16 %v2000, %v1999
        %v2015 = vpack.c.b16 %v2002, %v2001
        %v2016 = vpack.c.b16 %v2004, %v2003
        %v2017 = vpack.c.b16 %v2006, %v2005
        %v2018 = vpack.c.b16 %v2008, %v2007
        %v2019 = vpack.c.b16 %v2010, %v2009
        %v2020 = vpack.c.b16 %v2012, %v2011
        %vm2021 = vcmask 31744
        %v2023 = vsel %vm2021, %v2013, 0
        %v2026 = vsel %vm2021, %v2014, 0
        %v2029 = vsel %vm2021, %v2015, 0
        %v2032 = vsel %vm2021, %v2016, 0
        %v2035 = vsel %vm2021, %v2017, 0
        %v2038 = vsel %vm2021, %v2018, 0
        %v2041 = vsel %vm2021, %v2019, 0
        %v2044 = vsel %vm2021, %v2020, 0
        %vm2046 = vcmask 1041408
        %v2048 = vsel %vm2046, %v1980, 0
        %2050 = vmatprep.subr.bf16.mxu0 0
        %2051 = vmatpush1.bf16.msra.mxu0 0
        %2052 = vmatprep.subr.bf16.mxu0 0
        %2053 = vmatpush1.bf16.msra.mxu0 0
        %2054 = vmatprep.subr.bf16.mxu0 0
        %2055 = vmatpush1.bf16.msra.mxu0 0
        %2056 = vmatprep.subr.bf16.mxu0 0
        %2057 = vmatpush1.bf16.msra.mxu0 0
        %2058 = vmatprep.subr.bf16.mxu0 0
        %2059 = vmatpush1.bf16.msra.mxu0 0
        %2060 = vmatprep.subr.bf16.mxu0 0
        %2061 = vmatpush1.bf16.msra.mxu0 0
        %2062 = vmatprep.subr.bf16.mxu0 0
        %2063 = vmatpush1.bf16.msra.mxu0 0
        %2064 = vmatprep.subr.bf16.mxu0 0
        %2065 = vmatpush1.bf16.msra.mxu0 %v2048
        %2066 = vmatprep.subr.bf16.mxu0 0
        %2067 = vmatpush2.bf16.msra.mxu0 0
        %2068 = vmatprep.subr.bf16.mxu0 0
        %2069 = vmatpush2.bf16.msra.mxu0 0
        %2070 = vmatprep.subr.bf16.mxu0 0
        %2071 = vmatpush2.bf16.msra.mxu0 0
        %2072 = vmatprep.subr.bf16.mxu0 0
        %2073 = vmatpush2.bf16.msra.mxu0 0
        %2074 = vmatprep.subr.bf16.mxu0 0
        %2075 = vmatpush2.bf16.msra.mxu0 0
        %2076 = vmatprep.subr.bf16.mxu0 0
        %2077 = vmatpush2.bf16.msra.mxu0 0
        %2078 = vmatprep.subr.bf16.mxu0 0
        %2079 = vmatpush2.bf16.msra.mxu0 0
        %2080 = vmatprep.subr.bf16.mxu0 0
        %2081 = vmatpush2.bf16.msra.mxu0 0
        %2082 = vmatprep.mubr.bf16.mxu0 0
        %2083 = vmatmul.mubr.bf16.gmra.mxu0 %v2023
        %v2084 = vpop.f32.mrf.mxu0
        %v2085 = vadd.f32 0.0, %v2084
        %v2086 = vpop.f32.mrf.mxu0
        %v2087 = vpop.f32.mrf.mxu0
        %v2088 = vadd.f32 0.0, %v2087
        %v2089 = vpop.f32.mrf.mxu0
        %2090 = vmatprep.mubr.bf16.mxu0 0
        %2091 = vmatmul.mubr.bf16.gmra.mxu0 %v2026
        %v2092 = vpop.f32.mrf.mxu0
        %v2093 = vadd.f32 0.0, %v2092
        %v2094 = vpop.f32.mrf.mxu0
        %v2095 = vpop.f32.mrf.mxu0
        %v2096 = vadd.f32 0.0, %v2095
        %v2097 = vpop.f32.mrf.mxu0
        %2098 = vmatprep.mubr.bf16.mxu0 0
        %2099 = vmatmul.mubr.bf16.gmra.mxu0 %v2029
        %v2100 = vpop.f32.mrf.mxu0
        %v2101 = vadd.f32 0.0, %v2100
        %v2102 = vpop.f32.mrf.mxu0
        %v2103 = vpop.f32.mrf.mxu0
        %v2104 = vadd.f32 0.0, %v2103
        %v2105 = vpop.f32.mrf.mxu0
        %2106 = vmatprep.mubr.bf16.mxu0 0
        %2107 = vmatmul.mubr.bf16.gmra.mxu0 %v2032
        %v2108 = vpop.f32.mrf.mxu0
        %v2109 = vadd.f32 0.0, %v2108
        %v2110 = vpop.f32.mrf.mxu0
        %v2111 = vpop.f32.mrf.mxu0
        %v2112 = vadd.f32 0.0, %v2111
        %v2113 = vpop.f32.mrf.mxu0
        %2114 = vmatprep.mubr.bf16.mxu0 0
        %2115 = vmatmul.mubr.bf16.gmra.mxu0 %v2035
        %v2116 = vpop.f32.mrf.mxu0
        %v2117 = vadd.f32 0.0, %v2116
        %v2118 = vpop.f32.mrf.mxu0
        %v2119 = vpop.f32.mrf.mxu0
        %v2120 = vadd.f32 0.0, %v2119
        %v2121 = vpop.f32.mrf.mxu0
        %2122 = vmatprep.mubr.bf16.mxu0 0
        %2123 = vmatmul.mubr.bf16.gmra.mxu0 %v2038
        %v2124 = vpop.f32.mrf.mxu0
        %v2125 = vadd.f32 0.0, %v2124
        %v2126 = vpop.f32.mrf.mxu0
        %v2127 = vpop.f32.mrf.mxu0
        %v2128 = vadd.f32 0.0, %v2127
        %v2129 = vpop.f32.mrf.mxu0
        %2130 = vmatprep.mubr.bf16.mxu0 0
        %2131 = vmatmul.mubr.bf16.gmra.mxu0 %v2041
        %v2132 = vpop.f32.mrf.mxu0
        %v2133 = vadd.f32 0.0, %v2132
        %v2134 = vpop.f32.mrf.mxu0
        %v2135 = vpop.f32.mrf.mxu0
        %v2136 = vadd.f32 0.0, %v2135
        %v2137 = vpop.f32.mrf.mxu0
        %2138 = vmatprep.mubr.bf16.mxu0 0
        %2139 = vmatmul.mubr.bf16.gmra.mxu0 %v2044
        %v2140 = vpop.f32.mrf.mxu0
        %v2141 = vadd.f32 0.0, %v2140
        %v2142 = vpop.f32.mrf.mxu0
        %v2143 = vpop.f32.mrf.mxu0
        %v2144 = vadd.f32 0.0, %v2143
        %v2145 = vpop.f32.mrf.mxu0
        %2146 = vdwg.mxu0
        %2147 = vst.msk [vmem:[#allocation3] sm:$0xff] %vm2021, %v2085
        %2148 = vst.msk [vmem:[#allocation3 + $0x8] sm:$0xff] %vm2021, %v2088
        %2149 = vst.msk [vmem:[#allocation3 + $0x10] sm:$0xff] %vm2021, %v2093
        %2150 = vst.msk [vmem:[#allocation3 + $0x18] sm:$0xff] %vm2021, %v2096
        %2151 = vst.msk [vmem:[#allocation3 + $0x20] sm:$0xff] %vm2021, %v2101
        %2152 = vst.msk [vmem:[#allocation3 + $0x28] sm:$0xff] %vm2021, %v2104
        %2153 = vst.msk [vmem:[#allocation3 + $0x30] sm:$0xff] %vm2021, %v2109
        %2154 = vst.msk [vmem:[#allocation3 + $0x38] sm:$0xff] %vm2021, %v2112
        %2155 = vst.msk [vmem:[#allocation3 + $0x40] sm:$0xff] %vm2021, %v2117
        %2156 = vst.msk [vmem:[#allocation3 + $0x48] sm:$0xff] %vm2021, %v2120
        %2157 = vst.msk [vmem:[#allocation3 + $0x50] sm:$0xff] %vm2021, %v2125
        %2158 = vst.msk [vmem:[#allocation3 + $0x58] sm:$0xff] %vm2021, %v2128
        %2159 = vst.msk [vmem:[#allocation3 + $0x60] sm:$0xff] %vm2021, %v2133
        %2160 = vst.msk [vmem:[#allocation3 + $0x68] sm:$0xff] %vm2021, %v2136
        %2161 = vst.msk [vmem:[#allocation3 + $0x70] sm:$0xff] %vm2021, %v2141
        %2162 = vst.msk [vmem:[#allocation3 + $0x78] sm:$0xff] %vm2021, %v2144
        %v2163 = vld [vmem:[#allocation2] sm:$0xe]
        %v2164 = vld [vmem:[#allocation2 + $0x4] sm:$0xf]
        %v2165 = vld [vmem:[#allocation2 + $0x8] sm:$0x1]
        %v2166 = vld [vmem:[#allocation2 + $0xc] sm:$0xe]
        %v2167 = vld [vmem:[#allocation2 + $0x10] sm:$0xf]
        %v2168 = vld [vmem:[#allocation2 + $0x14] sm:$0x1]
        %v2169 = vld [vmem:[#allocation2 + $0x18] sm:$0xe]
        %v2170 = vld [vmem:[#allocation2 + $0x1c] sm:$0xf]
        %v2171 = vld [vmem:[#allocation2 + $0x20] sm:$0x1]
        %v2172 = vld [vmem:[#allocation2 + $0x24] sm:$0xe]
        %v2173 = vld [vmem:[#allocation2 + $0x28] sm:$0xf]
        %v2174 = vld [vmem:[#allocation2 + $0x2c] sm:$0x1]
        %v2175 = vld [vmem:[#allocation2 + $0x30] sm:$0xe]
        %v2176 = vld [vmem:[#allocation2 + $0x34] sm:$0xf]
        %v2177 = vld [vmem:[#allocation2 + $0x38] sm:$0x1]
        %v2178 = vld [vmem:[#allocation2 + $0x3c] sm:$0xe]
        %v2179 = vld [vmem:[#allocation2 + $0x40] sm:$0xf]
        %v2180 = vld [vmem:[#allocation2 + $0x44] sm:$0x1]
        %v2181 = vld [vmem:[#allocation2 + $0x48] sm:$0xe]
        %v2182 = vld [vmem:[#allocation2 + $0x4c] sm:$0xf]
        %v2183 = vld [vmem:[#allocation2 + $0x50] sm:$0x1]
        %v2184 = vld [vmem:[#allocation2 + $0x54] sm:$0xe]
        %v2185 = vld [vmem:[#allocation2 + $0x58] sm:$0xf]
        %v2186 = vld [vmem:[#allocation2 + $0x5c] sm:$0x1]
        %s2187 = scalar_lea.vmem %s3, 2
        %v2188 = vld [vmem:[%s2187] sm:$0x3]
        %vm2213 = vcmask 1042432
        %vm2214 = vcmask 1046532
        %vm2215 = vmor %vm2213, %vm2214
        %v2216 = vrot.slane %v2163, 5
        %v2217 = vrot.slane %v2216, 4
        %v2218 = vrot.slane %v2164, 5
        %v2219 = vsel %vm2215, %v2217, %v2218
        %v2220 = vrot.slane %v2218, 4
        %v2221 = vrot.slane %v2165, 5
        %v2222 = vsel %vm2215, %v2220, %v2221
        %v2223 = vrot.slane %v2166, 5
        %v2224 = vrot.slane %v2223, 4
        %v2225 = vrot.slane %v2167, 5
        %v2226 = vsel %vm2215, %v2224, %v2225
        %v2227 = vrot.slane %v2225, 4
        %v2228 = vrot.slane %v2168, 5
        %v2229 = vsel %vm2215, %v2227, %v2228
        %v2230 = vrot.slane %v2169, 5
        %v2231 = vrot.slane %v2230, 4
        %v2232 = vrot.slane %v2170, 5
        %v2233 = vsel %vm2215, %v2231, %v2232
        %v2234 = vrot.slane %v2232, 4
        %v2235 = vrot.slane %v2171, 5
        %v2236 = vsel %vm2215, %v2234, %v2235
        %v2237 = vrot.slane %v2172, 5
        %v2238 = vrot.slane %v2237, 4
        %v2239 = vrot.slane %v2173, 5
        %v2240 = vsel %vm2215, %v2238, %v2239
        %v2241 = vrot.slane %v2239, 4
        %v2242 = vrot.slane %v2174, 5
        %v2243 = vsel %vm2215, %v2241, %v2242
        %v2244 = vrot.slane %v2175, 5
        %v2245 = vrot.slane %v2244, 4
        %v2246 = vrot.slane %v2176, 5
        %v2247 = vsel %vm2215, %v2245, %v2246
        %v2248 = vrot.slane %v2246, 4
        %v2249 = vrot.slane %v2177, 5
        %v2250 = vsel %vm2215, %v2248, %v2249
        %v2251 = vrot.slane %v2178, 5
        %v2252 = vrot.slane %v2251, 4
        %v2253 = vrot.slane %v2179, 5
        %v2254 = vsel %vm2215, %v2252, %v2253
        %v2255 = vrot.slane %v2253, 4
        %v2256 = vrot.slane %v2180, 5
        %v2257 = vsel %vm2215, %v2255, %v2256
        %v2258 = vrot.slane %v2181, 5
        %v2259 = vrot.slane %v2258, 4
        %v2260 = vrot.slane %v2182, 5
        %v2261 = vsel %vm2215, %v2259, %v2260
        %v2262 = vrot.slane %v2260, 4
        %v2263 = vrot.slane %v2183, 5
        %v2264 = vsel %vm2215, %v2262, %v2263
        %v2265 = vrot.slane %v2184, 5
        %v2266 = vrot.slane %v2265, 4
        %v2267 = vrot.slane %v2185, 5
        %v2268 = vsel %vm2215, %v2266, %v2267
        %v2269 = vrot.slane %v2267, 4
        %v2270 = vrot.slane %v2186, 5
        %v2271 = vsel %vm2215, %v2269, %v2270
        %v2272 = vunpack.c.l.b16 %v2219
        %v2273 = vunpack.c.l.b16 %v2222
        %v2274 = vunpack.c.l.b16 %v2226
        %v2275 = vunpack.c.l.b16 %v2229
        %v2276 = vunpack.c.l.b16 %v2233
        %v2277 = vunpack.c.l.b16 %v2236
        %v2278 = vunpack.c.l.b16 %v2240
        %v2279 = vunpack.c.l.b16 %v2243
        %v2280 = vunpack.c.l.b16 %v2247
        %v2281 = vunpack.c.l.b16 %v2250
        %v2282 = vunpack.c.l.b16 %v2254
        %v2283 = vunpack.c.l.b16 %v2257
        %v2284 = vunpack.c.l.b16 %v2261
        %v2285 = vunpack.c.l.b16 %v2264
        %v2286 = vunpack.c.l.b16 %v2268
        %v2287 = vunpack.c.l.b16 %v2271
        %v2288 = vpack.c.b16 %v2273, %v2272
        %v2289 = vpack.c.b16 %v2275, %v2274
        %v2290 = vpack.c.b16 %v2277, %v2276
        %v2291 = vpack.c.b16 %v2279, %v2278
        %v2292 = vpack.c.b16 %v2281, %v2280
        %v2293 = vpack.c.b16 %v2283, %v2282
        %v2294 = vpack.c.b16 %v2285, %v2284
        %v2295 = vpack.c.b16 %v2287, %v2286
        %v2297 = vsel %vm2021, %v2288, 0
        %v2300 = vsel %vm2021, %v2289, 0
        %v2303 = vsel %vm2021, %v2290, 0
        %v2306 = vsel %vm2021, %v2291, 0
        %v2309 = vsel %vm2021, %v2292, 0
        %v2312 = vsel %vm2021, %v2293, 0
        %v2315 = vsel %vm2021, %v2294, 0
        %v2318 = vsel %vm2021, %v2295, 0
        %v2321 = vsel %vm2046, %v2188, 0
        %2323 = vmatprep.subr.bf16.mxu0 0
        %2324 = vmatpush1.bf16.msra.mxu0 0
        %2325 = vmatprep.subr.bf16.mxu0 0
        %2326 = vmatpush1.bf16.msra.mxu0 0
        %2327 = vmatprep.subr.bf16.mxu0 0
        %2328 = vmatpush1.bf16.msra.mxu0 0
        %2329 = vmatprep.subr.bf16.mxu0 0
        %2330 = vmatpush1.bf16.msra.mxu0 0
        %2331 = vmatprep.subr.bf16.mxu0 0
        %2332 = vmatpush1.bf16.msra.mxu0 0
        %2333 = vmatprep.subr.bf16.mxu0 0
        %2334 = vmatpush1.bf16.msra.mxu0 0
        %2335 = vmatprep.subr.bf16.mxu0 0
        %2336 = vmatpush1.bf16.msra.mxu0 0
        %2337 = vmatprep.subr.bf16.mxu0 0
        %2338 = vmatpush1.bf16.msra.mxu0 %v2321
        %2339 = vmatprep.subr.bf16.mxu0 0
        %2340 = vmatpush2.bf16.msra.mxu0 0
        %2341 = vmatprep.subr.bf16.mxu0 0
        %2342 = vmatpush2.bf16.msra.mxu0 0
        %2343 = vmatprep.subr.bf16.mxu0 0
        %2344 = vmatpush2.bf16.msra.mxu0 0
        %2345 = vmatprep.subr.bf16.mxu0 0
        %2346 = vmatpush2.bf16.msra.mxu0 0
        %2347 = vmatprep.subr.bf16.mxu0 0
        %2348 = vmatpush2.bf16.msra.mxu0 0
        %2349 = vmatprep.subr.bf16.mxu0 0
        %2350 = vmatpush2.bf16.msra.mxu0 0
        %2351 = vmatprep.subr.bf16.mxu0 0
        %2352 = vmatpush2.bf16.msra.mxu0 0
        %2353 = vmatprep.subr.bf16.mxu0 0
        %2354 = vmatpush2.bf16.msra.mxu0 0
        %2355 = vmatprep.mubr.bf16.mxu0 0
        %2356 = vmatmul.mubr.bf16.gmra.mxu0 %v2297
        %v2357 = vpop.f32.mrf.mxu0
        %v2358 = vadd.f32 0.0, %v2357
        %v2359 = vpop.f32.mrf.mxu0
        %v2360 = vpop.f32.mrf.mxu0
        %v2361 = vadd.f32 0.0, %v2360
        %v2362 = vpop.f32.mrf.mxu0
        %2363 = vmatprep.mubr.bf16.mxu0 0
        %2364 = vmatmul.mubr.bf16.gmra.mxu0 %v2300
        %v2365 = vpop.f32.mrf.mxu0
        %v2366 = vadd.f32 0.0, %v2365
        %v2367 = vpop.f32.mrf.mxu0
        %v2368 = vpop.f32.mrf.mxu0
        %v2369 = vadd.f32 0.0, %v2368
        %v2370 = vpop.f32.mrf.mxu0
        %2371 = vmatprep.mubr.bf16.mxu0 0
        %2372 = vmatmul.mubr.bf16.gmra.mxu0 %v2303
        %v2373 = vpop.f32.mrf.mxu0
        %v2374 = vadd.f32 0.0, %v2373
        %v2375 = vpop.f32.mrf.mxu0
        %v2376 = vpop.f32.mrf.mxu0
        %v2377 = vadd.f32 0.0, %v2376
        %v2378 = vpop.f32.mrf.mxu0
        %2379 = vmatprep.mubr.bf16.mxu0 0
        %2380 = vmatmul.mubr.bf16.gmra.mxu0 %v2306
        %v2381 = vpop.f32.mrf.mxu0
        %v2382 = vadd.f32 0.0, %v2381
        %v2383 = vpop.f32.mrf.mxu0
        %v2384 = vpop.f32.mrf.mxu0
        %v2385 = vadd.f32 0.0, %v2384
        %v2386 = vpop.f32.mrf.mxu0
        %2387 = vmatprep.mubr.bf16.mxu0 0
        %2388 = vmatmul.mubr.bf16.gmra.mxu0 %v2309
        %v2389 = vpop.f32.mrf.mxu0
        %v2390 = vadd.f32 0.0, %v2389
        %v2391 = vpop.f32.mrf.mxu0
        %v2392 = vpop.f32.mrf.mxu0
        %v2393 = vadd.f32 0.0, %v2392
        %v2394 = vpop.f32.mrf.mxu0
        %2395 = vmatprep.mubr.bf16.mxu0 0
        %2396 = vmatmul.mubr.bf16.gmra.mxu0 %v2312
        %v2397 = vpop.f32.mrf.mxu0
        %v2398 = vadd.f32 0.0, %v2397
        %v2399 = vpop.f32.mrf.mxu0
        %v2400 = vpop.f32.mrf.mxu0
        %v2401 = vadd.f32 0.0, %v2400
        %v2402 = vpop.f32.mrf.mxu0
        %2403 = vmatprep.mubr.bf16.mxu0 0
        %2404 = vmatmul.mubr.bf16.gmra.mxu0 %v2315
        %v2405 = vpop.f32.mrf.mxu0
        %v2406 = vadd.f32 0.0, %v2405
        %v2407 = vpop.f32.mrf.mxu0
        %v2408 = vpop.f32.mrf.mxu0
        %v2409 = vadd.f32 0.0, %v2408
        %v2410 = vpop.f32.mrf.mxu0
        %2411 = vmatprep.mubr.bf16.mxu0 0
        %2412 = vmatmul.mubr.bf16.gmra.mxu0 %v2318
        %v2413 = vpop.f32.mrf.mxu0
        %v2414 = vadd.f32 0.0, %v2413
        %v2415 = vpop.f32.mrf.mxu0
        %v2416 = vpop.f32.mrf.mxu0
        %v2417 = vadd.f32 0.0, %v2416
        %v2418 = vpop.f32.mrf.mxu0
        %2419 = vdwg.mxu0
        %v2420 = vld [vmem:[#allocation3] sm:$0xff]
        %v2421 = vld [vmem:[#allocation3 + $0x8] sm:$0xff]
        %v2422 = vld [vmem:[#allocation3 + $0x10] sm:$0xff]
        %v2423 = vld [vmem:[#allocation3 + $0x18] sm:$0xff]
        %v2424 = vld [vmem:[#allocation3 + $0x20] sm:$0xff]
        %v2425 = vld [vmem:[#allocation3 + $0x28] sm:$0xff]
        %v2426 = vld [vmem:[#allocation3 + $0x30] sm:$0xff]
        %v2427 = vld [vmem:[#allocation3 + $0x38] sm:$0xff]
        %v2428 = vld [vmem:[#allocation3 + $0x40] sm:$0xff]
        %v2429 = vld [vmem:[#allocation3 + $0x48] sm:$0xff]
        %v2430 = vld [vmem:[#allocation3 + $0x50] sm:$0xff]
        %v2431 = vld [vmem:[#allocation3 + $0x58] sm:$0xff]
        %v2432 = vld [vmem:[#allocation3 + $0x60] sm:$0xff]
        %v2433 = vld [vmem:[#allocation3 + $0x68] sm:$0xff]
        %v2434 = vld [vmem:[#allocation3 + $0x70] sm:$0xff]
        %v2435 = vld [vmem:[#allocation3 + $0x78] sm:$0xff]
        %v2436 = vadd.f32 %v2420, %v2358
        %v2437 = vadd.f32 %v2421, %v2361
        %v2438 = vadd.f32 %v2422, %v2366
        %v2439 = vadd.f32 %v2423, %v2369
        %v2440 = vadd.f32 %v2424, %v2374
        %v2441 = vadd.f32 %v2425, %v2377
        %v2442 = vadd.f32 %v2426, %v2382
        %v2443 = vadd.f32 %v2427, %v2385
        %v2444 = vadd.f32 %v2428, %v2390
        %v2445 = vadd.f32 %v2429, %v2393
        %v2446 = vadd.f32 %v2430, %v2398
        %v2447 = vadd.f32 %v2431, %v2401
        %v2448 = vadd.f32 %v2432, %v2406
        %v2449 = vadd.f32 %v2433, %v2409
        %v2450 = vadd.f32 %v2434, %v2414
        %v2451 = vadd.f32 %v2435, %v2417
        %2452 = vst.msk [vmem:[#allocation3] sm:$0xff] %vm2021, %v2436
        %2453 = vst.msk [vmem:[#allocation3 + $0x8] sm:$0xff] %vm2021, %v2437
        %2454 = vst.msk [vmem:[#allocation3 + $0x10] sm:$0xff] %vm2021, %v2438
        %2455 = vst.msk [vmem:[#allocation3 + $0x18] sm:$0xff] %vm2021, %v2439
        %2456 = vst.msk [vmem:[#allocation3 + $0x20] sm:$0xff] %vm2021, %v2440
        %2457 = vst.msk [vmem:[#allocation3 + $0x28] sm:$0xff] %vm2021, %v2441
        %2458 = vst.msk [vmem:[#allocation3 + $0x30] sm:$0xff] %vm2021, %v2442
        %2459 = vst.msk [vmem:[#allocation3 + $0x38] sm:$0xff] %vm2021, %v2443
        %2460 = vst.msk [vmem:[#allocation3 + $0x40] sm:$0xff] %vm2021, %v2444
        %2461 = vst.msk [vmem:[#allocation3 + $0x48] sm:$0xff] %vm2021, %v2445
        %2462 = vst.msk [vmem:[#allocation3 + $0x50] sm:$0xff] %vm2021, %v2446
        %2463 = vst.msk [vmem:[#allocation3 + $0x58] sm:$0xff] %vm2021, %v2447
        %2464 = vst.msk [vmem:[#allocation3 + $0x60] sm:$0xff] %vm2021, %v2448
        %2465 = vst.msk [vmem:[#allocation3 + $0x68] sm:$0xff] %vm2021, %v2449
        %2466 = vst.msk [vmem:[#allocation3 + $0x70] sm:$0xff] %vm2021, %v2450
        %2467 = vst.msk [vmem:[#allocation3 + $0x78] sm:$0xff] %vm2021, %v2451
        %v2468 = vld [vmem:[#allocation2] sm:$0xc]
        %v2469 = vld [vmem:[#allocation2 + $0x4] sm:$0xf]
        %v2470 = vld [vmem:[#allocation2 + $0x8] sm:$0x3]
        %v2471 = vld [vmem:[#allocation2 + $0xc] sm:$0xc]
        %v2472 = vld [vmem:[#allocation2 + $0x10] sm:$0xf]
        %v2473 = vld [vmem:[#allocation2 + $0x14] sm:$0x3]
        %v2474 = vld [vmem:[#allocation2 + $0x18] sm:$0xc]
        %v2475 = vld [vmem:[#allocation2 + $0x1c] sm:$0xf]
        %v2476 = vld [vmem:[#allocation2 + $0x20] sm:$0x3]
        %v2477 = vld [vmem:[#allocation2 + $0x24] sm:$0xc]
        %v2478 = vld [vmem:[#allocation2 + $0x28] sm:$0xf]
        %v2479 = vld [vmem:[#allocation2 + $0x2c] sm:$0x3]
        %v2480 = vld [vmem:[#allocation2 + $0x30] sm:$0xc]
        %v2481 = vld [vmem:[#allocation2 + $0x34] sm:$0xf]
        %v2482 = vld [vmem:[#allocation2 + $0x38] sm:$0x3]
        %v2483 = vld [vmem:[#allocation2 + $0x3c] sm:$0xc]
        %v2484 = vld [vmem:[#allocation2 + $0x40] sm:$0xf]
        %v2485 = vld [vmem:[#allocation2 + $0x44] sm:$0x3]
        %v2486 = vld [vmem:[#allocation2 + $0x48] sm:$0xc]
        %v2487 = vld [vmem:[#allocation2 + $0x4c] sm:$0xf]
        %v2488 = vld [vmem:[#allocation2 + $0x50] sm:$0x3]
        %v2489 = vld [vmem:[#allocation2 + $0x54] sm:$0xc]
        %v2490 = vld [vmem:[#allocation2 + $0x58] sm:$0xf]
        %v2491 = vld [vmem:[#allocation2 + $0x5c] sm:$0x3]
        %s2492 = scalar_lea.vmem %s3, 4
        %v2493 = vld [vmem:[%s2492] sm:$0x3]
        %vm2518 = vcmask 1041408
        %vm2519 = vcmask 1045508
        %vm2520 = vmor %vm2518, %vm2519
        %v2521 = vrot.slane %v2468, 6
        %v2522 = vrot.slane %v2521, 4
        %v2523 = vrot.slane %v2469, 6
        %v2524 = vsel %vm2520, %v2522, %v2523
        %v2525 = vrot.slane %v2523, 4
        %v2526 = vrot.slane %v2470, 6
        %v2527 = vsel %vm2520, %v2525, %v2526
        %v2528 = vrot.slane %v2471, 6
        %v2529 = vrot.slane %v2528, 4
        %v2530 = vrot.slane %v2472, 6
        %v2531 = vsel %vm2520, %v2529, %v2530
        %v2532 = vrot.slane %v2530, 4
        %v2533 = vrot.slane %v2473, 6
        %v2534 = vsel %vm2520, %v2532, %v2533
        %v2535 = vrot.slane %v2474, 6
        %v2536 = vrot.slane %v2535, 4
        %v2537 = vrot.slane %v2475, 6
        %v2538 = vsel %vm2520, %v2536, %v2537
        %v2539 = vrot.slane %v2537, 4
        %v2540 = vrot.slane %v2476, 6
        %v2541 = vsel %vm2520, %v2539, %v2540
        %v2542 = vrot.slane %v2477, 6
        %v2543 = vrot.slane %v2542, 4
        %v2544 = vrot.slane %v2478, 6
        %v2545 = vsel %vm2520, %v2543, %v2544
        %v2546 = vrot.slane %v2544, 4
        %v2547 = vrot.slane %v2479, 6
        %v2548 = vsel %vm2520, %v2546, %v2547
        %v2549 = vrot.slane %v2480, 6
        %v2550 = vrot.slane %v2549, 4
        %v2551 = vrot.slane %v2481, 6
        %v2552 = vsel %vm2520, %v2550, %v2551
        %v2553 = vrot.slane %v2551, 4
        %v2554 = vrot.slane %v2482, 6
        %v2555 = vsel %vm2520, %v2553, %v2554
        %v2556 = vrot.slane %v2483, 6
        %v2557 = vrot.slane %v2556, 4
        %v2558 = vrot.slane %v2484, 6
        %v2559 = vsel %vm2520, %v2557, %v2558
        %v2560 = vrot.slane %v2558, 4
        %v2561 = vrot.slane %v2485, 6
        %v2562 = vsel %vm2520, %v2560, %v2561
        %v2563 = vrot.slane %v2486, 6
        %v2564 = vrot.slane %v2563, 4
        %v2565 = vrot.slane %v2487, 6
        %v2566 = vsel %vm2520, %v2564, %v2565
        %v2567 = vrot.slane %v2565, 4
        %v2568 = vrot.slane %v2488, 6
        %v2569 = vsel %vm2520, %v2567, %v2568
        %v2570 = vrot.slane %v2489, 6
        %v2571 = vrot.slane %v2570, 4
        %v2572 = vrot.slane %v2490, 6
        %v2573 = vsel %vm2520, %v2571, %v2572
        %v2574 = vrot.slane %v2572, 4
        %v2575 = vrot.slane %v2491, 6
        %v2576 = vsel %vm2520, %v2574, %v2575
        %v2577 = vunpack.c.l.b16 %v2524
        %v2578 = vunpack.c.l.b16 %v2527
        %v2579 = vunpack.c.l.b16 %v2531
        %v2580 = vunpack.c.l.b16 %v2534
        %v2581 = vunpack.c.l.b16 %v2538
        %v2582 = vunpack.c.l.b16 %v2541
        %v2583 = vunpack.c.l.b16 %v2545
        %v2584 = vunpack.c.l.b16 %v2548
        %v2585 = vunpack.c.l.b16 %v2552
        %v2586 = vunpack.c.l.b16 %v2555
        %v2587 = vunpack.c.l.b16 %v2559
        %v2588 = vunpack.c.l.b16 %v2562
        %v2589 = vunpack.c.l.b16 %v2566
        %v2590 = vunpack.c.l.b16 %v2569
        %v2591 = vunpack.c.l.b16 %v2573
        %v2592 = vunpack.c.l.b16 %v2576
        %v2593 = vpack.c.b16 %v2578, %v2577
        %v2594 = vpack.c.b16 %v2580, %v2579
        %v2595 = vpack.c.b16 %v2582, %v2581
        %v2596 = vpack.c.b16 %v2584, %v2583
        %v2597 = vpack.c.b16 %v2586, %v2585
        %v2598 = vpack.c.b16 %v2588, %v2587
        %v2599 = vpack.c.b16 %v2590, %v2589
        %v2600 = vpack.c.b16 %v2592, %v2591
        %v2602 = vsel %vm2021, %v2593, 0
        %v2605 = vsel %vm2021, %v2594, 0
        %v2608 = vsel %vm2021, %v2595, 0
        %v2611 = vsel %vm2021, %v2596, 0
        %v2614 = vsel %vm2021, %v2597, 0
        %v2617 = vsel %vm2021, %v2598, 0
        %v2620 = vsel %vm2021, %v2599, 0
        %v2623 = vsel %vm2021, %v2600, 0
        %v2626 = vsel %vm2046, %v2493, 0
        %2628 = vmatprep.subr.bf16.mxu0 0
        %2629 = vmatpush1.bf16.msra.mxu0 0
        %2630 = vmatprep.subr.bf16.mxu0 0
        %2631 = vmatpush1.bf16.msra.mxu0 0
        %2632 = vmatprep.subr.bf16.mxu0 0
        %2633 = vmatpush1.bf16.msra.mxu0 0
        %2634 = vmatprep.subr.bf16.mxu0 0
        %2635 = vmatpush1.bf16.msra.mxu0 0
        %2636 = vmatprep.subr.bf16.mxu0 0
        %2637 = vmatpush1.bf16.msra.mxu0 0
        %2638 = vmatprep.subr.bf16.mxu0 0
        %2639 = vmatpush1.bf16.msra.mxu0 0
        %2640 = vmatprep.subr.bf16.mxu0 0
        %2641 = vmatpush1.bf16.msra.mxu0 0
        %2642 = vmatprep.subr.bf16.mxu0 0
        %2643 = vmatpush1.bf16.msra.mxu0 %v2626
        %2644 = vmatprep.subr.bf16.mxu0 0
        %2645 = vmatpush2.bf16.msra.mxu0 0
        %2646 = vmatprep.subr.bf16.mxu0 0
        %2647 = vmatpush2.bf16.msra.mxu0 0
        %2648 = vmatprep.subr.bf16.mxu0 0
        %2649 = vmatpush2.bf16.msra.mxu0 0
        %2650 = vmatprep.subr.bf16.mxu0 0
        %2651 = vmatpush2.bf16.msra.mxu0 0
        %2652 = vmatprep.subr.bf16.mxu0 0
        %2653 = vmatpush2.bf16.msra.mxu0 0
        %2654 = vmatprep.subr.bf16.mxu0 0
        %2655 = vmatpush2.bf16.msra.mxu0 0
        %2656 = vmatprep.subr.bf16.mxu0 0
        %2657 = vmatpush2.bf16.msra.mxu0 0
        %2658 = vmatprep.subr.bf16.mxu0 0
        %2659 = vmatpush2.bf16.msra.mxu0 0
        %2660 = vmatprep.mubr.bf16.mxu0 0
        %2661 = vmatmul.mubr.bf16.gmra.mxu0 %v2602
        %v2662 = vpop.f32.mrf.mxu0
        %v2663 = vadd.f32 0.0, %v2662
        %v2664 = vpop.f32.mrf.mxu0
        %v2665 = vpop.f32.mrf.mxu0
        %v2666 = vadd.f32 0.0, %v2665
        %v2667 = vpop.f32.mrf.mxu0
        %2668 = vmatprep.mubr.bf16.mxu0 0
        %2669 = vmatmul.mubr.bf16.gmra.mxu0 %v2605
        %v2670 = vpop.f32.mrf.mxu0
        %v2671 = vadd.f32 0.0, %v2670
        %v2672 = vpop.f32.mrf.mxu0
        %v2673 = vpop.f32.mrf.mxu0
        %v2674 = vadd.f32 0.0, %v2673
        %v2675 = vpop.f32.mrf.mxu0
        %2676 = vmatprep.mubr.bf16.mxu0 0
        %2677 = vmatmul.mubr.bf16.gmra.mxu0 %v2608
        %v2678 = vpop.f32.mrf.mxu0
        %v2679 = vadd.f32 0.0, %v2678
        %v2680 = vpop.f32.mrf.mxu0
        %v2681 = vpop.f32.mrf.mxu0
        %v2682 = vadd.f32 0.0, %v2681
        %v2683 = vpop.f32.mrf.mxu0
        %2684 = vmatprep.mubr.bf16.mxu0 0
        %2685 = vmatmul.mubr.bf16.gmra.mxu0 %v2611
        %v2686 = vpop.f32.mrf.mxu0
        %v2687 = vadd.f32 0.0, %v2686
        %v2688 = vpop.f32.mrf.mxu0
        %v2689 = vpop.f32.mrf.mxu0
        %v2690 = vadd.f32 0.0, %v2689
        %v2691 = vpop.f32.mrf.mxu0
        %2692 = vmatprep.mubr.bf16.mxu0 0
        %2693 = vmatmul.mubr.bf16.gmra.mxu0 %v2614
        %v2694 = vpop.f32.mrf.mxu0
        %v2695 = vadd.f32 0.0, %v2694
        %v2696 = vpop.f32.mrf.mxu0
        %v2697 = vpop.f32.mrf.mxu0
        %v2698 = vadd.f32 0.0, %v2697
        %v2699 = vpop.f32.mrf.mxu0
        %2700 = vmatprep.mubr.bf16.mxu0 0
        %2701 = vmatmul.mubr.bf16.gmra.mxu0 %v2617
        %v2702 = vpop.f32.mrf.mxu0
        %v2703 = vadd.f32 0.0, %v2702
        %v2704 = vpop.f32.mrf.mxu0
        %v2705 = vpop.f32.mrf.mxu0
        %v2706 = vadd.f32 0.0, %v2705
        %v2707 = vpop.f32.mrf.mxu0
        %2708 = vmatprep.mubr.bf16.mxu0 0
        %2709 = vmatmul.mubr.bf16.gmra.mxu0 %v2620
        %v2710 = vpop.f32.mrf.mxu0
        %v2711 = vadd.f32 0.0, %v2710
        %v2712 = vpop.f32.mrf.mxu0
        %v2713 = vpop.f32.mrf.mxu0
        %v2714 = vadd.f32 0.0, %v2713
        %v2715 = vpop.f32.mrf.mxu0
        %2716 = vmatprep.mubr.bf16.mxu0 0
        %2717 = vmatmul.mubr.bf16.gmra.mxu0 %v2623
        %v2718 = vpop.f32.mrf.mxu0
        %v2719 = vadd.f32 0.0, %v2718
        %v2720 = vpop.f32.mrf.mxu0
        %v2721 = vpop.f32.mrf.mxu0
        %v2722 = vadd.f32 0.0, %v2721
        %v2723 = vpop.f32.mrf.mxu0
        %2724 = vdwg.mxu0
        %v2725 = vld [vmem:[#allocation3] sm:$0xff]
        %v2726 = vld [vmem:[#allocation3 + $0x8] sm:$0xff]
        %v2727 = vld [vmem:[#allocation3 + $0x10] sm:$0xff]
        %v2728 = vld [vmem:[#allocation3 + $0x18] sm:$0xff]
        %v2729 = vld [vmem:[#allocation3 + $0x20] sm:$0xff]
        %v2730 = vld [vmem:[#allocation3 + $0x28] sm:$0xff]
        %v2731 = vld [vmem:[#allocation3 + $0x30] sm:$0xff]
        %v2732 = vld [vmem:[#allocation3 + $0x38] sm:$0xff]
        %v2733 = vld [vmem:[#allocation3 + $0x40] sm:$0xff]
        %v2734 = vld [vmem:[#allocation3 + $0x48] sm:$0xff]
        %v2735 = vld [vmem:[#allocation3 + $0x50] sm:$0xff]
        %v2736 = vld [vmem:[#allocation3 + $0x58] sm:$0xff]
        %v2737 = vld [vmem:[#allocation3 + $0x60] sm:$0xff]
        %v2738 = vld [vmem:[#allocation3 + $0x68] sm:$0xff]
        %v2739 = vld [vmem:[#allocation3 + $0x70] sm:$0xff]
        %v2740 = vld [vmem:[#allocation3 + $0x78] sm:$0xff]
        %v2741 = vadd.f32 %v2725, %v2663
        %v2742 = vadd.f32 %v2726, %v2666
        %v2743 = vadd.f32 %v2727, %v2671
        %v2744 = vadd.f32 %v2728, %v2674
        %v2745 = vadd.f32 %v2729, %v2679
        %v2746 = vadd.f32 %v2730, %v2682
        %v2747 = vadd.f32 %v2731, %v2687
        %v2748 = vadd.f32 %v2732, %v2690
        %v2749 = vadd.f32 %v2733, %v2695
        %v2750 = vadd.f32 %v2734, %v2698
        %v2751 = vadd.f32 %v2735, %v2703
        %v2752 = vadd.f32 %v2736, %v2706
        %v2753 = vadd.f32 %v2737, %v2711
        %v2754 = vadd.f32 %v2738, %v2714
        %v2755 = vadd.f32 %v2739, %v2719
        %v2756 = vadd.f32 %v2740, %v2722
        %2757 = vst.msk [vmem:[#allocation3] sm:$0xff] %vm2021, %v2741
        %2758 = vst.msk [vmem:[#allocation3 + $0x8] sm:$0xff] %vm2021, %v2742
        %2759 = vst.msk [vmem:[#allocation3 + $0x10] sm:$0xff] %vm2021, %v2743
        %2760 = vst.msk [vmem:[#allocation3 + $0x18] sm:$0xff] %vm2021, %v2744
        %2761 = vst.msk [vmem:[#allocation3 + $0x20] sm:$0xff] %vm2021, %v2745
        %2762 = vst.msk [vmem:[#allocation3 + $0x28] sm:$0xff] %vm2021, %v2746
        %2763 = vst.msk [vmem:[#allocation3 + $0x30] sm:$0xff] %vm2021, %v2747
        %2764 = vst.msk [vmem:[#allocation3 + $0x38] sm:$0xff] %vm2021, %v2748
        %2765 = vst.msk [vmem:[#allocation3 + $0x40] sm:$0xff] %vm2021, %v2749
        %2766 = vst.msk [vmem:[#allocation3 + $0x48] sm:$0xff] %vm2021, %v2750
        %2767 = vst.msk [vmem:[#allocation3 + $0x50] sm:$0xff] %vm2021, %v2751
        %2768 = vst.msk [vmem:[#allocation3 + $0x58] sm:$0xff] %vm2021, %v2752
        %2769 = vst.msk [vmem:[#allocation3 + $0x60] sm:$0xff] %vm2021, %v2753
        %2770 = vst.msk [vmem:[#allocation3 + $0x68] sm:$0xff] %vm2021, %v2754
        %2771 = vst.msk [vmem:[#allocation3 + $0x70] sm:$0xff] %vm2021, %v2755
        %2772 = vst.msk [vmem:[#allocation3 + $0x78] sm:$0xff] %vm2021, %v2756
        %s2773 = scalar_lea.vmem [#allocation2], 24
        %v2774 = vld [vmem:[%s2773] sm:$0xf]
        %v2775 = vld [vmem:[%s2773 + $0x4] sm:$0xf]
        %v2776 = vld [vmem:[%s2773 + $0xc] sm:$0xf]
        %v2777 = vld [vmem:[%s2773 + $0x10] sm:$0xf]
        %v2778 = vld [vmem:[%s2773 + $0x18] sm:$0xf]
        %v2779 = vld [vmem:[%s2773 + $0x1c] sm:$0xf]
        %v2780 = vld [vmem:[%s2773 + $0x24] sm:$0xf]
        %v2781 = vld [vmem:[%s2773 + $0x28] sm:$0xf]
        %v2782 = vld [vmem:[%s2773 + $0x30] sm:$0xf]
        %v2783 = vld [vmem:[%s2773 + $0x34] sm:$0xf]
        %v2784 = vld [vmem:[%s2773 + $0x3c] sm:$0xf]
        %v2785 = vld [vmem:[%s2773 + $0x40] sm:$0xf]
        %v2786 = vld [vmem:[%s2773 + $0x48] sm:$0xf]
        %v2787 = vld [vmem:[%s2773 + $0x4c] sm:$0xf]
        %v2788 = vld [vmem:[%s2773 + $0x54] sm:$0xf]
        %v2789 = vld [vmem:[%s2773 + $0x58] sm:$0xf]
        %s2790 = scalar_lea.vmem %s3, 6
        %v2791 = vld [vmem:[%s2790] sm:$0x3]
        %v2808 = vunpack.c.l.b16 %v2774
        %v2809 = vunpack.c.l.b16 %v2775
        %v2810 = vunpack.c.l.b16 %v2776
        %v2811 = vunpack.c.l.b16 %v2777
        %v2812 = vunpack.c.l.b16 %v2778
        %v2813 = vunpack.c.l.b16 %v2779
        %v2814 = vunpack.c.l.b16 %v2780
        %v2815 = vunpack.c.l.b16 %v2781
        %v2816 = vunpack.c.l.b16 %v2782
        %v2817 = vunpack.c.l.b16 %v2783
        %v2818 = vunpack.c.l.b16 %v2784
        %v2819 = vunpack.c.l.b16 %v2785
        %v2820 = vunpack.c.l.b16 %v2786
        %v2821 = vunpack.c.l.b16 %v2787
        %v2822 = vunpack.c.l.b16 %v2788
        %v2823 = vunpack.c.l.b16 %v2789
        %v2824 = vpack.c.b16 %v2809, %v2808
        %v2825 = vpack.c.b16 %v2811, %v2810
        %v2826 = vpack.c.b16 %v2813, %v2812
        %v2827 = vpack.c.b16 %v2815, %v2814
        %v2828 = vpack.c.b16 %v2817, %v2816
        %v2829 = vpack.c.b16 %v2819, %v2818
        %v2830 = vpack.c.b16 %v2821, %v2820
        %v2831 = vpack.c.b16 %v2823, %v2822
        %v2833 = vsel %vm2021, %v2824, 0
        %v2836 = vsel %vm2021, %v2825, 0
        %v2839 = vsel %vm2021, %v2826, 0
        %v2842 = vsel %vm2021, %v2827, 0
        %v2845 = vsel %vm2021, %v2828, 0
        %v2848 = vsel %vm2021, %v2829, 0
        %v2851 = vsel %vm2021, %v2830, 0
        %v2854 = vsel %vm2021, %v2831, 0
        %v2857 = vsel %vm2046, %v2791, 0
        %2859 = vmatprep.subr.bf16.mxu0 0
        %2860 = vmatpush1.bf16.msra.mxu0 0
        %2861 = vmatprep.subr.bf16.mxu0 0
        %2862 = vmatpush1.bf16.msra.mxu0 0
        %2863 = vmatprep.subr.bf16.mxu0 0
        %2864 = vmatpush1.bf16.msra.mxu0 0
        %2865 = vmatprep.subr.bf16.mxu0 0
        %2866 = vmatpush1.bf16.msra.mxu0 0
        %2867 = vmatprep.subr.bf16.mxu0 0
        %2868 = vmatpush1.bf16.msra.mxu0 0
        %2869 = vmatprep.subr.bf16.mxu0 0
        %2870 = vmatpush1.bf16.msra.mxu0 0
        %2871 = vmatprep.subr.bf16.mxu0 0
        %2872 = vmatpush1.bf16.msra.mxu0 0
        %2873 = vmatprep.subr.bf16.mxu0 0
        %2874 = vmatpush1.bf16.msra.mxu0 %v2857
        %2875 = vmatprep.subr.bf16.mxu0 0
        %2876 = vmatpush2.bf16.msra.mxu0 0
        %2877 = vmatprep.subr.bf16.mxu0 0
        %2878 = vmatpush2.bf16.msra.mxu0 0
        %2879 = vmatprep.subr.bf16.mxu0 0
        %2880 = vmatpush2.bf16.msra.mxu0 0
        %2881 = vmatprep.subr.bf16.mxu0 0
        %2882 = vmatpush2.bf16.msra.mxu0 0
        %2883 = vmatprep.subr.bf16.mxu0 0
        %2884 = vmatpush2.bf16.msra.mxu0 0
        %2885 = vmatprep.subr.bf16.mxu0 0
        %2886 = vmatpush2.bf16.msra.mxu0 0
        %2887 = vmatprep.subr.bf16.mxu0 0
        %2888 = vmatpush2.bf16.msra.mxu0 0
        %2889 = vmatprep.subr.bf16.mxu0 0
        %2890 = vmatpush2.bf16.msra.mxu0 0
        %2891 = vmatprep.mubr.bf16.mxu0 0
        %2892 = vmatmul.mubr.bf16.gmra.mxu0 %v2833
        %v2893 = vpop.f32.mrf.mxu0
        %v2894 = vadd.f32 0.0, %v2893
        %v2895 = vpop.f32.mrf.mxu0
        %v2896 = vpop.f32.mrf.mxu0
        %v2897 = vadd.f32 0.0, %v2896
        %v2898 = vpop.f32.mrf.mxu0
        %2899 = vmatprep.mubr.bf16.mxu0 0
        %2900 = vmatmul.mubr.bf16.gmra.mxu0 %v2836
        %v2901 = vpop.f32.mrf.mxu0
        %v2902 = vadd.f32 0.0, %v2901
        %v2903 = vpop.f32.mrf.mxu0
        %v2904 = vpop.f32.mrf.mxu0
        %v2905 = vadd.f32 0.0, %v2904
        %v2906 = vpop.f32.mrf.mxu0
        %2907 = vmatprep.mubr.bf16.mxu0 0
        %2908 = vmatmul.mubr.bf16.gmra.mxu0 %v2839
        %v2909 = vpop.f32.mrf.mxu0
        %v2910 = vadd.f32 0.0, %v2909
        %v2911 = vpop.f32.mrf.mxu0
        %v2912 = vpop.f32.mrf.mxu0
        %v2913 = vadd.f32 0.0, %v2912
        %v2914 = vpop.f32.mrf.mxu0
        %2915 = vmatprep.mubr.bf16.mxu0 0
        %2916 = vmatmul.mubr.bf16.gmra.mxu0 %v2842
        %v2917 = vpop.f32.mrf.mxu0
        %v2918 = vadd.f32 0.0, %v2917
        %v2919 = vpop.f32.mrf.mxu0
        %v2920 = vpop.f32.mrf.mxu0
        %v2921 = vadd.f32 0.0, %v2920
        %v2922 = vpop.f32.mrf.mxu0
        %2923 = vmatprep.mubr.bf16.mxu0 0
        %2924 = vmatmul.mubr.bf16.gmra.mxu0 %v2845
        %v2925 = vpop.f32.mrf.mxu0
        %v2926 = vadd.f32 0.0, %v2925
        %v2927 = vpop.f32.mrf.mxu0
        %v2928 = vpop.f32.mrf.mxu0
        %v2929 = vadd.f32 0.0, %v2928
        %v2930 = vpop.f32.mrf.mxu0
        %2931 = vmatprep.mubr.bf16.mxu0 0
        %2932 = vmatmul.mubr.bf16.gmra.mxu0 %v2848
        %v2933 = vpop.f32.mrf.mxu0
        %v2934 = vadd.f32 0.0, %v2933
        %v2935 = vpop.f32.mrf.mxu0
        %v2936 = vpop.f32.mrf.mxu0
        %v2937 = vadd.f32 0.0, %v2936
        %v2938 = vpop.f32.mrf.mxu0
        %2939 = vmatprep.mubr.bf16.mxu0 0
        %2940 = vmatmul.mubr.bf16.gmra.mxu0 %v2851
        %v2941 = vpop.f32.mrf.mxu0
        %v2942 = vadd.f32 0.0, %v2941
        %v2943 = vpop.f32.mrf.mxu0
        %v2944 = vpop.f32.mrf.mxu0
        %v2945 = vadd.f32 0.0, %v2944
        %v2946 = vpop.f32.mrf.mxu0
        %2947 = vmatprep.mubr.bf16.mxu0 0
        %2948 = vmatmul.mubr.bf16.gmra.mxu0 %v2854
        %v2949 = vpop.f32.mrf.mxu0
        %v2950 = vadd.f32 0.0, %v2949
        %v2951 = vpop.f32.mrf.mxu0
        %v2952 = vpop.f32.mrf.mxu0
        %v2953 = vadd.f32 0.0, %v2952
        %v2954 = vpop.f32.mrf.mxu0
        %2955 = vdwg.mxu0
        %v2956 = vld [vmem:[#allocation3] sm:$0xff]
        %v2957 = vld [vmem:[#allocation3 + $0x8] sm:$0xff]
        %v2958 = vld [vmem:[#allocation3 + $0x10] sm:$0xff]
        %v2959 = vld [vmem:[#allocation3 + $0x18] sm:$0xff]
        %v2960 = vld [vmem:[#allocation3 + $0x20] sm:$0xff]
        %v2961 = vld [vmem:[#allocation3 + $0x28] sm:$0xff]
        %v2962 = vld [vmem:[#allocation3 + $0x30] sm:$0xff]
        %v2963 = vld [vmem:[#allocation3 + $0x38] sm:$0xff]
        %v2964 = vld [vmem:[#allocation3 + $0x40] sm:$0xff]
        %v2965 = vld [vmem:[#allocation3 + $0x48] sm:$0xff]
        %v2966 = vld [vmem:[#allocation3 + $0x50] sm:$0xff]
        %v2967 = vld [vmem:[#allocation3 + $0x58] sm:$0xff]
        %v2968 = vld [vmem:[#allocation3 + $0x60] sm:$0xff]
        %v2969 = vld [vmem:[#allocation3 + $0x68] sm:$0xff]
        %v2970 = vld [vmem:[#allocation3 + $0x70] sm:$0xff]
        %v2971 = vld [vmem:[#allocation3 + $0x78] sm:$0xff]
        %v2972 = vadd.f32 %v2956, %v2894
        %v2973 = vadd.f32 %v2957, %v2897
        %v2974 = vadd.f32 %v2958, %v2902
        %v2975 = vadd.f32 %v2959, %v2905
        %v2976 = vadd.f32 %v2960, %v2910
        %v2977 = vadd.f32 %v2961, %v2913
        %v2978 = vadd.f32 %v2962, %v2918
        %v2979 = vadd.f32 %v2963, %v2921
        %v2980 = vadd.f32 %v2964, %v2926
        %v2981 = vadd.f32 %v2965, %v2929
        %v2982 = vadd.f32 %v2966, %v2934
        %v2983 = vadd.f32 %v2967, %v2937
        %v2984 = vadd.f32 %v2968, %v2942
        %v2985 = vadd.f32 %v2969, %v2945
        %v2986 = vadd.f32 %v2970, %v2950
        %v2987 = vadd.f32 %v2971, %v2953
        %2988 = vst.msk [vmem:[#allocation3] sm:$0xff] %vm2021, %v2972
        %2989 = vst.msk [vmem:[#allocation3 + $0x8] sm:$0xff] %vm2021, %v2973
        %2990 = vst.msk [vmem:[#allocation3 + $0x10] sm:$0xff] %vm2021, %v2974
        %2991 = vst.msk [vmem:[#allocation3 + $0x18] sm:$0xff] %vm2021, %v2975
        %2992 = vst.msk [vmem:[#allocation3 + $0x20] sm:$0xff] %vm2021, %v2976
        %2993 = vst.msk [vmem:[#allocation3 + $0x28] sm:$0xff] %vm2021, %v2977
        %2994 = vst.msk [vmem:[#allocation3 + $0x30] sm:$0xff] %vm2021, %v2978
        %2995 = vst.msk [vmem:[#allocation3 + $0x38] sm:$0xff] %vm2021, %v2979
        %2996 = vst.msk [vmem:[#allocation3 + $0x40] sm:$0xff] %vm2021, %v2980
        %2997 = vst.msk [vmem:[#allocation3 + $0x48] sm:$0xff] %vm2021, %v2981
        %2998 = vst.msk [vmem:[#allocation3 + $0x50] sm:$0xff] %vm2021, %v2982
        %2999 = vst.msk [vmem:[#allocation3 + $0x58] sm:$0xff] %vm2021, %v2983
        %3000 = vst.msk [vmem:[#allocation3 + $0x60] sm:$0xff] %vm2021, %v2984
        %3001 = vst.msk [vmem:[#allocation3 + $0x68] sm:$0xff] %vm2021, %v2985
        %3002 = vst.msk [vmem:[#allocation3 + $0x70] sm:$0xff] %vm2021, %v2986
        %3003 = vst.msk [vmem:[#allocation3 + $0x78] sm:$0xff] %vm2021, %v2987
        %v3004 = vld [vmem:[%s2773] sm:$0xe]
        %v3005 = vld [vmem:[%s2773 + $0x4] sm:$0xf]
        %v3006 = vld [vmem:[%s2773 + $0x8] sm:$0x1]
        %v3007 = vld [vmem:[%s2773 + $0xc] sm:$0xe]
        %v3008 = vld [vmem:[%s2773 + $0x10] sm:$0xf]
        %v3009 = vld [vmem:[%s2773 + $0x14] sm:$0x1]
        %v3010 = vld [vmem:[%s2773 + $0x18] sm:$0xe]
        %v3011 = vld [vmem:[%s2773 + $0x1c] sm:$0xf]
        %v3012 = vld [vmem:[%s2773 + $0x20] sm:$0x1]
        %v3013 = vld [vmem:[%s2773 + $0x24] sm:$0xe]
        %v3014 = vld [vmem:[%s2773 + $0x28] sm:$0xf]
        %v3015 = vld [vmem:[%s2773 + $0x2c] sm:$0x1]
        %v3016 = vld [vmem:[%s2773 + $0x30] sm:$0xe]
        %v3017 = vld [vmem:[%s2773 + $0x34] sm:$0xf]
        %v3018 = vld [vmem:[%s2773 + $0x38] sm:$0x1]
        %v3019 = vld [vmem:[%s2773 + $0x3c] sm:$0xe]
        %v3020 = vld [vmem:[%s2773 + $0x40] sm:$0xf]
        %v3021 = vld [vmem:[%s2773 + $0x44] sm:$0x1]
        %v3022 = vld [vmem:[%s2773 + $0x48] sm:$0xe]
        %v3023 = vld [vmem:[%s2773 + $0x4c] sm:$0xf]
        %v3024 = vld [vmem:[%s2773 + $0x50] sm:$0x1]
        %v3025 = vld [vmem:[%s2773 + $0x54] sm:$0xe]
        %v3026 = vld [vmem:[%s2773 + $0x58] sm:$0xf]
        %v3027 = vld [vmem:[%s2773 + $0x5c] sm:$0x1]
        %s3028 = scalar_lea.vmem %s3, 8
        %v3029 = vld [vmem:[%s3028] sm:$0x3]
        %v3054 = vrot.slane %v3004, 5
        %v3055 = vrot.slane %v3054, 4
        %v3056 = vrot.slane %v3005, 5
        %v3057 = vsel %vm2215, %v3055, %v3056
        %v3058 = vrot.slane %v3056, 4
        %v3059 = vrot.slane %v3006, 5
        %v3060 = vsel %vm2215, %v3058, %v3059
        %v3061 = vrot.slane %v3007, 5
        %v3062 = vrot.slane %v3061, 4
        %v3063 = vrot.slane %v3008, 5
        %v3064 = vsel %vm2215, %v3062, %v3063
        %v3065 = vrot.slane %v3063, 4
        %v3066 = vrot.slane %v3009, 5
        %v3067 = vsel %vm2215, %v3065, %v3066
        %v3068 = vrot.slane %v3010, 5
        %v3069 = vrot.slane %v3068, 4
        %v3070 = vrot.slane %v3011, 5
        %v3071 = vsel %vm2215, %v3069, %v3070
        %v3072 = vrot.slane %v3070, 4
        %v3073 = vrot.slane %v3012, 5
        %v3074 = vsel %vm2215, %v3072, %v3073
        %v3075 = vrot.slane %v3013, 5
        %v3076 = vrot.slane %v3075, 4
        %v3077 = vrot.slane %v3014, 5
        %v3078 = vsel %vm2215, %v3076, %v3077
        %v3079 = vrot.slane %v3077, 4
        %v3080 = vrot.slane %v3015, 5
        %v3081 = vsel %vm2215, %v3079, %v3080
        %v3082 = vrot.slane %v3016, 5
        %v3083 = vrot.slane %v3082, 4
        %v3084 = vrot.slane %v3017, 5
        %v3085 = vsel %vm2215, %v3083, %v3084
        %v3086 = vrot.slane %v3084, 4
        %v3087 = vrot.slane %v3018, 5
        %v3088 = vsel %vm2215, %v3086, %v3087
        %v3089 = vrot.slane %v3019, 5
        %v3090 = vrot.slane %v3089, 4
        %v3091 = vrot.slane %v3020, 5
        %v3092 = vsel %vm2215, %v3090, %v3091
        %v3093 = vrot.slane %v3091, 4
        %v3094 = vrot.slane %v3021, 5
        %v3095 = vsel %vm2215, %v3093, %v3094
        %v3096 = vrot.slane %v3022, 5
        %v3097 = vrot.slane %v3096, 4
        %v3098 = vrot.slane %v3023, 5
        %v3099 = vsel %vm2215, %v3097, %v3098
        %v3100 = vrot.slane %v3098, 4
        %v3101 = vrot.slane %v3024, 5
        %v3102 = vsel %vm2215, %v3100, %v3101
        %v3103 = vrot.slane %v3025, 5
        %v3104 = vrot.slane %v3103, 4
        %v3105 = vrot.slane %v3026, 5
        %v3106 = vsel %vm2215, %v3104, %v3105
        %v3107 = vrot.slane %v3105, 4
        %v3108 = vrot.slane %v3027, 5
        %v3109 = vsel %vm2215, %v3107, %v3108
        %v3110 = vunpack.c.l.b16 %v3057
        %v3111 = vunpack.c.l.b16 %v3060
        %v3112 = vunpack.c.l.b16 %v3064
        %v3113 = vunpack.c.l.b16 %v3067
        %v3114 = vunpack.c.l.b16 %v3071
        %v3115 = vunpack.c.l.b16 %v3074
        %v3116 = vunpack.c.l.b16 %v3078
        %v3117 = vunpack.c.l.b16 %v3081
        %v3118 = vunpack.c.l.b16 %v3085
        %v3119 = vunpack.c.l.b16 %v3088
        %v3120 = vunpack.c.l.b16 %v3092
        %v3121 = vunpack.c.l.b16 %v3095
        %v3122 = vunpack.c.l.b16 %v3099
        %v3123 = vunpack.c.l.b16 %v3102
        %v3124 = vunpack.c.l.b16 %v3106
        %v3125 = vunpack.c.l.b16 %v3109
        %v3126 = vpack.c.b16 %v3111, %v3110
        %v3127 = vpack.c.b16 %v3113, %v3112
        %v3128 = vpack.c.b16 %v3115, %v3114
        %v3129 = vpack.c.b16 %v3117, %v3116
        %v3130 = vpack.c.b16 %v3119, %v3118
        %v3131 = vpack.c.b16 %v3121, %v3120
        %v3132 = vpack.c.b16 %v3123, %v3122
        %v3133 = vpack.c.b16 %v3125, %v3124
        %v3135 = vsel %vm2021, %v3126, 0
        %v3138 = vsel %vm2021, %v3127, 0
        %v3141 = vsel %vm2021, %v3128, 0
        %v3144 = vsel %vm2021, %v3129, 0
        %v3147 = vsel %vm2021, %v3130, 0
        %v3150 = vsel %vm2021, %v3131, 0
        %v3153 = vsel %vm2021, %v3132, 0
        %v3156 = vsel %vm2021, %v3133, 0
        %v3159 = vsel %vm2046, %v3029, 0
        %3161 = vmatprep.subr.bf16.mxu0 0
        %3162 = vmatpush1.bf16.msra.mxu0 0
        %3163 = vmatprep.subr.bf16.mxu0 0
        %3164 = vmatpush1.bf16.msra.mxu0 0
        %3165 = vmatprep.subr.bf16.mxu0 0
        %3166 = vmatpush1.bf16.msra.mxu0 0
        %3167 = vmatprep.subr.bf16.mxu0 0
        %3168 = vmatpush1.bf16.msra.mxu0 0
        %3169 = vmatprep.subr.bf16.mxu0 0
        %3170 = vmatpush1.bf16.msra.mxu0 0
        %3171 = vmatprep.subr.bf16.mxu0 0
        %3172 = vmatpush1.bf16.msra.mxu0 0
        %3173 = vmatprep.subr.bf16.mxu0 0
        %3174 = vmatpush1.bf16.msra.mxu0 0
        %3175 = vmatprep.subr.bf16.mxu0 0
        %3176 = vmatpush1.bf16.msra.mxu0 %v3159
        %3177 = vmatprep.subr.bf16.mxu0 0
        %3178 = vmatpush2.bf16.msra.mxu0 0
        %3179 = vmatprep.subr.bf16.mxu0 0
        %3180 = vmatpush2.bf16.msra.mxu0 0
        %3181 = vmatprep.subr.bf16.mxu0 0
        %3182 = vmatpush2.bf16.msra.mxu0 0
        %3183 = vmatprep.subr.bf16.mxu0 0
        %3184 = vmatpush2.bf16.msra.mxu0 0
        %3185 = vmatprep.subr.bf16.mxu0 0
        %3186 = vmatpush2.bf16.msra.mxu0 0
        %3187 = vmatprep.subr.bf16.mxu0 0
        %3188 = vmatpush2.bf16.msra.mxu0 0
        %3189 = vmatprep.subr.bf16.mxu0 0
        %3190 = vmatpush2.bf16.msra.mxu0 0
        %3191 = vmatprep.subr.bf16.mxu0 0
        %3192 = vmatpush2.bf16.msra.mxu0 0
        %3193 = vmatprep.mubr.bf16.mxu0 0
        %3194 = vmatmul.mubr.bf16.gmra.mxu0 %v3135
        %v3195 = vpop.f32.mrf.mxu0
        %v3196 = vadd.f32 0.0, %v3195
        %v3197 = vpop.f32.mrf.mxu0
        %v3198 = vpop.f32.mrf.mxu0
        %v3199 = vadd.f32 0.0, %v3198
        %v3200 = vpop.f32.mrf.mxu0
        %3201 = vmatprep.mubr.bf16.mxu0 0
        %3202 = vmatmul.mubr.bf16.gmra.mxu0 %v3138
        %v3203 = vpop.f32.mrf.mxu0
        %v3204 = vadd.f32 0.0, %v3203
        %v3205 = vpop.f32.mrf.mxu0
        %v3206 = vpop.f32.mrf.mxu0
        %v3207 = vadd.f32 0.0, %v3206
        %v3208 = vpop.f32.mrf.mxu0
        %3209 = vmatprep.mubr.bf16.mxu0 0
        %3210 = vmatmul.mubr.bf16.gmra.mxu0 %v3141
        %v3211 = vpop.f32.mrf.mxu0
        %v3212 = vadd.f32 0.0, %v3211
        %v3213 = vpop.f32.mrf.mxu0
        %v3214 = vpop.f32.mrf.mxu0
        %v3215 = vadd.f32 0.0, %v3214
        %v3216 = vpop.f32.mrf.mxu0
        %3217 = vmatprep.mubr.bf16.mxu0 0
        %3218 = vmatmul.mubr.bf16.gmra.mxu0 %v3144
        %v3219 = vpop.f32.mrf.mxu0
        %v3220 = vadd.f32 0.0, %v3219
        %v3221 = vpop.f32.mrf.mxu0
        %v3222 = vpop.f32.mrf.mxu0
        %v3223 = vadd.f32 0.0, %v3222
        %v3224 = vpop.f32.mrf.mxu0
        %3225 = vmatprep.mubr.bf16.mxu0 0
        %3226 = vmatmul.mubr.bf16.gmra.mxu0 %v3147
        %v3227 = vpop.f32.mrf.mxu0
        %v3228 = vadd.f32 0.0, %v3227
        %v3229 = vpop.f32.mrf.mxu0
        %v3230 = vpop.f32.mrf.mxu0
        %v3231 = vadd.f32 0.0, %v3230
        %v3232 = vpop.f32.mrf.mxu0
        %3233 = vmatprep.mubr.bf16.mxu0 0
        %3234 = vmatmul.mubr.bf16.gmra.mxu0 %v3150
        %v3235 = vpop.f32.mrf.mxu0
        %v3236 = vadd.f32 0.0, %v3235
        %v3237 = vpop.f32.mrf.mxu0
        %v3238 = vpop.f32.mrf.mxu0
        %v3239 = vadd.f32 0.0, %v3238
        %v3240 = vpop.f32.mrf.mxu0
        %3241 = vmatprep.mubr.bf16.mxu0 0
        %3242 = vmatmul.mubr.bf16.gmra.mxu0 %v3153
        %v3243 = vpop.f32.mrf.mxu0
        %v3244 = vadd.f32 0.0, %v3243
        %v3245 = vpop.f32.mrf.mxu0
        %v3246 = vpop.f32.mrf.mxu0
        %v3247 = vadd.f32 0.0, %v3246
        %v3248 = vpop.f32.mrf.mxu0
        %3249 = vmatprep.mubr.bf16.mxu0 0
        %3250 = vmatmul.mubr.bf16.gmra.mxu0 %v3156
        %v3251 = vpop.f32.mrf.mxu0
        %v3252 = vadd.f32 0.0, %v3251
        %v3253 = vpop.f32.mrf.mxu0
        %v3254 = vpop.f32.mrf.mxu0
        %v3255 = vadd.f32 0.0, %v3254
        %v3256 = vpop.f32.mrf.mxu0
        %3257 = vdwg.mxu0
        %v3258 = vld [vmem:[#allocation3] sm:$0xff]
        %v3259 = vld [vmem:[#allocation3 + $0x8] sm:$0xff]
        %v3260 = vld [vmem:[#allocation3 + $0x10] sm:$0xff]
        %v3261 = vld [vmem:[#allocation3 + $0x18] sm:$0xff]
        %v3262 = vld [vmem:[#allocation3 + $0x20] sm:$0xff]
        %v3263 = vld [vmem:[#allocation3 + $0x28] sm:$0xff]
        %v3264 = vld [vmem:[#allocation3 + $0x30] sm:$0xff]
        %v3265 = vld [vmem:[#allocation3 + $0x38] sm:$0xff]
        %v3266 = vld [vmem:[#allocation3 + $0x40] sm:$0xff]
        %v3267 = vld [vmem:[#allocation3 + $0x48] sm:$0xff]
        %v3268 = vld [vmem:[#allocation3 + $0x50] sm:$0xff]
        %v3269 = vld [vmem:[#allocation3 + $0x58] sm:$0xff]
        %v3270 = vld [vmem:[#allocation3 + $0x60] sm:$0xff]
        %v3271 = vld [vmem:[#allocation3 + $0x68] sm:$0xff]
        %v3272 = vld [vmem:[#allocation3 + $0x70] sm:$0xff]
        %v3273 = vld [vmem:[#allocation3 + $0x78] sm:$0xff]
        %v3274 = vadd.f32 %v3258, %v3196
        %v3275 = vadd.f32 %v3259, %v3199
        %v3276 = vadd.f32 %v3260, %v3204
        %v3277 = vadd.f32 %v3261, %v3207
        %v3278 = vadd.f32 %v3262, %v3212
        %v3279 = vadd.f32 %v3263, %v3215
        %v3280 = vadd.f32 %v3264, %v3220
        %v3281 = vadd.f32 %v3265, %v3223
        %v3282 = vadd.f32 %v3266, %v3228
        %v3283 = vadd.f32 %v3267, %v3231
        %v3284 = vadd.f32 %v3268, %v3236
        %v3285 = vadd.f32 %v3269, %v3239
        %v3286 = vadd.f32 %v3270, %v3244
        %v3287 = vadd.f32 %v3271, %v3247
        %v3288 = vadd.f32 %v3272, %v3252
        %v3289 = vadd.f32 %v3273, %v3255
        %3290 = vst.msk [vmem:[#allocation3] sm:$0xff] %vm2021, %v3274
        %3291 = vst.msk [vmem:[#allocation3 + $0x8] sm:$0xff] %vm2021, %v3275
        %3292 = vst.msk [vmem:[#allocation3 + $0x10] sm:$0xff] %vm2021, %v3276
        %3293 = vst.msk [vmem:[#allocation3 + $0x18] sm:$0xff] %vm2021, %v3277
        %3294 = vst.msk [vmem:[#allocation3 + $0x20] sm:$0xff] %vm2021, %v3278
        %3295 = vst.msk [vmem:[#allocation3 + $0x28] sm:$0xff] %vm2021, %v3279
        %3296 = vst.msk [vmem:[#allocation3 + $0x30] sm:$0xff] %vm2021, %v3280
        %3297 = vst.msk [vmem:[#allocation3 + $0x38] sm:$0xff] %vm2021, %v3281
        %3298 = vst.msk [vmem:[#allocation3 + $0x40] sm:$0xff] %vm2021, %v3282
        %3299 = vst.msk [vmem:[#allocation3 + $0x48] sm:$0xff] %vm2021, %v3283
        %3300 = vst.msk [vmem:[#allocation3 + $0x50] sm:$0xff] %vm2021, %v3284
        %3301 = vst.msk [vmem:[#allocation3 + $0x58] sm:$0xff] %vm2021, %v3285
        %3302 = vst.msk [vmem:[#allocation3 + $0x60] sm:$0xff] %vm2021, %v3286
        %3303 = vst.msk [vmem:[#allocation3 + $0x68] sm:$0xff] %vm2021, %v3287
        %3304 = vst.msk [vmem:[#allocation3 + $0x70] sm:$0xff] %vm2021, %v3288
        %3305 = vst.msk [vmem:[#allocation3 + $0x78] sm:$0xff] %vm2021, %v3289
        %v3306 = vld [vmem:[%s2773] sm:$0xc]
        %v3307 = vld [vmem:[%s2773 + $0x4] sm:$0xf]
        %v3308 = vld [vmem:[%s2773 + $0x8] sm:$0x3]
        %v3309 = vld [vmem:[%s2773 + $0xc] sm:$0xc]
        %v3310 = vld [vmem:[%s2773 + $0x10] sm:$0xf]
        %v3311 = vld [vmem:[%s2773 + $0x14] sm:$0x3]
        %v3312 = vld [vmem:[%s2773 + $0x18] sm:$0xc]
        %v3313 = vld [vmem:[%s2773 + $0x1c] sm:$0xf]
        %v3314 = vld [vmem:[%s2773 + $0x20] sm:$0x3]
        %v3315 = vld [vmem:[%s2773 + $0x24] sm:$0xc]
        %v3316 = vld [vmem:[%s2773 + $0x28] sm:$0xf]
        %v3317 = vld [vmem:[%s2773 + $0x2c] sm:$0x3]
        %v3318 = vld [vmem:[%s2773 + $0x30] sm:$0xc]
        %v3319 = vld [vmem:[%s2773 + $0x34] sm:$0xf]
        %v3320 = vld [vmem:[%s2773 + $0x38] sm:$0x3]
        %v3321 = vld [vmem:[%s2773 + $0x3c] sm:$0xc]
        %v3322 = vld [vmem:[%s2773 + $0x40] sm:$0xf]
        %v3323 = vld [vmem:[%s2773 + $0x44] sm:$0x3]
        %v3324 = vld [vmem:[%s2773 + $0x48] sm:$0xc]
        %v3325 = vld [vmem:[%s2773 + $0x4c] sm:$0xf]
        %v3326 = vld [vmem:[%s2773 + $0x50] sm:$0x3]
        %v3327 = vld [vmem:[%s2773 + $0x54] sm:$0xc]
        %v3328 = vld [vmem:[%s2773 + $0x58] sm:$0xf]
        %v3329 = vld [vmem:[%s2773 + $0x5c] sm:$0x3]
        %s3330 = scalar_lea.vmem %s3, 10
        %v3331 = vld [vmem:[%s3330] sm:$0x3]
        %v3356 = vrot.slane %v3306, 6
        %v3357 = vrot.slane %v3356, 4
        %v3358 = vrot.slane %v3307, 6
        %v3359 = vsel %vm2520, %v3357, %v3358
        %v3360 = vrot.slane %v3358, 4
        %v3361 = vrot.slane %v3308, 6
        %v3362 = vsel %vm2520, %v3360, %v3361
        %v3363 = vrot.slane %v3309, 6
        %v3364 = vrot.slane %v3363, 4
        %v3365 = vrot.slane %v3310, 6
        %v3366 = vsel %vm2520, %v3364, %v3365
        %v3367 = vrot.slane %v3365, 4
        %v3368 = vrot.slane %v3311, 6
        %v3369 = vsel %vm2520, %v3367, %v3368
        %v3370 = vrot.slane %v3312, 6
        %v3371 = vrot.slane %v3370, 4
        %v3372 = vrot.slane %v3313, 6
        %v3373 = vsel %vm2520, %v3371, %v3372
        %v3374 = vrot.slane %v3372, 4
        %v3375 = vrot.slane %v3314, 6
        %v3376 = vsel %vm2520, %v3374, %v3375
        %v3377 = vrot.slane %v3315, 6
        %v3378 = vrot.slane %v3377, 4
        %v3379 = vrot.slane %v3316, 6
        %v3380 = vsel %vm2520, %v3378, %v3379
        %v3381 = vrot.slane %v3379, 4
        %v3382 = vrot.slane %v3317, 6
        %v3383 = vsel %vm2520, %v3381, %v3382
        %v3384 = vrot.slane %v3318, 6
        %v3385 = vrot.slane %v3384, 4
        %v3386 = vrot.slane %v3319, 6
        %v3387 = vsel %vm2520, %v3385, %v3386
        %v3388 = vrot.slane %v3386, 4
        %v3389 = vrot.slane %v3320, 6
        %v3390 = vsel %vm2520, %v3388, %v3389
        %v3391 = vrot.slane %v3321, 6
        %v3392 = vrot.slane %v3391, 4
        %v3393 = vrot.slane %v3322, 6
        %v3394 = vsel %vm2520, %v3392, %v3393
        %v3395 = vrot.slane %v3393, 4
        %v3396 = vrot.slane %v3323, 6
        %v3397 = vsel %vm2520, %v3395, %v3396
        %v3398 = vrot.slane %v3324, 6
        %v3399 = vrot.slane %v3398, 4
        %v3400 = vrot.slane %v3325, 6
        %v3401 = vsel %vm2520, %v3399, %v3400
        %v3402 = vrot.slane %v3400, 4
        %v3403 = vrot.slane %v3326, 6
        %v3404 = vsel %vm2520, %v3402, %v3403
        %v3405 = vrot.slane %v3327, 6
        %v3406 = vrot.slane %v3405, 4
        %v3407 = vrot.slane %v3328, 6
        %v3408 = vsel %vm2520, %v3406, %v3407
        %v3409 = vrot.slane %v3407, 4
        %v3410 = vrot.slane %v3329, 6
        %v3411 = vsel %vm2520, %v3409, %v3410
        %v3412 = vunpack.c.l.b16 %v3359
        %v3413 = vunpack.c.l.b16 %v3362
        %v3414 = vunpack.c.l.b16 %v3366
        %v3415 = vunpack.c.l.b16 %v3369
        %v3416 = vunpack.c.l.b16 %v3373
        %v3417 = vunpack.c.l.b16 %v3376
        %v3418 = vunpack.c.l.b16 %v3380
        %v3419 = vunpack.c.l.b16 %v3383
        %v3420 = vunpack.c.l.b16 %v3387
        %v3421 = vunpack.c.l.b16 %v3390
        %v3422 = vunpack.c.l.b16 %v3394
        %v3423 = vunpack.c.l.b16 %v3397
        %v3424 = vunpack.c.l.b16 %v3401
        %v3425 = vunpack.c.l.b16 %v3404
        %v3426 = vunpack.c.l.b16 %v3408
        %v3427 = vunpack.c.l.b16 %v3411
        %v3428 = vpack.c.b16 %v3413, %v3412
        %v3429 = vpack.c.b16 %v3415, %v3414
        %v3430 = vpack.c.b16 %v3417, %v3416
        %v3431 = vpack.c.b16 %v3419, %v3418
        %v3432 = vpack.c.b16 %v3421, %v3420
        %v3433 = vpack.c.b16 %v3423, %v3422
        %v3434 = vpack.c.b16 %v3425, %v3424
        %v3435 = vpack.c.b16 %v3427, %v3426
        %v3437 = vsel %vm2021, %v3428, 0
        %v3440 = vsel %vm2021, %v3429, 0
        %v3443 = vsel %vm2021, %v3430, 0
        %v3446 = vsel %vm2021, %v3431, 0
        %v3449 = vsel %vm2021, %v3432, 0
        %v3452 = vsel %vm2021, %v3433, 0
        %v3455 = vsel %vm2021, %v3434, 0
        %v3458 = vsel %vm2021, %v3435, 0
        %v3461 = vsel %vm2046, %v3331, 0
        %3463 = vmatprep.subr.bf16.mxu0 0
        %3464 = vmatpush1.bf16.msra.mxu0 0
        %3465 = vmatprep.subr.bf16.mxu0 0
        %3466 = vmatpush1.bf16.msra.mxu0 0
        %3467 = vmatprep.subr.bf16.mxu0 0
        %3468 = vmatpush1.bf16.msra.mxu0 0
        %3469 = vmatprep.subr.bf16.mxu0 0
        %3470 = vmatpush1.bf16.msra.mxu0 0
        %3471 = vmatprep.subr.bf16.mxu0 0
        %3472 = vmatpush1.bf16.msra.mxu0 0
        %3473 = vmatprep.subr.bf16.mxu0 0
        %3474 = vmatpush1.bf16.msra.mxu0 0
        %3475 = vmatprep.subr.bf16.mxu0 0
        %3476 = vmatpush1.bf16.msra.mxu0 0
        %3477 = vmatprep.subr.bf16.mxu0 0
        %3478 = vmatpush1.bf16.msra.mxu0 %v3461
        %3479 = vmatprep.subr.bf16.mxu0 0
        %3480 = vmatpush2.bf16.msra.mxu0 0
        %3481 = vmatprep.subr.bf16.mxu0 0
        %3482 = vmatpush2.bf16.msra.mxu0 0
        %3483 = vmatprep.subr.bf16.mxu0 0
        %3484 = vmatpush2.bf16.msra.mxu0 0
        %3485 = vmatprep.subr.bf16.mxu0 0
        %3486 = vmatpush2.bf16.msra.mxu0 0
        %3487 = vmatprep.subr.bf16.mxu0 0
        %3488 = vmatpush2.bf16.msra.mxu0 0
        %3489 = vmatprep.subr.bf16.mxu0 0
        %3490 = vmatpush2.bf16.msra.mxu0 0
        %3491 = vmatprep.subr.bf16.mxu0 0
        %3492 = vmatpush2.bf16.msra.mxu0 0
        %3493 = vmatprep.subr.bf16.mxu0 0
        %3494 = vmatpush2.bf16.msra.mxu0 0
        %3495 = vmatprep.mubr.bf16.mxu0 0
        %3496 = vmatmul.mubr.bf16.gmra.mxu0 %v3437
        %v3497 = vpop.f32.mrf.mxu0
        %v3498 = vadd.f32 0.0, %v3497
        %v3499 = vpop.f32.mrf.mxu0
        %v3500 = vpop.f32.mrf.mxu0
        %v3501 = vadd.f32 0.0, %v3500
        %v3502 = vpop.f32.mrf.mxu0
        %3503 = vmatprep.mubr.bf16.mxu0 0
        %3504 = vmatmul.mubr.bf16.gmra.mxu0 %v3440
        %v3505 = vpop.f32.mrf.mxu0
        %v3506 = vadd.f32 0.0, %v3505
        %v3507 = vpop.f32.mrf.mxu0
        %v3508 = vpop.f32.mrf.mxu0
        %v3509 = vadd.f32 0.0, %v3508
        %v3510 = vpop.f32.mrf.mxu0
        %3511 = vmatprep.mubr.bf16.mxu0 0
        %3512 = vmatmul.mubr.bf16.gmra.mxu0 %v3443
        %v3513 = vpop.f32.mrf.mxu0
        %v3514 = vadd.f32 0.0, %v3513
        %v3515 = vpop.f32.mrf.mxu0
        %v3516 = vpop.f32.mrf.mxu0
        %v3517 = vadd.f32 0.0, %v3516
        %v3518 = vpop.f32.mrf.mxu0
        %3519 = vmatprep.mubr.bf16.mxu0 0
        %3520 = vmatmul.mubr.bf16.gmra.mxu0 %v3446
        %v3521 = vpop.f32.mrf.mxu0
        %v3522 = vadd.f32 0.0, %v3521
        %v3523 = vpop.f32.mrf.mxu0
        %v3524 = vpop.f32.mrf.mxu0
        %v3525 = vadd.f32 0.0, %v3524
        %v3526 = vpop.f32.mrf.mxu0
        %3527 = vmatprep.mubr.bf16.mxu0 0
        %3528 = vmatmul.mubr.bf16.gmra.mxu0 %v3449
        %v3529 = vpop.f32.mrf.mxu0
        %v3530 = vadd.f32 0.0, %v3529
        %v3531 = vpop.f32.mrf.mxu0
        %v3532 = vpop.f32.mrf.mxu0
        %v3533 = vadd.f32 0.0, %v3532
        %v3534 = vpop.f32.mrf.mxu0
        %3535 = vmatprep.mubr.bf16.mxu0 0
        %3536 = vmatmul.mubr.bf16.gmra.mxu0 %v3452
        %v3537 = vpop.f32.mrf.mxu0
        %v3538 = vadd.f32 0.0, %v3537
        %v3539 = vpop.f32.mrf.mxu0
        %v3540 = vpop.f32.mrf.mxu0
        %v3541 = vadd.f32 0.0, %v3540
        %v3542 = vpop.f32.mrf.mxu0
        %3543 = vmatprep.mubr.bf16.mxu0 0
        %3544 = vmatmul.mubr.bf16.gmra.mxu0 %v3455
        %v3545 = vpop.f32.mrf.mxu0
        %v3546 = vadd.f32 0.0, %v3545
        %v3547 = vpop.f32.mrf.mxu0
        %v3548 = vpop.f32.mrf.mxu0
        %v3549 = vadd.f32 0.0, %v3548
        %v3550 = vpop.f32.mrf.mxu0
        %3551 = vmatprep.mubr.bf16.mxu0 0
        %3552 = vmatmul.mubr.bf16.gmra.mxu0 %v3458
        %v3553 = vpop.f32.mrf.mxu0
        %v3554 = vadd.f32 0.0, %v3553
        %v3555 = vpop.f32.mrf.mxu0
        %v3556 = vpop.f32.mrf.mxu0
        %v3557 = vadd.f32 0.0, %v3556
        %v3558 = vpop.f32.mrf.mxu0
        %3559 = vdwg.mxu0
        %v3560 = vld [vmem:[#allocation3] sm:$0xff]
        %v3561 = vld [vmem:[#allocation3 + $0x8] sm:$0xff]
        %v3562 = vld [vmem:[#allocation3 + $0x10] sm:$0xff]
        %v3563 = vld [vmem:[#allocation3 + $0x18] sm:$0xff]
        %v3564 = vld [vmem:[#allocation3 + $0x20] sm:$0xff]
        %v3565 = vld [vmem:[#allocation3 + $0x28] sm:$0xff]
        %v3566 = vld [vmem:[#allocation3 + $0x30] sm:$0xff]
        %v3567 = vld [vmem:[#allocation3 + $0x38] sm:$0xff]
        %v3568 = vld [vmem:[#allocation3 + $0x40] sm:$0xff]
        %v3569 = vld [vmem:[#allocation3 + $0x48] sm:$0xff]
        %v3570 = vld [vmem:[#allocation3 + $0x50] sm:$0xff]
        %v3571 = vld [vmem:[#allocation3 + $0x58] sm:$0xff]
        %v3572 = vld [vmem:[#allocation3 + $0x60] sm:$0xff]
        %v3573 = vld [vmem:[#allocation3 + $0x68] sm:$0xff]
        %v3574 = vld [vmem:[#allocation3 + $0x70] sm:$0xff]
        %v3575 = vld [vmem:[#allocation3 + $0x78] sm:$0xff]
        %v3576 = vadd.f32 %v3560, %v3498
        %v3577 = vadd.f32 %v3561, %v3501
        %v3578 = vadd.f32 %v3562, %v3506
        %v3579 = vadd.f32 %v3563, %v3509
        %v3580 = vadd.f32 %v3564, %v3514
        %v3581 = vadd.f32 %v3565, %v3517
        %v3582 = vadd.f32 %v3566, %v3522
        %v3583 = vadd.f32 %v3567, %v3525
        %v3584 = vadd.f32 %v3568, %v3530
        %v3585 = vadd.f32 %v3569, %v3533
        %v3586 = vadd.f32 %v3570, %v3538
        %v3587 = vadd.f32 %v3571, %v3541
        %v3588 = vadd.f32 %v3572, %v3546
        %v3589 = vadd.f32 %v3573, %v3549
        %v3590 = vadd.f32 %v3574, %v3554
        %v3591 = vadd.f32 %v3575, %v3557
        %3592 = vst.msk [vmem:[#allocation3] sm:$0xff] %vm2021, %v3576
        %3593 = vst.msk [vmem:[#allocation3 + $0x8] sm:$0xff] %vm2021, %v3577
        %3594 = vst.msk [vmem:[#allocation3 + $0x10] sm:$0xff] %vm2021, %v3578
        %3595 = vst.msk [vmem:[#allocation3 + $0x18] sm:$0xff] %vm2021, %v3579
        %3596 = vst.msk [vmem:[#allocation3 + $0x20] sm:$0xff] %vm2021, %v3580
        %3597 = vst.msk [vmem:[#allocation3 + $0x28] sm:$0xff] %vm2021, %v3581
        %3598 = vst.msk [vmem:[#allocation3 + $0x30] sm:$0xff] %vm2021, %v3582
        %3599 = vst.msk [vmem:[#allocation3 + $0x38] sm:$0xff] %vm2021, %v3583
        %3600 = vst.msk [vmem:[#allocation3 + $0x40] sm:$0xff] %vm2021, %v3584
        %3601 = vst.msk [vmem:[#allocation3 + $0x48] sm:$0xff] %vm2021, %v3585
        %3602 = vst.msk [vmem:[#allocation3 + $0x50] sm:$0xff] %vm2021, %v3586
        %3603 = vst.msk [vmem:[#allocation3 + $0x58] sm:$0xff] %vm2021, %v3587
        %3604 = vst.msk [vmem:[#allocation3 + $0x60] sm:$0xff] %vm2021, %v3588
        %3605 = vst.msk [vmem:[#allocation3 + $0x68] sm:$0xff] %vm2021, %v3589
        %3606 = vst.msk [vmem:[#allocation3 + $0x70] sm:$0xff] %vm2021, %v3590
        %3607 = vst.msk [vmem:[#allocation3 + $0x78] sm:$0xff] %vm2021, %v3591
        %s3608 = scalar_lea.vmem [#allocation2], 48
        %v3609 = vld [vmem:[%s3608] sm:$0xf]
        %v3610 = vld [vmem:[%s3608 + $0x4] sm:$0xf]
        %v3611 = vld [vmem:[%s3608 + $0xc] sm:$0xf]
        %v3612 = vld [vmem:[%s3608 + $0x10] sm:$0xf]
        %v3613 = vld [vmem:[%s3608 + $0x18] sm:$0xf]
        %v3614 = vld [vmem:[%s3608 + $0x1c] sm:$0xf]
        %v3615 = vld [vmem:[%s3608 + $0x24] sm:$0xf]
        %v3616 = vld [vmem:[%s3608 + $0x28] sm:$0xf]
        %v3617 = vld [vmem:[%s3608 + $0x30] sm:$0xf]
        %v3618 = vld [vmem:[%s3608 + $0x34] sm:$0xf]
        %v3619 = vld [vmem:[%s3608 + $0x3c] sm:$0xf]
        %v3620 = vld [vmem:[%s3608 + $0x40] sm:$0xf]
        %v3621 = vld [vmem:[%s3608 + $0x48] sm:$0xf]
        %v3622 = vld [vmem:[%s3608 + $0x4c] sm:$0xf]
        %v3623 = vld [vmem:[%s3608 + $0x54] sm:$0xf]
        %v3624 = vld [vmem:[%s3608 + $0x58] sm:$0xf]
        %s3625 = scalar_lea.vmem %s3, 12
        %v3626 = vld [vmem:[%s3625] sm:$0x3]
        %v3643 = vunpack.c.l.b16 %v3609
        %v3644 = vunpack.c.l.b16 %v3610
        %v3645 = vunpack.c.l.b16 %v3611
        %v3646 = vunpack.c.l.b16 %v3612
        %v3647 = vunpack.c.l.b16 %v3613
        %v3648 = vunpack.c.l.b16 %v3614
        %v3649 = vunpack.c.l.b16 %v3615
        %v3650 = vunpack.c.l.b16 %v3616
        %v3651 = vunpack.c.l.b16 %v3617
        %v3652 = vunpack.c.l.b16 %v3618
        %v3653 = vunpack.c.l.b16 %v3619
        %v3654 = vunpack.c.l.b16 %v3620
        %v3655 = vunpack.c.l.b16 %v3621
        %v3656 = vunpack.c.l.b16 %v3622
        %v3657 = vunpack.c.l.b16 %v3623
        %v3658 = vunpack.c.l.b16 %v3624
        %v3659 = vpack.c.b16 %v3644, %v3643
        %v3660 = vpack.c.b16 %v3646, %v3645
        %v3661 = vpack.c.b16 %v3648, %v3647
        %v3662 = vpack.c.b16 %v3650, %v3649
        %v3663 = vpack.c.b16 %v3652, %v3651
        %v3664 = vpack.c.b16 %v3654, %v3653
        %v3665 = vpack.c.b16 %v3656, %v3655
        %v3666 = vpack.c.b16 %v3658, %v3657
        %v3668 = vsel %vm2021, %v3659, 0
        %v3671 = vsel %vm2021, %v3660, 0
        %v3674 = vsel %vm2021, %v3661, 0
        %v3677 = vsel %vm2021, %v3662, 0
        %v3680 = vsel %vm2021, %v3663, 0
        %v3683 = vsel %vm2021, %v3664, 0
        %v3686 = vsel %vm2021, %v3665, 0
        %v3689 = vsel %vm2021, %v3666, 0
        %v3692 = vsel %vm2046, %v3626, 0
        %3694 = vmatprep.subr.bf16.mxu0 0
        %3695 = vmatpush1.bf16.msra.mxu0 0
        %3696 = vmatprep.subr.bf16.mxu0 0
        %3697 = vmatpush1.bf16.msra.mxu0 0
        %3698 = vmatprep.subr.bf16.mxu0 0
        %3699 = vmatpush1.bf16.msra.mxu0 0
        %3700 = vmatprep.subr.bf16.mxu0 0
        %3701 = vmatpush1.bf16.msra.mxu0 0
        %3702 = vmatprep.subr.bf16.mxu0 0
        %3703 = vmatpush1.bf16.msra.mxu0 0
        %3704 = vmatprep.subr.bf16.mxu0 0
        %3705 = vmatpush1.bf16.msra.mxu0 0
        %3706 = vmatprep.subr.bf16.mxu0 0
        %3707 = vmatpush1.bf16.msra.mxu0 0
        %3708 = vmatprep.subr.bf16.mxu0 0
        %3709 = vmatpush1.bf16.msra.mxu0 %v3692
        %3710 = vmatprep.subr.bf16.mxu0 0
        %3711 = vmatpush2.bf16.msra.mxu0 0
        %3712 = vmatprep.subr.bf16.mxu0 0
        %3713 = vmatpush2.bf16.msra.mxu0 0
        %3714 = vmatprep.subr.bf16.mxu0 0
        %3715 = vmatpush2.bf16.msra.mxu0 0
        %3716 = vmatprep.subr.bf16.mxu0 0
        %3717 = vmatpush2.bf16.msra.mxu0 0
        %3718 = vmatprep.subr.bf16.mxu0 0
        %3719 = vmatpush2.bf16.msra.mxu0 0
        %3720 = vmatprep.subr.bf16.mxu0 0
        %3721 = vmatpush2.bf16.msra.mxu0 0
        %3722 = vmatprep.subr.bf16.mxu0 0
        %3723 = vmatpush2.bf16.msra.mxu0 0
        %3724 = vmatprep.subr.bf16.mxu0 0
        %3725 = vmatpush2.bf16.msra.mxu0 0
        %3726 = vmatprep.mubr.bf16.mxu0 0
        %3727 = vmatmul.mubr.bf16.gmra.mxu0 %v3668
        %v3728 = vpop.f32.mrf.mxu0
        %v3729 = vadd.f32 0.0, %v3728
        %v3730 = vpop.f32.mrf.mxu0
        %v3731 = vpop.f32.mrf.mxu0
        %v3732 = vadd.f32 0.0, %v3731
        %v3733 = vpop.f32.mrf.mxu0
        %3734 = vmatprep.mubr.bf16.mxu0 0
        %3735 = vmatmul.mubr.bf16.gmra.mxu0 %v3671
        %v3736 = vpop.f32.mrf.mxu0
        %v3737 = vadd.f32 0.0, %v3736
        %v3738 = vpop.f32.mrf.mxu0
        %v3739 = vpop.f32.mrf.mxu0
        %v3740 = vadd.f32 0.0, %v3739
        %v3741 = vpop.f32.mrf.mxu0
        %3742 = vmatprep.mubr.bf16.mxu0 0
        %3743 = vmatmul.mubr.bf16.gmra.mxu0 %v3674
        %v3744 = vpop.f32.mrf.mxu0
        %v3745 = vadd.f32 0.0, %v3744
        %v3746 = vpop.f32.mrf.mxu0
        %v3747 = vpop.f32.mrf.mxu0
        %v3748 = vadd.f32 0.0, %v3747
        %v3749 = vpop.f32.mrf.mxu0
        %3750 = vmatprep.mubr.bf16.mxu0 0
        %3751 = vmatmul.mubr.bf16.gmra.mxu0 %v3677
        %v3752 = vpop.f32.mrf.mxu0
        %v3753 = vadd.f32 0.0, %v3752
        %v3754 = vpop.f32.mrf.mxu0
        %v3755 = vpop.f32.mrf.mxu0
        %v3756 = vadd.f32 0.0, %v3755
        %v3757 = vpop.f32.mrf.mxu0
        %3758 = vmatprep.mubr.bf16.mxu0 0
        %3759 = vmatmul.mubr.bf16.gmra.mxu0 %v3680
        %v3760 = vpop.f32.mrf.mxu0
        %v3761 = vadd.f32 0.0, %v3760
        %v3762 = vpop.f32.mrf.mxu0
        %v3763 = vpop.f32.mrf.mxu0
        %v3764 = vadd.f32 0.0, %v3763
        %v3765 = vpop.f32.mrf.mxu0
        %3766 = vmatprep.mubr.bf16.mxu0 0
        %3767 = vmatmul.mubr.bf16.gmra.mxu0 %v3683
        %v3768 = vpop.f32.mrf.mxu0
        %v3769 = vadd.f32 0.0, %v3768
        %v3770 = vpop.f32.mrf.mxu0
        %v3771 = vpop.f32.mrf.mxu0
        %v3772 = vadd.f32 0.0, %v3771
        %v3773 = vpop.f32.mrf.mxu0
        %3774 = vmatprep.mubr.bf16.mxu0 0
        %3775 = vmatmul.mubr.bf16.gmra.mxu0 %v3686
        %v3776 = vpop.f32.mrf.mxu0
        %v3777 = vadd.f32 0.0, %v3776
        %v3778 = vpop.f32.mrf.mxu0
        %v3779 = vpop.f32.mrf.mxu0
        %v3780 = vadd.f32 0.0, %v3779
        %v3781 = vpop.f32.mrf.mxu0
        %3782 = vmatprep.mubr.bf16.mxu0 0
        %3783 = vmatmul.mubr.bf16.gmra.mxu0 %v3689
        %v3784 = vpop.f32.mrf.mxu0
        %v3785 = vadd.f32 0.0, %v3784
        %v3786 = vpop.f32.mrf.mxu0
        %v3787 = vpop.f32.mrf.mxu0
        %v3788 = vadd.f32 0.0, %v3787
        %v3789 = vpop.f32.mrf.mxu0
        %3790 = vdwg.mxu0
        %v3791 = vld [vmem:[#allocation3] sm:$0xff]
        %v3792 = vld [vmem:[#allocation3 + $0x8] sm:$0xff]
        %v3793 = vld [vmem:[#allocation3 + $0x10] sm:$0xff]
        %v3794 = vld [vmem:[#allocation3 + $0x18] sm:$0xff]
        %v3795 = vld [vmem:[#allocation3 + $0x20] sm:$0xff]
        %v3796 = vld [vmem:[#allocation3 + $0x28] sm:$0xff]
        %v3797 = vld [vmem:[#allocation3 + $0x30] sm:$0xff]
        %v3798 = vld [vmem:[#allocation3 + $0x38] sm:$0xff]
        %v3799 = vld [vmem:[#allocation3 + $0x40] sm:$0xff]
        %v3800 = vld [vmem:[#allocation3 + $0x48] sm:$0xff]
        %v3801 = vld [vmem:[#allocation3 + $0x50] sm:$0xff]
        %v3802 = vld [vmem:[#allocation3 + $0x58] sm:$0xff]
        %v3803 = vld [vmem:[#allocation3 + $0x60] sm:$0xff]
        %v3804 = vld [vmem:[#allocation3 + $0x68] sm:$0xff]
        %v3805 = vld [vmem:[#allocation3 + $0x70] sm:$0xff]
        %v3806 = vld [vmem:[#allocation3 + $0x78] sm:$0xff]
        %v3807 = vadd.f32 %v3791, %v3729
        %v3808 = vadd.f32 %v3792, %v3732
        %v3809 = vadd.f32 %v3793, %v3737
        %v3810 = vadd.f32 %v3794, %v3740
        %v3811 = vadd.f32 %v3795, %v3745
        %v3812 = vadd.f32 %v3796, %v3748
        %v3813 = vadd.f32 %v3797, %v3753
        %v3814 = vadd.f32 %v3798, %v3756
        %v3815 = vadd.f32 %v3799, %v3761
        %v3816 = vadd.f32 %v3800, %v3764
        %v3817 = vadd.f32 %v3801, %v3769
        %v3818 = vadd.f32 %v3802, %v3772
        %v3819 = vadd.f32 %v3803, %v3777
        %v3820 = vadd.f32 %v3804, %v3780
        %v3821 = vadd.f32 %v3805, %v3785
        %v3822 = vadd.f32 %v3806, %v3788
        %3823 = vst.msk [vmem:[#allocation3] sm:$0xff] %vm2021, %v3807
        %3824 = vst.msk [vmem:[#allocation3 + $0x8] sm:$0xff] %vm2021, %v3808
        %3825 = vst.msk [vmem:[#allocation3 + $0x10] sm:$0xff] %vm2021, %v3809
        %3826 = vst.msk [vmem:[#allocation3 + $0x18] sm:$0xff] %vm2021, %v3810
        %3827 = vst.msk [vmem:[#allocation3 + $0x20] sm:$0xff] %vm2021, %v3811
        %3828 = vst.msk [vmem:[#allocation3 + $0x28] sm:$0xff] %vm2021, %v3812
        %3829 = vst.msk [vmem:[#allocation3 + $0x30] sm:$0xff] %vm2021, %v3813
        %3830 = vst.msk [vmem:[#allocation3 + $0x38] sm:$0xff] %vm2021, %v3814
        %3831 = vst.msk [vmem:[#allocation3 + $0x40] sm:$0xff] %vm2021, %v3815
        %3832 = vst.msk [vmem:[#allocation3 + $0x48] sm:$0xff] %vm2021, %v3816
        %3833 = vst.msk [vmem:[#allocation3 + $0x50] sm:$0xff] %vm2021, %v3817
        %3834 = vst.msk [vmem:[#allocation3 + $0x58] sm:$0xff] %vm2021, %v3818
        %3835 = vst.msk [vmem:[#allocation3 + $0x60] sm:$0xff] %vm2021, %v3819
        %3836 = vst.msk [vmem:[#allocation3 + $0x68] sm:$0xff] %vm2021, %v3820
        %3837 = vst.msk [vmem:[#allocation3 + $0x70] sm:$0xff] %vm2021, %v3821
        %3838 = vst.msk [vmem:[#allocation3 + $0x78] sm:$0xff] %vm2021, %v3822
        %v3839 = vld [vmem:[%s3608] sm:$0xe]
        %v3840 = vld [vmem:[%s3608 + $0x4] sm:$0xf]
        %v3841 = vld [vmem:[%s3608 + $0x8] sm:$0x1]
        %v3842 = vld [vmem:[%s3608 + $0xc] sm:$0xe]
        %v3843 = vld [vmem:[%s3608 + $0x10] sm:$0xf]
        %v3844 = vld [vmem:[%s3608 + $0x14] sm:$0x1]
        %v3845 = vld [vmem:[%s3608 + $0x18] sm:$0xe]
        %v3846 = vld [vmem:[%s3608 + $0x1c] sm:$0xf]
        %v3847 = vld [vmem:[%s3608 + $0x20] sm:$0x1]
        %v3848 = vld [vmem:[%s3608 + $0x24] sm:$0xe]
        %v3849 = vld [vmem:[%s3608 + $0x28] sm:$0xf]
        %v3850 = vld [vmem:[%s3608 + $0x2c] sm:$0x1]
        %v3851 = vld [vmem:[%s3608 + $0x30] sm:$0xe]
        %v3852 = vld [vmem:[%s3608 + $0x34] sm:$0xf]
        %v3853 = vld [vmem:[%s3608 + $0x38] sm:$0x1]
        %v3854 = vld [vmem:[%s3608 + $0x3c] sm:$0xe]
        %v3855 = vld [vmem:[%s3608 + $0x40] sm:$0xf]
        %v3856 = vld [vmem:[%s3608 + $0x44] sm:$0x1]
        %v3857 = vld [vmem:[%s3608 + $0x48] sm:$0xe]
        %v3858 = vld [vmem:[%s3608 + $0x4c] sm:$0xf]
        %v3859 = vld [vmem:[%s3608 + $0x50] sm:$0x1]
        %v3860 = vld [vmem:[%s3608 + $0x54] sm:$0xe]
        %v3861 = vld [vmem:[%s3608 + $0x58] sm:$0xf]
        %v3862 = vld [vmem:[%s3608 + $0x5c] sm:$0x1]
        %s3863 = scalar_lea.vmem %s3, 14
        %v3864 = vld [vmem:[%s3863] sm:$0x3]
        %v3889 = vrot.slane %v3839, 5
        %v3890 = vrot.slane %v3889, 4
        %v3891 = vrot.slane %v3840, 5
        %v3892 = vsel %vm2215, %v3890, %v3891
        %v3893 = vrot.slane %v3891, 4
        %v3894 = vrot.slane %v3841, 5
        %v3895 = vsel %vm2215, %v3893, %v3894
        %v3896 = vrot.slane %v3842, 5
        %v3897 = vrot.slane %v3896, 4
        %v3898 = vrot.slane %v3843, 5
        %v3899 = vsel %vm2215, %v3897, %v3898
        %v3900 = vrot.slane %v3898, 4
        %v3901 = vrot.slane %v3844, 5
        %v3902 = vsel %vm2215, %v3900, %v3901
        %v3903 = vrot.slane %v3845, 5
        %v3904 = vrot.slane %v3903, 4
        %v3905 = vrot.slane %v3846, 5
        %v3906 = vsel %vm2215, %v3904, %v3905
        %v3907 = vrot.slane %v3905, 4
        %v3908 = vrot.slane %v3847, 5
        %v3909 = vsel %vm2215, %v3907, %v3908
        %v3910 = vrot.slane %v3848, 5
        %v3911 = vrot.slane %v3910, 4
        %v3912 = vrot.slane %v3849, 5
        %v3913 = vsel %vm2215, %v3911, %v3912
        %v3914 = vrot.slane %v3912, 4
        %v3915 = vrot.slane %v3850, 5
        %v3916 = vsel %vm2215, %v3914, %v3915
        %v3917 = vrot.slane %v3851, 5
        %v3918 = vrot.slane %v3917, 4
        %v3919 = vrot.slane %v3852, 5
        %v3920 = vsel %vm2215, %v3918, %v3919
        %v3921 = vrot.slane %v3919, 4
        %v3922 = vrot.slane %v3853, 5
        %v3923 = vsel %vm2215, %v3921, %v3922
        %v3924 = vrot.slane %v3854, 5
        %v3925 = vrot.slane %v3924, 4
        %v3926 = vrot.slane %v3855, 5
        %v3927 = vsel %vm2215, %v3925, %v3926
        %v3928 = vrot.slane %v3926, 4
        %v3929 = vrot.slane %v3856, 5
        %v3930 = vsel %vm2215, %v3928, %v3929
        %v3931 = vrot.slane %v3857, 5
        %v3932 = vrot.slane %v3931, 4
        %v3933 = vrot.slane %v3858, 5
        %v3934 = vsel %vm2215, %v3932, %v3933
        %v3935 = vrot.slane %v3933, 4
        %v3936 = vrot.slane %v3859, 5
        %v3937 = vsel %vm2215, %v3935, %v3936
        %v3938 = vrot.slane %v3860, 5
        %v3939 = vrot.slane %v3938, 4
        %v3940 = vrot.slane %v3861, 5
        %v3941 = vsel %vm2215, %v3939, %v3940
        %v3942 = vrot.slane %v3940, 4
        %v3943 = vrot.slane %v3862, 5
        %v3944 = vsel %vm2215, %v3942, %v3943
        %v3945 = vunpack.c.l.b16 %v3892
        %v3946 = vunpack.c.l.b16 %v3895
        %v3947 = vunpack.c.l.b16 %v3899
        %v3948 = vunpack.c.l.b16 %v3902
        %v3949 = vunpack.c.l.b16 %v3906
        %v3950 = vunpack.c.l.b16 %v3909
        %v3951 = vunpack.c.l.b16 %v3913
        %v3952 = vunpack.c.l.b16 %v3916
        %v3953 = vunpack.c.l.b16 %v3920
        %v3954 = vunpack.c.l.b16 %v3923
        %v3955 = vunpack.c.l.b16 %v3927
        %v3956 = vunpack.c.l.b16 %v3930
        %v3957 = vunpack.c.l.b16 %v3934
        %v3958 = vunpack.c.l.b16 %v3937
        %v3959 = vunpack.c.l.b16 %v3941
        %v3960 = vunpack.c.l.b16 %v3944
        %v3961 = vpack.c.b16 %v3946, %v3945
        %v3962 = vpack.c.b16 %v3948, %v3947
        %v3963 = vpack.c.b16 %v3950, %v3949
        %v3964 = vpack.c.b16 %v3952, %v3951
        %v3965 = vpack.c.b16 %v3954, %v3953
        %v3966 = vpack.c.b16 %v3956, %v3955
        %v3967 = vpack.c.b16 %v3958, %v3957
        %v3968 = vpack.c.b16 %v3960, %v3959
        %v3970 = vsel %vm2021, %v3961, 0
        %v3973 = vsel %vm2021, %v3962, 0
        %v3976 = vsel %vm2021, %v3963, 0
        %v3979 = vsel %vm2021, %v3964, 0
        %v3982 = vsel %vm2021, %v3965, 0
        %v3985 = vsel %vm2021, %v3966, 0
        %v3988 = vsel %vm2021, %v3967, 0
        %v3991 = vsel %vm2021, %v3968, 0
        %v3994 = vsel %vm2046, %v3864, 0
        %3996 = vmatprep.subr.bf16.mxu0 0
        %3997 = vmatpush1.bf16.msra.mxu0 0
        %3998 = vmatprep.subr.bf16.mxu0 0
        %3999 = vmatpush1.bf16.msra.mxu0 0
        %4000 = vmatprep.subr.bf16.mxu0 0
        %4001 = vmatpush1.bf16.msra.mxu0 0
        %4002 = vmatprep.subr.bf16.mxu0 0
        %4003 = vmatpush1.bf16.msra.mxu0 0
        %4004 = vmatprep.subr.bf16.mxu0 0
        %4005 = vmatpush1.bf16.msra.mxu0 0
        %4006 = vmatprep.subr.bf16.mxu0 0
        %4007 = vmatpush1.bf16.msra.mxu0 0
        %4008 = vmatprep.subr.bf16.mxu0 0
        %4009 = vmatpush1.bf16.msra.mxu0 0
        %4010 = vmatprep.subr.bf16.mxu0 0
        %4011 = vmatpush1.bf16.msra.mxu0 %v3994
        %4012 = vmatprep.subr.bf16.mxu0 0
        %4013 = vmatpush2.bf16.msra.mxu0 0
        %4014 = vmatprep.subr.bf16.mxu0 0
        %4015 = vmatpush2.bf16.msra.mxu0 0
        %4016 = vmatprep.subr.bf16.mxu0 0
        %4017 = vmatpush2.bf16.msra.mxu0 0
        %4018 = vmatprep.subr.bf16.mxu0 0
        %4019 = vmatpush2.bf16.msra.mxu0 0
        %4020 = vmatprep.subr.bf16.mxu0 0
        %4021 = vmatpush2.bf16.msra.mxu0 0
        %4022 = vmatprep.subr.bf16.mxu0 0
        %4023 = vmatpush2.bf16.msra.mxu0 0
        %4024 = vmatprep.subr.bf16.mxu0 0
        %4025 = vmatpush2.bf16.msra.mxu0 0
        %4026 = vmatprep.subr.bf16.mxu0 0
        %4027 = vmatpush2.bf16.msra.mxu0 0
        %4028 = vmatprep.mubr.bf16.mxu0 0
        %4029 = vmatmul.mubr.bf16.gmra.mxu0 %v3970
        %v4030 = vpop.f32.mrf.mxu0
        %v4031 = vadd.f32 0.0, %v4030
        %v4032 = vpop.f32.mrf.mxu0
        %v4033 = vpop.f32.mrf.mxu0
        %v4034 = vadd.f32 0.0, %v4033
        %v4035 = vpop.f32.mrf.mxu0
        %4036 = vmatprep.mubr.bf16.mxu0 0
        %4037 = vmatmul.mubr.bf16.gmra.mxu0 %v3973
        %v4038 = vpop.f32.mrf.mxu0
        %v4039 = vadd.f32 0.0, %v4038
        %v4040 = vpop.f32.mrf.mxu0
        %v4041 = vpop.f32.mrf.mxu0
        %v4042 = vadd.f32 0.0, %v4041
        %v4043 = vpop.f32.mrf.mxu0
        %4044 = vmatprep.mubr.bf16.mxu0 0
        %4045 = vmatmul.mubr.bf16.gmra.mxu0 %v3976
        %v4046 = vpop.f32.mrf.mxu0
        %v4047 = vadd.f32 0.0, %v4046
        %v4048 = vpop.f32.mrf.mxu0
        %v4049 = vpop.f32.mrf.mxu0
        %v4050 = vadd.f32 0.0, %v4049
        %v4051 = vpop.f32.mrf.mxu0
        %4052 = vmatprep.mubr.bf16.mxu0 0
        %4053 = vmatmul.mubr.bf16.gmra.mxu0 %v3979
        %v4054 = vpop.f32.mrf.mxu0
        %v4055 = vadd.f32 0.0, %v4054
        %v4056 = vpop.f32.mrf.mxu0
        %v4057 = vpop.f32.mrf.mxu0
        %v4058 = vadd.f32 0.0, %v4057
        %v4059 = vpop.f32.mrf.mxu0
        %4060 = vmatprep.mubr.bf16.mxu0 0
        %4061 = vmatmul.mubr.bf16.gmra.mxu0 %v3982
        %v4062 = vpop.f32.mrf.mxu0
        %v4063 = vadd.f32 0.0, %v4062
        %v4064 = vpop.f32.mrf.mxu0
        %v4065 = vpop.f32.mrf.mxu0
        %v4066 = vadd.f32 0.0, %v4065
        %v4067 = vpop.f32.mrf.mxu0
        %4068 = vmatprep.mubr.bf16.mxu0 0
        %4069 = vmatmul.mubr.bf16.gmra.mxu0 %v3985
        %v4070 = vpop.f32.mrf.mxu0
        %v4071 = vadd.f32 0.0, %v4070
        %v4072 = vpop.f32.mrf.mxu0
        %v4073 = vpop.f32.mrf.mxu0
        %v4074 = vadd.f32 0.0, %v4073
        %v4075 = vpop.f32.mrf.mxu0
        %4076 = vmatprep.mubr.bf16.mxu0 0
        %4077 = vmatmul.mubr.bf16.gmra.mxu0 %v3988
        %v4078 = vpop.f32.mrf.mxu0
        %v4079 = vadd.f32 0.0, %v4078
        %v4080 = vpop.f32.mrf.mxu0
        %v4081 = vpop.f32.mrf.mxu0
        %v4082 = vadd.f32 0.0, %v4081
        %v4083 = vpop.f32.mrf.mxu0
        %4084 = vmatprep.mubr.bf16.mxu0 0
        %4085 = vmatmul.mubr.bf16.gmra.mxu0 %v3991
        %v4086 = vpop.f32.mrf.mxu0
        %v4087 = vadd.f32 0.0, %v4086
        %v4088 = vpop.f32.mrf.mxu0
        %v4089 = vpop.f32.mrf.mxu0
        %v4090 = vadd.f32 0.0, %v4089
        %v4091 = vpop.f32.mrf.mxu0
        %4092 = vdwg.mxu0
        %v4093 = vld [vmem:[#allocation3] sm:$0xff]
        %v4094 = vld [vmem:[#allocation3 + $0x8] sm:$0xff]
        %v4095 = vld [vmem:[#allocation3 + $0x10] sm:$0xff]
        %v4096 = vld [vmem:[#allocation3 + $0x18] sm:$0xff]
        %v4097 = vld [vmem:[#allocation3 + $0x20] sm:$0xff]
        %v4098 = vld [vmem:[#allocation3 + $0x28] sm:$0xff]
        %v4099 = vld [vmem:[#allocation3 + $0x30] sm:$0xff]
        %v4100 = vld [vmem:[#allocation3 + $0x38] sm:$0xff]
        %v4101 = vld [vmem:[#allocation3 + $0x40] sm:$0xff]
        %v4102 = vld [vmem:[#allocation3 + $0x48] sm:$0xff]
        %v4103 = vld [vmem:[#allocation3 + $0x50] sm:$0xff]
        %v4104 = vld [vmem:[#allocation3 + $0x58] sm:$0xff]
        %v4105 = vld [vmem:[#allocation3 + $0x60] sm:$0xff]
        %v4106 = vld [vmem:[#allocation3 + $0x68] sm:$0xff]
        %v4107 = vld [vmem:[#allocation3 + $0x70] sm:$0xff]
        %v4108 = vld [vmem:[#allocation3 + $0x78] sm:$0xff]
        %v4109 = vadd.f32 %v4093, %v4031
        %v4110 = vadd.f32 %v4094, %v4034
        %v4111 = vadd.f32 %v4095, %v4039
        %v4112 = vadd.f32 %v4096, %v4042
        %v4113 = vadd.f32 %v4097, %v4047
        %v4114 = vadd.f32 %v4098, %v4050
        %v4115 = vadd.f32 %v4099, %v4055
        %v4116 = vadd.f32 %v4100, %v4058
        %v4117 = vadd.f32 %v4101, %v4063
        %v4118 = vadd.f32 %v4102, %v4066
        %v4119 = vadd.f32 %v4103, %v4071
        %v4120 = vadd.f32 %v4104, %v4074
        %v4121 = vadd.f32 %v4105, %v4079
        %v4122 = vadd.f32 %v4106, %v4082
        %v4123 = vadd.f32 %v4107, %v4087
        %v4124 = vadd.f32 %v4108, %v4090
        %4125 = vst.msk [vmem:[#allocation3] sm:$0xff] %vm2021, %v4109
        %4126 = vst.msk [vmem:[#allocation3 + $0x8] sm:$0xff] %vm2021, %v4110
        %4127 = vst.msk [vmem:[#allocation3 + $0x10] sm:$0xff] %vm2021, %v4111
        %4128 = vst.msk [vmem:[#allocation3 + $0x18] sm:$0xff] %vm2021, %v4112
        %4129 = vst.msk [vmem:[#allocation3 + $0x20] sm:$0xff] %vm2021, %v4113
        %4130 = vst.msk [vmem:[#allocation3 + $0x28] sm:$0xff] %vm2021, %v4114
        %4131 = vst.msk [vmem:[#allocation3 + $0x30] sm:$0xff] %vm2021, %v4115
        %4132 = vst.msk [vmem:[#allocation3 + $0x38] sm:$0xff] %vm2021, %v4116
        %4133 = vst.msk [vmem:[#allocation3 + $0x40] sm:$0xff] %vm2021, %v4117
        %4134 = vst.msk [vmem:[#allocation3 + $0x48] sm:$0xff] %vm2021, %v4118
        %4135 = vst.msk [vmem:[#allocation3 + $0x50] sm:$0xff] %vm2021, %v4119
        %4136 = vst.msk [vmem:[#allocation3 + $0x58] sm:$0xff] %vm2021, %v4120
        %4137 = vst.msk [vmem:[#allocation3 + $0x60] sm:$0xff] %vm2021, %v4121
        %4138 = vst.msk [vmem:[#allocation3 + $0x68] sm:$0xff] %vm2021, %v4122
        %4139 = vst.msk [vmem:[#allocation3 + $0x70] sm:$0xff] %vm2021, %v4123
        %4140 = vst.msk [vmem:[#allocation3 + $0x78] sm:$0xff] %vm2021, %v4124
        %v4141 = vld [vmem:[%s3608] sm:$0xc]
        %v4142 = vld [vmem:[%s3608 + $0x4] sm:$0xf]
        %v4143 = vld [vmem:[%s3608 + $0x8] sm:$0x3]
        %v4144 = vld [vmem:[%s3608 + $0xc] sm:$0xc]
        %v4145 = vld [vmem:[%s3608 + $0x10] sm:$0xf]
        %v4146 = vld [vmem:[%s3608 + $0x14] sm:$0x3]
        %v4147 = vld [vmem:[%s3608 + $0x18] sm:$0xc]
        %v4148 = vld [vmem:[%s3608 + $0x1c] sm:$0xf]
        %v4149 = vld [vmem:[%s3608 + $0x20] sm:$0x3]
        %v4150 = vld [vmem:[%s3608 + $0x24] sm:$0xc]
        %v4151 = vld [vmem:[%s3608 + $0x28] sm:$0xf]
        %v4152 = vld [vmem:[%s3608 + $0x2c] sm:$0x3]
        %v4153 = vld [vmem:[%s3608 + $0x30] sm:$0xc]
        %v4154 = vld [vmem:[%s3608 + $0x34] sm:$0xf]
        %v4155 = vld [vmem:[%s3608 + $0x38] sm:$0x3]
        %v4156 = vld [vmem:[%s3608 + $0x3c] sm:$0xc]
        %v4157 = vld [vmem:[%s3608 + $0x40] sm:$0xf]
        %v4158 = vld [vmem:[%s3608 + $0x44] sm:$0x3]
        %v4159 = vld [vmem:[%s3608 + $0x48] sm:$0xc]
        %v4160 = vld [vmem:[%s3608 + $0x4c] sm:$0xf]
        %v4161 = vld [vmem:[%s3608 + $0x50] sm:$0x3]
        %v4162 = vld [vmem:[%s3608 + $0x54] sm:$0xc]
        %v4163 = vld [vmem:[%s3608 + $0x58] sm:$0xf]
        %v4164 = vld [vmem:[%s3608 + $0x5c] sm:$0x3]
        %s4165 = scalar_lea.vmem %s3, 16
        %v4166 = vld [vmem:[%s4165] sm:$0x3]
        %v4191 = vrot.slane %v4141, 6
        %v4192 = vrot.slane %v4191, 4
        %v4193 = vrot.slane %v4142, 6
        %v4194 = vsel %vm2520, %v4192, %v4193
        %v4195 = vrot.slane %v4193, 4
        %v4196 = vrot.slane %v4143, 6
        %v4197 = vsel %vm2520, %v4195, %v4196
        %v4198 = vrot.slane %v4144, 6
        %v4199 = vrot.slane %v4198, 4
        %v4200 = vrot.slane %v4145, 6
        %v4201 = vsel %vm2520, %v4199, %v4200
        %v4202 = vrot.slane %v4200, 4
        %v4203 = vrot.slane %v4146, 6
        %v4204 = vsel %vm2520, %v4202, %v4203
        %v4205 = vrot.slane %v4147, 6
        %v4206 = vrot.slane %v4205, 4
        %v4207 = vrot.slane %v4148, 6
        %v4208 = vsel %vm2520, %v4206, %v4207
        %v4209 = vrot.slane %v4207, 4
        %v4210 = vrot.slane %v4149, 6
        %v4211 = vsel %vm2520, %v4209, %v4210
        %v4212 = vrot.slane %v4150, 6
        %v4213 = vrot.slane %v4212, 4
        %v4214 = vrot.slane %v4151, 6
        %v4215 = vsel %vm2520, %v4213, %v4214
        %v4216 = vrot.slane %v4214, 4
        %v4217 = vrot.slane %v4152, 6
        %v4218 = vsel %vm2520, %v4216, %v4217
        %v4219 = vrot.slane %v4153, 6
        %v4220 = vrot.slane %v4219, 4
        %v4221 = vrot.slane %v4154, 6
        %v4222 = vsel %vm2520, %v4220, %v4221
        %v4223 = vrot.slane %v4221, 4
        %v4224 = vrot.slane %v4155, 6
        %v4225 = vsel %vm2520, %v4223, %v4224
        %v4226 = vrot.slane %v4156, 6
        %v4227 = vrot.slane %v4226, 4
        %v4228 = vrot.slane %v4157, 6
        %v4229 = vsel %vm2520, %v4227, %v4228
        %v4230 = vrot.slane %v4228, 4
        %v4231 = vrot.slane %v4158, 6
        %v4232 = vsel %vm2520, %v4230, %v4231
        %v4233 = vrot.slane %v4159, 6
        %v4234 = vrot.slane %v4233, 4
        %v4235 = vrot.slane %v4160, 6
        %v4236 = vsel %vm2520, %v4234, %v4235
        %v4237 = vrot.slane %v4235, 4
        %v4238 = vrot.slane %v4161, 6
        %v4239 = vsel %vm2520, %v4237, %v4238
        %v4240 = vrot.slane %v4162, 6
        %v4241 = vrot.slane %v4240, 4
        %v4242 = vrot.slane %v4163, 6
        %v4243 = vsel %vm2520, %v4241, %v4242
        %v4244 = vrot.slane %v4242, 4
        %v4245 = vrot.slane %v4164, 6
        %v4246 = vsel %vm2520, %v4244, %v4245
        %v4247 = vunpack.c.l.b16 %v4194
        %v4248 = vunpack.c.l.b16 %v4197
        %v4249 = vunpack.c.l.b16 %v4201
        %v4250 = vunpack.c.l.b16 %v4204
        %v4251 = vunpack.c.l.b16 %v4208
        %v4252 = vunpack.c.l.b16 %v4211
        %v4253 = vunpack.c.l.b16 %v4215
        %v4254 = vunpack.c.l.b16 %v4218
        %v4255 = vunpack.c.l.b16 %v4222
        %v4256 = vunpack.c.l.b16 %v4225
        %v4257 = vunpack.c.l.b16 %v4229
        %v4258 = vunpack.c.l.b16 %v4232
        %v4259 = vunpack.c.l.b16 %v4236
        %v4260 = vunpack.c.l.b16 %v4239
        %v4261 = vunpack.c.l.b16 %v4243
        %v4262 = vunpack.c.l.b16 %v4246
        %v4263 = vpack.c.b16 %v4248, %v4247
        %v4264 = vpack.c.b16 %v4250, %v4249
        %v4265 = vpack.c.b16 %v4252, %v4251
        %v4266 = vpack.c.b16 %v4254, %v4253
        %v4267 = vpack.c.b16 %v4256, %v4255
        %v4268 = vpack.c.b16 %v4258, %v4257
        %v4269 = vpack.c.b16 %v4260, %v4259
        %v4270 = vpack.c.b16 %v4262, %v4261
        %v4272 = vsel %vm2021, %v4263, 0
        %v4275 = vsel %vm2021, %v4264, 0
        %v4278 = vsel %vm2021, %v4265, 0
        %v4281 = vsel %vm2021, %v4266, 0
        %v4284 = vsel %vm2021, %v4267, 0
        %v4287 = vsel %vm2021, %v4268, 0
        %v4290 = vsel %vm2021, %v4269, 0
        %v4293 = vsel %vm2021, %v4270, 0
        %v4296 = vsel %vm2046, %v4166, 0
        %4298 = vmatprep.subr.bf16.mxu0 0
        %4299 = vmatpush1.bf16.msra.mxu0 0
        %4300 = vmatprep.subr.bf16.mxu0 0
        %4301 = vmatpush1.bf16.msra.mxu0 0
        %4302 = vmatprep.subr.bf16.mxu0 0
        %4303 = vmatpush1.bf16.msra.mxu0 0
        %4304 = vmatprep.subr.bf16.mxu0 0
        %4305 = vmatpush1.bf16.msra.mxu0 0
        %4306 = vmatprep.subr.bf16.mxu0 0
        %4307 = vmatpush1.bf16.msra.mxu0 0
        %4308 = vmatprep.subr.bf16.mxu0 0
        %4309 = vmatpush1.bf16.msra.mxu0 0
        %4310 = vmatprep.subr.bf16.mxu0 0
        %4311 = vmatpush1.bf16.msra.mxu0 0
        %4312 = vmatprep.subr.bf16.mxu0 0
        %4313 = vmatpush1.bf16.msra.mxu0 %v4296
        %4314 = vmatprep.subr.bf16.mxu0 0
        %4315 = vmatpush2.bf16.msra.mxu0 0
        %4316 = vmatprep.subr.bf16.mxu0 0
        %4317 = vmatpush2.bf16.msra.mxu0 0
        %4318 = vmatprep.subr.bf16.mxu0 0
        %4319 = vmatpush2.bf16.msra.mxu0 0
        %4320 = vmatprep.subr.bf16.mxu0 0
        %4321 = vmatpush2.bf16.msra.mxu0 0
        %4322 = vmatprep.subr.bf16.mxu0 0
        %4323 = vmatpush2.bf16.msra.mxu0 0
        %4324 = vmatprep.subr.bf16.mxu0 0
        %4325 = vmatpush2.bf16.msra.mxu0 0
        %4326 = vmatprep.subr.bf16.mxu0 0
        %4327 = vmatpush2.bf16.msra.mxu0 0
        %4328 = vmatprep.subr.bf16.mxu0 0
        %4329 = vmatpush2.bf16.msra.mxu0 0
        %4330 = vmatprep.mubr.bf16.mxu0 0
        %4331 = vmatmul.mubr.bf16.gmra.mxu0 %v4272
        %v4332 = vpop.f32.mrf.mxu0
        %v4333 = vadd.f32 0.0, %v4332
        %v4334 = vpop.f32.mrf.mxu0
        %v4335 = vpop.f32.mrf.mxu0
        %v4336 = vadd.f32 0.0, %v4335
        %v4337 = vpop.f32.mrf.mxu0
        %4338 = vmatprep.mubr.bf16.mxu0 0
        %4339 = vmatmul.mubr.bf16.gmra.mxu0 %v4275
        %v4340 = vpop.f32.mrf.mxu0
        %v4341 = vadd.f32 0.0, %v4340
        %v4342 = vpop.f32.mrf.mxu0
        %v4343 = vpop.f32.mrf.mxu0
        %v4344 = vadd.f32 0.0, %v4343
        %v4345 = vpop.f32.mrf.mxu0
        %4346 = vmatprep.mubr.bf16.mxu0 0
        %4347 = vmatmul.mubr.bf16.gmra.mxu0 %v4278
        %v4348 = vpop.f32.mrf.mxu0
        %v4349 = vadd.f32 0.0, %v4348
        %v4350 = vpop.f32.mrf.mxu0
        %v4351 = vpop.f32.mrf.mxu0
        %v4352 = vadd.f32 0.0, %v4351
        %v4353 = vpop.f32.mrf.mxu0
        %4354 = vmatprep.mubr.bf16.mxu0 0
        %4355 = vmatmul.mubr.bf16.gmra.mxu0 %v4281
        %v4356 = vpop.f32.mrf.mxu0
        %v4357 = vadd.f32 0.0, %v4356
        %v4358 = vpop.f32.mrf.mxu0
        %v4359 = vpop.f32.mrf.mxu0
        %v4360 = vadd.f32 0.0, %v4359
        %v4361 = vpop.f32.mrf.mxu0
        %4362 = vmatprep.mubr.bf16.mxu0 0
        %4363 = vmatmul.mubr.bf16.gmra.mxu0 %v4284
        %v4364 = vpop.f32.mrf.mxu0
        %v4365 = vadd.f32 0.0, %v4364
        %v4366 = vpop.f32.mrf.mxu0
        %v4367 = vpop.f32.mrf.mxu0
        %v4368 = vadd.f32 0.0, %v4367
        %v4369 = vpop.f32.mrf.mxu0
        %4370 = vmatprep.mubr.bf16.mxu0 0
        %4371 = vmatmul.mubr.bf16.gmra.mxu0 %v4287
        %v4372 = vpop.f32.mrf.mxu0
        %v4373 = vadd.f32 0.0, %v4372
        %v4374 = vpop.f32.mrf.mxu0
        %v4375 = vpop.f32.mrf.mxu0
        %v4376 = vadd.f32 0.0, %v4375
        %v4377 = vpop.f32.mrf.mxu0
        %4378 = vmatprep.mubr.bf16.mxu0 0
        %4379 = vmatmul.mubr.bf16.gmra.mxu0 %v4290
        %v4380 = vpop.f32.mrf.mxu0
        %v4381 = vadd.f32 0.0, %v4380
        %v4382 = vpop.f32.mrf.mxu0
        %v4383 = vpop.f32.mrf.mxu0
        %v4384 = vadd.f32 0.0, %v4383
        %v4385 = vpop.f32.mrf.mxu0
        %4386 = vmatprep.mubr.bf16.mxu0 0
        %4387 = vmatmul.mubr.bf16.gmra.mxu0 %v4293
        %v4388 = vpop.f32.mrf.mxu0
        %v4389 = vadd.f32 0.0, %v4388
        %v4390 = vpop.f32.mrf.mxu0
        %v4391 = vpop.f32.mrf.mxu0
        %v4392 = vadd.f32 0.0, %v4391
        %v4393 = vpop.f32.mrf.mxu0
        %4394 = vdwg.mxu0
        %v4395 = vld [vmem:[#allocation3] sm:$0xff]
        %v4396 = vld [vmem:[#allocation3 + $0x8] sm:$0xff]
        %v4397 = vld [vmem:[#allocation3 + $0x10] sm:$0xff]
        %v4398 = vld [vmem:[#allocation3 + $0x18] sm:$0xff]
        %v4399 = vld [vmem:[#allocation3 + $0x20] sm:$0xff]
        %v4400 = vld [vmem:[#allocation3 + $0x28] sm:$0xff]
        %v4401 = vld [vmem:[#allocation3 + $0x30] sm:$0xff]
        %v4402 = vld [vmem:[#allocation3 + $0x38] sm:$0xff]
        %v4403 = vld [vmem:[#allocation3 + $0x40] sm:$0xff]
        %v4404 = vld [vmem:[#allocation3 + $0x48] sm:$0xff]
        %v4405 = vld [vmem:[#allocation3 + $0x50] sm:$0xff]
        %v4406 = vld [vmem:[#allocation3 + $0x58] sm:$0xff]
        %v4407 = vld [vmem:[#allocation3 + $0x60] sm:$0xff]
        %v4408 = vld [vmem:[#allocation3 + $0x68] sm:$0xff]
        %v4409 = vld [vmem:[#allocation3 + $0x70] sm:$0xff]
        %v4410 = vld [vmem:[#allocation3 + $0x78] sm:$0xff]
        %v4411 = vadd.f32 %v4395, %v4333
        %v4412 = vadd.f32 %v4396, %v4336
        %v4413 = vadd.f32 %v4397, %v4341
        %v4414 = vadd.f32 %v4398, %v4344
        %v4415 = vadd.f32 %v4399, %v4349
        %v4416 = vadd.f32 %v4400, %v4352
        %v4417 = vadd.f32 %v4401, %v4357
        %v4418 = vadd.f32 %v4402, %v4360
        %v4419 = vadd.f32 %v4403, %v4365
        %v4420 = vadd.f32 %v4404, %v4368
        %v4421 = vadd.f32 %v4405, %v4373
        %v4422 = vadd.f32 %v4406, %v4376
        %v4423 = vadd.f32 %v4407, %v4381
        %v4424 = vadd.f32 %v4408, %v4384
        %v4425 = vadd.f32 %v4409, %v4389
        %v4426 = vadd.f32 %v4410, %v4392
        %4427 = vst.msk [vmem:[#allocation3] sm:$0xff] %vm2021, %v4411
        %4428 = vst.msk [vmem:[#allocation3 + $0x8] sm:$0xff] %vm2021, %v4412
        %4429 = vst.msk [vmem:[#allocation3 + $0x10] sm:$0xff] %vm2021, %v4413
        %4430 = vst.msk [vmem:[#allocation3 + $0x18] sm:$0xff] %vm2021, %v4414
        %4431 = vst.msk [vmem:[#allocation3 + $0x20] sm:$0xff] %vm2021, %v4415
        %4432 = vst.msk [vmem:[#allocation3 + $0x28] sm:$0xff] %vm2021, %v4416
        %4433 = vst.msk [vmem:[#allocation3 + $0x30] sm:$0xff] %vm2021, %v4417
        %4434 = vst.msk [vmem:[#allocation3 + $0x38] sm:$0xff] %vm2021, %v4418
        %4435 = vst.msk [vmem:[#allocation3 + $0x40] sm:$0xff] %vm2021, %v4419
        %4436 = vst.msk [vmem:[#allocation3 + $0x48] sm:$0xff] %vm2021, %v4420
        %4437 = vst.msk [vmem:[#allocation3 + $0x50] sm:$0xff] %vm2021, %v4421
        %4438 = vst.msk [vmem:[#allocation3 + $0x58] sm:$0xff] %vm2021, %v4422
        %4439 = vst.msk [vmem:[#allocation3 + $0x60] sm:$0xff] %vm2021, %v4423
        %4440 = vst.msk [vmem:[#allocation3 + $0x68] sm:$0xff] %vm2021, %v4424
        %4441 = vst.msk [vmem:[#allocation3 + $0x70] sm:$0xff] %vm2021, %v4425
        %4442 = vst.msk [vmem:[#allocation3 + $0x78] sm:$0xff] %vm2021, %v4426
        %v4443 = vld [vmem:[#allocation3] sm:$0xff]
        %v4444 = vld [vmem:[#allocation3 + $0x8] sm:$0xff]
        %v4445 = vld [vmem:[#allocation3 + $0x10] sm:$0xff]
        %v4446 = vld [vmem:[#allocation3 + $0x18] sm:$0xff]
        %v4447 = vld [vmem:[#allocation3 + $0x20] sm:$0xff]
        %v4448 = vld [vmem:[#allocation3 + $0x28] sm:$0xff]
        %v4449 = vld [vmem:[#allocation3 + $0x30] sm:$0xff]
        %v4450 = vld [vmem:[#allocation3 + $0x38] sm:$0xff]
        %v4451 = vld [vmem:[#allocation3 + $0x40] sm:$0xff]
        %v4452 = vld [vmem:[#allocation3 + $0x48] sm:$0xff]
        %v4453 = vld [vmem:[#allocation3 + $0x50] sm:$0xff]
        %v4454 = vld [vmem:[#allocation3 + $0x58] sm:$0xff]
        %v4455 = vld [vmem:[#allocation3 + $0x60] sm:$0xff]
        %v4456 = vld [vmem:[#allocation3 + $0x68] sm:$0xff]
        %v4457 = vld [vmem:[#allocation3 + $0x70] sm:$0xff]
        %v4458 = vld [vmem:[#allocation3 + $0x78] sm:$0xff]
        %v4460 = vlaneseq
        %v4461 = vshrl.u32 %v4460, 7
        %v4462 = vsub.s32 0, %v4461
        %v4463 = vrot.slane %v419, %v4462
        %v4465 = vadd.f32 %v4443, %v4463
        %v4466 = vadd.f32 %v4444, %v4463
        %v4467 = vadd.f32 %v4445, %v4463
        %v4468 = vadd.f32 %v4446, %v4463
        %v4469 = vadd.f32 %v4447, %v4463
        %v4470 = vadd.f32 %v4448, %v4463
        %v4471 = vadd.f32 %v4449, %v4463
        %v4472 = vadd.f32 %v4450, %v4463
        %v4473 = vadd.f32 %v4451, %v4463
        %v4474 = vadd.f32 %v4452, %v4463
        %v4475 = vadd.f32 %v4453, %v4463
        %v4476 = vadd.f32 %v4454, %v4463
        %v4477 = vadd.f32 %v4455, %v4463
        %v4478 = vadd.f32 %v4456, %v4463
        %v4479 = vadd.f32 %v4457, %v4463
        %v4480 = vadd.f32 %v4458, %v4463
        %v4481 = vmax.f32 %v4465, 0.0
        %v4482 = vmax.f32 %v4466, 0.0
        %v4483 = vmax.f32 %v4467, 0.0
        %v4484 = vmax.f32 %v4468, 0.0
        %v4485 = vmax.f32 %v4469, 0.0
        %v4486 = vmax.f32 %v4470, 0.0
        %v4487 = vmax.f32 %v4471, 0.0
        %v4488 = vmax.f32 %v4472, 0.0
        %v4489 = vmax.f32 %v4473, 0.0
        %v4490 = vmax.f32 %v4474, 0.0
        %v4491 = vmax.f32 %v4475, 0.0
        %v4492 = vmax.f32 %v4476, 0.0
        %v4493 = vmax.f32 %v4477, 0.0
        %v4494 = vmax.f32 %v4478, 0.0
        %v4495 = vmax.f32 %v4479, 0.0
        %v4496 = vmax.f32 %v4480, 0.0
        %v4497 = vpack.c.bf16 %v4482, %v4481
        %v4498 = vpack.c.bf16 %v4484, %v4483
        %v4499 = vpack.c.bf16 %v4486, %v4485
        %v4500 = vpack.c.bf16 %v4488, %v4487
        %v4501 = vpack.c.bf16 %v4490, %v4489
        %v4502 = vpack.c.bf16 %v4492, %v4491
        %v4503 = vpack.c.bf16 %v4494, %v4493
        %v4504 = vpack.c.bf16 %v4496, %v4495
        %v4505 = vld [vmem:[%s4] sm:$0x3]
        %v4507 = vsel %vm2021, %v4497, 0
        %v4510 = vsel %vm2021, %v4498, 0
        %v4513 = vsel %vm2021, %v4499, 0
        %v4516 = vsel %vm2021, %v4500, 0
        %v4519 = vsel %vm2021, %v4501, 0
        %v4522 = vsel %vm2021, %v4502, 0
        %v4525 = vsel %vm2021, %v4503, 0
        %v4528 = vsel %vm2021, %v4504, 0
        %v4531 = vsel %vm2046, %v4505, 0
        %4533 = vmatprep.subr.bf16.mxu0 0
        %4534 = vmatpush1.bf16.msra.mxu0 0
        %4535 = vmatprep.subr.bf16.mxu0 0
        %4536 = vmatpush1.bf16.msra.mxu0 0
        %4537 = vmatprep.subr.bf16.mxu0 0
        %4538 = vmatpush1.bf16.msra.mxu0 0
        %4539 = vmatprep.subr.bf16.mxu0 0
        %4540 = vmatpush1.bf16.msra.mxu0 0
        %4541 = vmatprep.subr.bf16.mxu0 0
        %4542 = vmatpush1.bf16.msra.mxu0 0
        %4543 = vmatprep.subr.bf16.mxu0 0
        %4544 = vmatpush1.bf16.msra.mxu0 0
        %4545 = vmatprep.subr.bf16.mxu0 0
        %4546 = vmatpush1.bf16.msra.mxu0 0
        %4547 = vmatprep.subr.bf16.mxu0 0
        %4548 = vmatpush1.bf16.msra.mxu0 %v4531
        %4549 = vmatprep.subr.bf16.mxu0 0
        %4550 = vmatpush2.bf16.msra.mxu0 0
        %4551 = vmatprep.subr.bf16.mxu0 0
        %4552 = vmatpush2.bf16.msra.mxu0 0
        %4553 = vmatprep.subr.bf16.mxu0 0
        %4554 = vmatpush2.bf16.msra.mxu0 0
        %4555 = vmatprep.subr.bf16.mxu0 0
        %4556 = vmatpush2.bf16.msra.mxu0 0
        %4557 = vmatprep.subr.bf16.mxu0 0
        %4558 = vmatpush2.bf16.msra.mxu0 0
        %4559 = vmatprep.subr.bf16.mxu0 0
        %4560 = vmatpush2.bf16.msra.mxu0 0
        %4561 = vmatprep.subr.bf16.mxu0 0
        %4562 = vmatpush2.bf16.msra.mxu0 0
        %4563 = vmatprep.subr.bf16.mxu0 0
        %4564 = vmatpush2.bf16.msra.mxu0 0
        %4565 = vmatprep.mubr.bf16.mxu0 0
        %4566 = vmatmul.mubr.bf16.gmra.mxu0 %v4507
        %v4567 = vpop.f32.mrf.mxu0
        %v4568 = vadd.f32 0.0, %v4567
        %v4569 = vpop.f32.mrf.mxu0
        %v4570 = vpop.f32.mrf.mxu0
        %v4571 = vadd.f32 0.0, %v4570
        %v4572 = vpop.f32.mrf.mxu0
        %4573 = vmatprep.mubr.bf16.mxu0 0
        %4574 = vmatmul.mubr.bf16.gmra.mxu0 %v4510
        %v4575 = vpop.f32.mrf.mxu0
        %v4576 = vadd.f32 0.0, %v4575
        %v4577 = vpop.f32.mrf.mxu0
        %v4578 = vpop.f32.mrf.mxu0
        %v4579 = vadd.f32 0.0, %v4578
        %v4580 = vpop.f32.mrf.mxu0
        %4581 = vmatprep.mubr.bf16.mxu0 0
        %4582 = vmatmul.mubr.bf16.gmra.mxu0 %v4513
        %v4583 = vpop.f32.mrf.mxu0
        %v4584 = vadd.f32 0.0, %v4583
        %v4585 = vpop.f32.mrf.mxu0
        %v4586 = vpop.f32.mrf.mxu0
        %v4587 = vadd.f32 0.0, %v4586
        %v4588 = vpop.f32.mrf.mxu0
        %4589 = vmatprep.mubr.bf16.mxu0 0
        %4590 = vmatmul.mubr.bf16.gmra.mxu0 %v4516
        %v4591 = vpop.f32.mrf.mxu0
        %v4592 = vadd.f32 0.0, %v4591
        %v4593 = vpop.f32.mrf.mxu0
        %v4594 = vpop.f32.mrf.mxu0
        %v4595 = vadd.f32 0.0, %v4594
        %v4596 = vpop.f32.mrf.mxu0
        %4597 = vmatprep.mubr.bf16.mxu0 0
        %4598 = vmatmul.mubr.bf16.gmra.mxu0 %v4519
        %v4599 = vpop.f32.mrf.mxu0
        %v4600 = vadd.f32 0.0, %v4599
        %v4601 = vpop.f32.mrf.mxu0
        %v4602 = vpop.f32.mrf.mxu0
        %v4603 = vadd.f32 0.0, %v4602
        %v4604 = vpop.f32.mrf.mxu0
        %4605 = vmatprep.mubr.bf16.mxu0 0
        %4606 = vmatmul.mubr.bf16.gmra.mxu0 %v4522
        %v4607 = vpop.f32.mrf.mxu0
        %v4608 = vadd.f32 0.0, %v4607
        %v4609 = vpop.f32.mrf.mxu0
        %v4610 = vpop.f32.mrf.mxu0
        %v4611 = vadd.f32 0.0, %v4610
        %v4612 = vpop.f32.mrf.mxu0
        %4613 = vmatprep.mubr.bf16.mxu0 0
        %4614 = vmatmul.mubr.bf16.gmra.mxu0 %v4525
        %v4615 = vpop.f32.mrf.mxu0
        %v4616 = vadd.f32 0.0, %v4615
        %v4617 = vpop.f32.mrf.mxu0
        %v4618 = vpop.f32.mrf.mxu0
        %v4619 = vadd.f32 0.0, %v4618
        %v4620 = vpop.f32.mrf.mxu0
        %4621 = vmatprep.mubr.bf16.mxu0 0
        %4622 = vmatmul.mubr.bf16.gmra.mxu0 %v4528
        %v4623 = vpop.f32.mrf.mxu0
        %v4624 = vadd.f32 0.0, %v4623
        %v4625 = vpop.f32.mrf.mxu0
        %v4626 = vpop.f32.mrf.mxu0
        %v4627 = vadd.f32 0.0, %v4626
        %v4628 = vpop.f32.mrf.mxu0
        %4629 = vdwg.mxu0
        %s4630 = scalar_lea.vmem %s393, 24
        %v4631 = vld [vmem:[%s4630] sm:$0xe]
        %v4632 = vld [vmem:[%s4630 + $0x4] sm:$0xf]
        %v4633 = vld [vmem:[%s4630 + $0x8] sm:$0x1]
        %v4634 = vld [vmem:[%s4630 + $0xc] sm:$0xe]
        %v4635 = vld [vmem:[%s4630 + $0x10] sm:$0xf]
        %v4636 = vld [vmem:[%s4630 + $0x14] sm:$0x1]
        %v4637 = vld [vmem:[%s4630 + $0x18] sm:$0xe]
        %v4638 = vld [vmem:[%s4630 + $0x1c] sm:$0xf]
        %v4639 = vld [vmem:[%s4630 + $0x20] sm:$0x1]
        %v4640 = vld [vmem:[%s4630 + $0x24] sm:$0xe]
        %v4641 = vld [vmem:[%s4630 + $0x28] sm:$0xf]
        %v4642 = vld [vmem:[%s4630 + $0x2c] sm:$0x1]
        %v4643 = vld [vmem:[%s4630 + $0x30] sm:$0xe]
        %v4644 = vld [vmem:[%s4630 + $0x34] sm:$0xf]
        %v4645 = vld [vmem:[%s4630 + $0x38] sm:$0x1]
        %v4646 = vld [vmem:[%s4630 + $0x3c] sm:$0xe]
        %v4647 = vld [vmem:[%s4630 + $0x40] sm:$0xf]
        %v4648 = vld [vmem:[%s4630 + $0x44] sm:$0x1]
        %v4649 = vunpack.c.l.bf16 %v4631
        %v4650 = vunpack.c.l.bf16 %v4632
        %v4651 = vunpack.c.l.bf16 %v4633
        %v4652 = vunpack.c.l.bf16 %v4634
        %v4653 = vunpack.c.l.bf16 %v4635
        %v4654 = vunpack.c.l.bf16 %v4636
        %v4655 = vunpack.c.l.bf16 %v4637
        %v4656 = vunpack.c.l.bf16 %v4638
        %v4657 = vunpack.c.l.bf16 %v4639
        %v4658 = vunpack.c.l.bf16 %v4640
        %v4659 = vunpack.c.l.bf16 %v4641
        %v4660 = vunpack.c.l.bf16 %v4642
        %v4661 = vunpack.c.l.bf16 %v4643
        %v4662 = vunpack.c.l.bf16 %v4644
        %v4663 = vunpack.c.l.bf16 %v4645
        %v4664 = vunpack.c.l.bf16 %v4646
        %v4665 = vunpack.c.l.bf16 %v4647
        %v4666 = vunpack.c.l.bf16 %v4648
        %v4668 = vlaneseq
        %v4669 = vshrl.u32 %v4668, 7
        %v4670 = vsub.s32 0, %v4669
        %v4671 = vrot.slane %v420, %v4670
        %v4673 = vadd.f32 %v4568, %v4671
        %v4674 = vadd.f32 %v4571, %v4671
        %v4675 = vadd.f32 %v4576, %v4671
        %v4676 = vadd.f32 %v4579, %v4671
        %v4677 = vadd.f32 %v4584, %v4671
        %v4678 = vadd.f32 %v4587, %v4671
        %v4679 = vadd.f32 %v4592, %v4671
        %v4680 = vadd.f32 %v4595, %v4671
        %v4681 = vadd.f32 %v4600, %v4671
        %v4682 = vadd.f32 %v4603, %v4671
        %v4683 = vadd.f32 %v4608, %v4671
        %v4684 = vadd.f32 %v4611, %v4671
        %vm4703 = vcmask 1045504
        %v4704 = vrot.slane %v4649, 2
        %v4705 = vrot.slane %v4650, 2
        %v4706 = vsel %vm4703, %v4704, %v4705
        %v4707 = vrot.slane %v4651, 2
        %v4708 = vsel %vm4703, %v4705, %v4707
        %v4709 = vrot.slane %v4652, 2
        %v4710 = vrot.slane %v4653, 2
        %v4711 = vsel %vm4703, %v4709, %v4710
        %v4712 = vrot.slane %v4654, 2
        %v4713 = vsel %vm4703, %v4710, %v4712
        %v4714 = vrot.slane %v4655, 2
        %v4715 = vrot.slane %v4656, 2
        %v4716 = vsel %vm4703, %v4714, %v4715
        %v4717 = vrot.slane %v4657, 2
        %v4718 = vsel %vm4703, %v4715, %v4717
        %v4719 = vrot.slane %v4658, 2
        %v4720 = vrot.slane %v4659, 2
        %v4721 = vsel %vm4703, %v4719, %v4720
        %v4722 = vrot.slane %v4660, 2
        %v4723 = vsel %vm4703, %v4720, %v4722
        %v4724 = vrot.slane %v4661, 2
        %v4725 = vrot.slane %v4662, 2
        %v4726 = vsel %vm4703, %v4724, %v4725
        %v4727 = vrot.slane %v4663, 2
        %v4728 = vsel %vm4703, %v4725, %v4727
        %v4729 = vrot.slane %v4664, 2
        %v4730 = vrot.slane %v4665, 2
        %v4731 = vsel %vm4703, %v4729, %v4730
        %v4732 = vrot.slane %v4666, 2
        %v4733 = vsel %vm4703, %v4730, %v4732
        %v4746 = vadd.f32 %v4673, %v4706
        %v4747 = vadd.f32 %v4674, %v4708
        %v4748 = vadd.f32 %v4675, %v4711
        %v4749 = vadd.f32 %v4676, %v4713
        %v4750 = vadd.f32 %v4677, %v4716
        %v4751 = vadd.f32 %v4678, %v4718
        %v4752 = vadd.f32 %v4679, %v4721
        %v4753 = vadd.f32 %v4680, %v4723
        %v4754 = vadd.f32 %v4681, %v4726
        %v4755 = vadd.f32 %v4682, %v4728
        %v4756 = vadd.f32 %v4683, %v4731
        %v4757 = vadd.f32 %v4684, %v4733
        %v4758 = vmax.f32 %v4746, 0.0
        %v4759 = vmax.f32 %v4747, 0.0
        %v4760 = vmax.f32 %v4748, 0.0
        %v4761 = vmax.f32 %v4749, 0.0
        %v4762 = vmax.f32 %v4750, 0.0
        %v4763 = vmax.f32 %v4751, 0.0
        %v4764 = vmax.f32 %v4752, 0.0
        %v4765 = vmax.f32 %v4753, 0.0
        %v4766 = vmax.f32 %v4754, 0.0
        %v4767 = vmax.f32 %v4755, 0.0
        %v4768 = vmax.f32 %v4756, 0.0
        %v4769 = vmax.f32 %v4757, 0.0
        %v4770 = vpack.c.bf16 %v4759, %v4758
        %v4771 = vpack.c.bf16 %v4761, %v4760
        %v4772 = vpack.c.bf16 %v4763, %v4762
        %v4773 = vpack.c.bf16 %v4765, %v4764
        %v4774 = vpack.c.bf16 %v4767, %v4766
        %v4775 = vpack.c.bf16 %v4769, %v4768
        %v4782 = vunpack.c.l.b16 %v4770
        %v4783 = vunpack.c.h.b16 %v4770
        %v4784 = vunpack.c.l.b16 %v4771
        %v4785 = vunpack.c.h.b16 %v4771
        %v4786 = vunpack.c.l.b16 %v4772
        %v4787 = vunpack.c.h.b16 %v4772
        %v4788 = vunpack.c.l.b16 %v4773
        %v4789 = vunpack.c.h.b16 %v4773
        %v4790 = vunpack.c.l.b16 %v4774
        %v4791 = vunpack.c.h.b16 %v4774
        %v4792 = vunpack.c.l.b16 %v4775
        %v4793 = vunpack.c.h.b16 %v4775
        %v4794 = vpack.c.b16 %v4782, %v4782
        %v4795 = vpack.c.b16 %v4783, %v4783
        %v4796 = vpack.c.b16 %v4784, %v4784
        %v4797 = vpack.c.b16 %v4785, %v4785
        %v4798 = vpack.c.b16 %v4786, %v4786
        %v4799 = vpack.c.b16 %v4787, %v4787
        %v4800 = vpack.c.b16 %v4788, %v4788
        %v4801 = vpack.c.b16 %v4789, %v4789
        %v4802 = vpack.c.b16 %v4790, %v4790
        %v4803 = vpack.c.b16 %v4791, %v4791
        %v4804 = vpack.c.b16 %v4792, %v4792
        %v4805 = vpack.c.b16 %v4793, %v4793
        %vm4818 = vcmask 125952
        %4819 = vst.msk [vmem:[%s378] sm:$0xf] %vm4818, %v4794
        %4820 = vst.msk [vmem:[%s378 + $0x4] sm:$0xf] %vm4818, %v4795
        %4821 = vst.msk [vmem:[%s378 + $0x8] sm:$0xf] %vm4818, %v4796
        %4822 = vst.msk [vmem:[%s378 + $0xc] sm:$0xf] %vm4818, %v4797
        %4823 = vst.msk [vmem:[%s378 + $0x10] sm:$0xf] %vm4818, %v4798
        %4824 = vst.msk [vmem:[%s378 + $0x14] sm:$0xf] %vm4818, %v4799
        %4825 = vst.msk [vmem:[%s378 + $0x18] sm:$0xf] %vm4818, %v4800
        %4826 = vst.msk [vmem:[%s378 + $0x1c] sm:$0xf] %vm4818, %v4801
        %4827 = vst.msk [vmem:[%s378 + $0x20] sm:$0xf] %vm4818, %v4802
        %4828 = vst.msk [vmem:[%s378 + $0x24] sm:$0xf] %vm4818, %v4803
        %4829 = vst.msk [vmem:[%s378 + $0x28] sm:$0xf] %vm4818, %v4804
        %4830 = vst.msk [vmem:[%s378 + $0x2c] sm:$0xf] %vm4818, %v4805
        %v4831 = vld [vmem:[%s411] sm:$0xe]
        %v4832 = vld [vmem:[%s411 + $0x4] sm:$0xf]
        %v4833 = vld [vmem:[%s411 + $0x8] sm:$0x1]
        %v4834 = vld [vmem:[%s411 + $0xc] sm:$0xe]
        %v4835 = vld [vmem:[%s411 + $0x10] sm:$0xf]
        %v4836 = vld [vmem:[%s411 + $0x14] sm:$0x1]
        %v4837 = vunpack.c.l.bf16 %v4831
        %v4838 = vunpack.c.l.bf16 %v4832
        %v4839 = vunpack.c.l.bf16 %v4833
        %v4840 = vunpack.c.l.bf16 %v4834
        %v4841 = vunpack.c.l.bf16 %v4835
        %v4842 = vunpack.c.l.bf16 %v4836
        %v4843 = vadd.f32 %v4616, %v4671
        %v4844 = vadd.f32 %v4619, %v4671
        %v4845 = vadd.f32 %v4624, %v4671
        %v4846 = vadd.f32 %v4627, %v4671
        %v4853 = vrot.slane %v4837, 2
        %v4854 = vrot.slane %v4838, 2
        %v4855 = vsel %vm4703, %v4853, %v4854
        %v4856 = vrot.slane %v4839, 2
        %v4857 = vsel %vm4703, %v4854, %v4856
        %v4858 = vrot.slane %v4840, 2
        %v4859 = vrot.slane %v4841, 2
        %v4860 = vsel %vm4703, %v4858, %v4859
        %v4861 = vrot.slane %v4842, 2
        %v4862 = vsel %vm4703, %v4859, %v4861
        %v4867 = vadd.f32 %v4843, %v4855
        %v4868 = vadd.f32 %v4844, %v4857
        %v4869 = vadd.f32 %v4845, %v4860
        %v4870 = vadd.f32 %v4846, %v4862
        %v4871 = vmax.f32 %v4867, 0.0
        %v4872 = vmax.f32 %v4868, 0.0
        %v4873 = vmax.f32 %v4869, 0.0
        %v4874 = vmax.f32 %v4870, 0.0
        %v4875 = vpack.c.bf16 %v4872, %v4871
        %v4876 = vpack.c.bf16 %v4874, %v4873
        %v4879 = vunpack.c.l.b16 %v4875
        %v4880 = vunpack.c.h.b16 %v4875
        %v4881 = vunpack.c.l.b16 %v4876
        %v4882 = vunpack.c.h.b16 %v4876
        %v4883 = vpack.c.b16 %v4879, %v4879
        %v4884 = vpack.c.b16 %v4880, %v4880
        %v4885 = vpack.c.b16 %v4881, %v4881
        %v4886 = vpack.c.b16 %v4882, %v4882
        %s4891 = scalar_lea.vmem %s378, 48 [#allocation4]
        %4892 = vst.msk [vmem:[%s4891] sm:$0xf] %vm4818, %v4883
        %4893 = vst.msk [vmem:[%s4891 + $0x4] sm:$0xf] %vm4818, %v4884
        %4894 = vst.msk [vmem:[%s4891 + $0x8] sm:$0xf] %vm4818, %v4885
        %4895 = vst.msk [vmem:[%s4891 + $0xc] sm:$0xf] %vm4818, %v4886
        %s4896 = sand.u32 %s230, 1
        %s4897 = scalar_lea.sflag [#allocation5], %s4896
        %s4898 = sand.u32 %s230, 1
        %s4899 = smul.addr %s4898, 64
        %s4900 = scalar_lea.vmem [#allocation4], %s4899
        // Predicated region
        $region53: #{tpu_custom_call.1} parent=51 // pred_check
          %p4901 = pneg %p240
        $region54: #{tpu_custom_call.1} parent=51 // pred_check_branch
          %4903 = sbr.rel (%p4901) target = $region56
        $region55: #{tpu_custom_call.1} parent=51 // pred_region
          %s4904 = smul.u32 8, %s27
          %s4906 = ssub.s32 1024, 1024
          %4907 = vsyncadd %s4897, %s4906
          %s4908 = smul.addr %s4904, 2
          %s4909 = smul.addr %s26, 32
          %s4910 = sadd.s32 %s4908, %s4909
          %s4911 = smul.addr %s4910, 64
          %s4912 = scalar_lea.hbm %s8, %s4911
          %s4913 = sshll.u32 %s4900, 4
          %s4914 = int_to_ptr.vmem [resolvable:$true] %s4913
          %4919 = dma.vmem_to_hbm [thread:$0]  %s4914, 1024, %s4912, %s4897, 64, 64, 4
        $region56: #{tpu_custom_call.1} parent=51 // pred_fallthru
          _
      $region52: #{tpu_custom_call.1} parent=5 // pred_fallthru
        _
      %p4920 = scmp.le.s32.totalorder 2, %s17
      // Predicated region
      $region57: #{tpu_custom_call.1} parent=5 // pred_check
        %p4921 = pneg %p4920
      $region58: #{tpu_custom_call.1} parent=5 // pred_check_branch
        %4923 = sbr.rel (%p4921) target = $region60
      $region59: #{tpu_custom_call.1} parent=5 // pred_region
        %s4924 = ssub.s32 %s17, 2
        // Predicated region
        $region61: #{tpu_custom_call.1} parent=59 // pred_check
          %p4925 = pneg %p246
        $region62: #{tpu_custom_call.1} parent=59 // pred_check_branch
          %4927 = sbr.rel (%p4925) target = $region64
        $region63: #{tpu_custom_call.1} parent=59 // pred_region
          %s4928 = sand.u32 %s231, 1
          %s4929 = scalar_lea.sflag [#allocation5], %s4928
          %s4930 = sand.u32 %s231, 1
          %s4931 = smul.addr %s4930, 64
          %s4932 = scalar_lea.vmem [#allocation4], %s4931
          %4933 = dma.done %s4929, 1024
        $region64: #{tpu_custom_call.1} parent=59 // pred_fallthru
          _
      $region60: #{tpu_custom_call.1} parent=5 // pred_fallthru
        _
    $region6: #{tpu_custom_call.1} parent=1 // loop_footer
      %s21 = sadd.s32 1, %s17
    $region7: #{tpu_custom_call.1} parent=1 // loop_footer_branch
      %16 = sbr.rel target = $region3
    $region8: #{tpu_custom_call.1} parent=1 // loop_exit
      _
    %4934 = vsyncpa [#allocation5], 1
    %s4935 = scalar_lea.sflag [#allocation5], 1
    %4936 = vsyncpa %s4935, 1

</llo_original>
